<compile_context>
chip_gen: v7x
topology: tpu7x:2x2x1
jax: 0.10.0
libtpu: 0.0.40
codegen_flags: <defaults>
</compile_context>

<pallas_src>
import functools

import jax
import jax.numpy as jnp
from jax.experimental import pallas as pl
from jax.experimental.pallas import tpu as pltpu


def _kd_sp_kernel(s_ref, t_ref, out_ref, gs_acc, gt_acc, *,
                  d_total, blk, precision, need_mask):
    k = pl.program_id(0)

    @pl.when(k == 0)
    def _init():
        gs_acc[...] = jnp.zeros_like(gs_acc)
        gt_acc[...] = jnp.zeros_like(gt_acc)

    s = s_ref[...]
    t = t_ref[...]
    if need_mask:
        # The trailing block may run past D; its out-of-bounds lanes hold
        # undefined data, so zero them (select, not multiply, to kill NaNs).
        rem = d_total - k * blk
        col = jax.lax.broadcasted_iota(jnp.int32, s.shape, 1)
        keep = col < rem
        s = jnp.where(keep, s, jnp.zeros_like(s))
        t = jnp.where(keep, t, jnp.zeros_like(t))

    # Contract on dim 1 of both operands -> (B, B) Gram contribution,
    # without materializing a transposed copy.
    dn = (((1,), (1,)), ((), ()))
    gs_acc[...] += jax.lax.dot_general(
        s, s, dn, precision=precision, preferred_element_type=jnp.float32)
    gt_acc[...] += jax.lax.dot_general(
        t, t, dn, precision=precision, preferred_element_type=jnp.float32)

    @pl.when(k == pl.num_programs(0) - 1)
    def _finalize():
        g_s = gs_acc[...]
        g_t = gt_acc[...]
        # torch F.normalize clamps the L2 norm at 1e-12; clamping the squared
        # norm at 1e-24 before rsqrt is equivalent (sqrt is monotone).
        inv_s = jax.lax.rsqrt(
            jnp.maximum(jnp.sum(g_s * g_s, axis=1, keepdims=True), 1e-24))
        inv_t = jax.lax.rsqrt(
            jnp.maximum(jnp.sum(g_t * g_t, axis=1, keepdims=True), 1e-24))
        diff = g_s * inv_s - g_t * inv_t
        b = diff.shape[0]
        # F.mse_loss default reduction='mean' over all B*B entries.
        out_ref[0, 0] = jnp.sum(diff * diff) * (1.0 / float(b * b))


def _pick_tk(b, d_lane, itemsize, vmem_budget, max_tk=16384):
    """Largest lane-aligned tk s.t. 2 inputs x 2 pipeline buffers + the two
    (B,B) f32 accumulators fit inside `vmem_budget` bytes."""
    acc_bytes = 2 * b * b * 4
    avail = vmem_budget - acc_bytes
    tk = avail // (4 * b * itemsize)
    tk = (tk // 128) * 128
    return max(128, min(tk, d_lane, max_tk))


def kd_loss_sp(fm_s, fm_t, *, tk=None, vmem_budget=24 * 1024 * 1024):
    """Similarity-preserving KD loss. fm_s/fm_t: (B, ...) feature maps."""
    assert fm_s.shape == fm_t.shape
    b = fm_s.shape[0]
    s2 = fm_s.reshape(b, -1)
    t2 = fm_t.reshape(b, -1)
    d = s2.shape[1]
    itemsize = jnp.dtype(s2.dtype).itemsize

    d_lane = pl.cdiv(d, 128) * 128
    if tk is None:
        tk = _pick_tk(b, d_lane, itemsize, vmem_budget)
    else:
        tk = max(128, (tk // 128) * 128)
        tk = min(tk, d_lane)
    n_k = pl.cdiv(d, tk)

    if n_k == 1:
        # A full-extent block is always legal (no 128-divisibility needed)
        # and needs no tail masking.
        blk, need_mask = d, False
    else:
        blk, need_mask = tk, (d % tk) != 0

    # Match torch.mm semantics: full f32 for f32 inputs (HIGHEST on the MXU),
    # native single-pass MXU for bf16 inputs.
    precision = (jax.lax.Precision.HIGHEST if s2.dtype == jnp.float32
                 else jax.lax.Precision.DEFAULT)

    kernel = functools.partial(
        _kd_sp_kernel, d_total=d, blk=blk, precision=precision,
        need_mask=need_mask)

    out = pl.pallas_call(
        kernel,
        out_shape=jax.ShapeDtypeStruct((1, 1), jnp.float32),
        grid_spec=pltpu.PrefetchScalarGridSpec(
            num_scalar_prefetch=0,
            grid=(n_k,),
            in_specs=[
                pl.BlockSpec((b, blk), lambda k: (0, k)),
                pl.BlockSpec((b, blk), lambda k: (0, k)),
            ],
            out_specs=pl.BlockSpec(memory_space=pltpu.MemorySpace.SMEM),
            scratch_shapes=[
                pltpu.VMEM((b, b), jnp.float32),   # G_s accumulator
                pltpu.VMEM((b, b), jnp.float32),   # G_t accumulator
            ],
        ),
        compiler_params=pltpu.CompilerParams(
            dimension_semantics=("arbitrary",),
            vmem_limit_bytes=32 * 1024 * 1024,
        ),
    )(s2, t2)
    return out[0, 0]


def _kd_loss_sp_ref(fm_s, fm_t):
    """Pure-JAX reference mirroring the PyTorch module."""
    b = fm_s.shape[0]
    s = fm_s.reshape(b, -1).astype(jnp.float32)
    t = fm_t.reshape(b, -1).astype(jnp.float32)
    g_s = jnp.dot(s, s.T, precision=jax.lax.Precision.HIGHEST)
    g_t = jnp.dot(t, t.T, precision=jax.lax.Precision.HIGHEST)

    def rownorm(g):
        return g / jnp.maximum(
            jnp.sqrt(jnp.sum(g * g, axis=1, keepdims=True)), 1e-12)

    return jnp.mean((rownorm(g_s) - rownorm(g_t)) ** 2)


if __name__ == "__main__":
    key = jax.random.PRNGKey(0)
    k1, k2, k3, k4, k5, k6 = jax.random.split(key, 6)

    # Case 1: lane-aligned D (4*16*16 = 1024), single grid step.
    fm_s = jax.random.normal(k1, (8, 4, 16, 16), dtype=jnp.float32)
    fm_t = jax.random.normal(k2, (8, 4, 16, 16), dtype=jnp.float32)
    loss = jax.block_until_ready(kd_loss_sp(fm_s, fm_t))
    ref = jax.block_until_ready(_kd_loss_sp_ref(fm_s, fm_t))
    assert jnp.allclose(loss, ref, rtol=1e-3, atol=1e-6), (loss, ref)

    # Case 2: D = 200 (not lane-aligned -> full-extent single block) and
    # batch not a multiple of 8 (full-extent sublane block).
    fm_s2 = jax.random.normal(k3, (4, 8, 5, 5), dtype=jnp.float32)
    fm_t2 = jax.random.normal(k4, (4, 8, 5, 5), dtype=jnp.float32)
    loss2 = jax.block_until_ready(kd_loss_sp(fm_s2, fm_t2))
    ref2 = jax.block_until_ready(_kd_loss_sp_ref(fm_s2, fm_t2))
    assert jnp.allclose(loss2, ref2, rtol=1e-3, atol=1e-6), (loss2, ref2)

    # Case 3: D = 867, forced tk=256 -> multi-step grid with a masked ragged
    # tail block (exercises the in-kernel tail mask, no wrapper padding).
    fm_s3 = jax.random.normal(k5, (6, 3, 17, 17), dtype=jnp.float32)
    fm_t3 = jax.random.normal(k6, (6, 3, 17, 17), dtype=jnp.float32)
    loss3 = jax.block_until_ready(kd_loss_sp(fm_s3, fm_t3, tk=256))
    ref3 = jax.block_until_ready(_kd_loss_sp_ref(fm_s3, fm_t3))
    assert jnp.allclose(loss3, ref3, rtol=1e-3, atol=1e-6), (loss3, ref3)

    # Case 4: bf16 inputs (native MXU path, DEFAULT precision).
    fm_s4 = fm_s.astype(jnp.bfloat16)
    fm_t4 = fm_t.astype(jnp.bfloat16)
    loss4 = jax.block_until_ready(kd_loss_sp(fm_s4, fm_t4))
    ref4 = jax.block_until_ready(_kd_loss_sp_ref(fm_s4, fm_t4))
    assert jnp.allclose(loss4, ref4, rtol=2e-2, atol=1e-5), (loss4, ref4)

    print("KERNEL_OK")
</pallas_src>

<mosaic_0001>
module attributes {stable_mosaic.version = 11 : i64} {
  func.func @_kd_sp_kernel(%arg0: i32, %arg1: memref<8x1024xf32, #tpu.memory_space<vmem>>, %arg2: memref<8x1024xf32, #tpu.memory_space<vmem>>, %arg3: memref<1x1xf32, #tpu.memory_space<smem>>, %arg4: memref<8x8xf32, #tpu.memory_space<vmem>>, %arg5: memref<8x8xf32, #tpu.memory_space<vmem>>) attributes {dimension_semantics = [#tpu.dimension_semantics<arbitrary>], iteration_bounds = array<i64: 1>, scalar_prefetch = 0 : i64, scratch_operands = 2 : i64, tpu.core_type = #tpu.core_type<tc>, window_params = [{transform_indices = @transform_0, window_bounds = array<i64: 8, 1024>}, {transform_indices = @transform_1, window_bounds = array<i64: 8, 1024>}, {transform_indices = @transform_2, window_bounds = array<i64: 1, 1>}]} {
    %c0_i32 = arith.constant 0 : i32
    %0 = arith.cmpi eq, %arg0, %c0_i32 : i32
    %1 = arith.extui %0 : i1 to i32
    %c0_i32_0 = arith.constant 0 : i32
    %2 = arith.cmpi ne, %1, %c0_i32_0 : i32
    scf.if %2 {
      %cst_15 = arith.constant 0.000000e+00 : f32
      %16 = vector.broadcast %cst_15 : f32 to vector<8x8xf32>
      %c0_16 = arith.constant 0 : index
      %c0_17 = arith.constant 0 : index
      %17 = vector.load %arg4[%c0_16, %c0_17] : memref<8x8xf32, #tpu.memory_space<vmem>>, vector<8x8xf32>
      tpu.vector_store %arg4[%c0_16, %c0_17], %16 {strides = array<i32>} : memref<8x8xf32, #tpu.memory_space<vmem>>, vector<8x8xf32>,
      %cst_18 = arith.constant 0.000000e+00 : f32
      %18 = vector.broadcast %cst_18 : f32 to vector<8x8xf32>
      %c0_19 = arith.constant 0 : index
      %c0_20 = arith.constant 0 : index
      %19 = vector.load %arg5[%c0_19, %c0_20] : memref<8x8xf32, #tpu.memory_space<vmem>>, vector<8x8xf32>
      tpu.vector_store %arg5[%c0_19, %c0_20], %18 {strides = array<i32>} : memref<8x8xf32, #tpu.memory_space<vmem>>, vector<8x8xf32>,
    } else {
    }
    %c0 = arith.constant 0 : index
    %c0_1 = arith.constant 0 : index
    %3 = vector.load %arg1[%c0, %c0_1] : memref<8x1024xf32, #tpu.memory_space<vmem>>, vector<8x1024xf32>
    %c0_2 = arith.constant 0 : index
    %c0_3 = arith.constant 0 : index
    %4 = vector.load %arg2[%c0_2, %c0_3] : memref<8x1024xf32, #tpu.memory_space<vmem>>, vector<8x1024xf32>
    %c0_4 = arith.constant 0 : index
    %c0_5 = arith.constant 0 : index
    %5 = vector.load %arg4[%c0_4, %c0_5] : memref<8x8xf32, #tpu.memory_space<vmem>>, vector<8x8xf32>
    %cst = arith.constant dense<0.000000e+00> : vector<8x8xf32>
    %6 = tpu.matmul %3, %3, %cst {dimension_numbers = #tpu.dot_dimension_numbers<[1], [1], [0], [0], [0, 0, 1, 0], [], []>, precision = #tpu.contract_precision<fp32>} : vector<8x1024xf32>, vector<8x1024xf32>, vector<8x8xf32> -> vector<8x8xf32>
    %7 = arith.addf %5, %6 : vector<8x8xf32>
    %c0_6 = arith.constant 0 : index
    %c0_7 = arith.constant 0 : index
    %8 = vector.load %arg4[%c0_6, %c0_7] : memref<8x8xf32, #tpu.memory_space<vmem>>, vector<8x8xf32>
    tpu.vector_store %arg4[%c0_6, %c0_7], %7 {strides = array<i32>} : memref<8x8xf32, #tpu.memory_space<vmem>>, vector<8x8xf32>,
    %c0_8 = arith.constant 0 : index
    %c0_9 = arith.constant 0 : index
    %9 = vector.load %arg5[%c0_8, %c0_9] : memref<8x8xf32, #tpu.memory_space<vmem>>, vector<8x8xf32>
    %cst_10 = arith.constant dense<0.000000e+00> : vector<8x8xf32>
    %10 = tpu.matmul %4, %4, %cst_10 {dimension_numbers = #tpu.dot_dimension_numbers<[1], [1], [0], [0], [0, 0, 1, 0], [], []>, precision = #tpu.contract_precision<fp32>} : vector<8x1024xf32>, vector<8x1024xf32>, vector<8x8xf32> -> vector<8x8xf32>
    %11 = arith.addf %9, %10 : vector<8x8xf32>
    %c0_11 = arith.constant 0 : index
    %c0_12 = arith.constant 0 : index
    %12 = vector.load %arg5[%c0_11, %c0_12] : memref<8x8xf32, #tpu.memory_space<vmem>>, vector<8x8xf32>
    tpu.vector_store %arg5[%c0_11, %c0_12], %11 {strides = array<i32>} : memref<8x8xf32, #tpu.memory_space<vmem>>, vector<8x8xf32>,
    %c0_i32_13 = arith.constant 0 : i32
    %13 = arith.cmpi eq, %arg0, %c0_i32_13 : i32
    %14 = arith.extui %13 : i1 to i32
    %c0_i32_14 = arith.constant 0 : i32
    %15 = arith.cmpi ne, %14, %c0_i32_14 : i32
    scf.if %15 {
      %c0_15 = arith.constant 0 : index
      %c0_16 = arith.constant 0 : index
      %16 = vector.load %arg4[%c0_15, %c0_16] : memref<8x8xf32, #tpu.memory_space<vmem>>, vector<8x8xf32>
      %c0_17 = arith.constant 0 : index
      %c0_18 = arith.constant 0 : index
      %17 = vector.load %arg5[%c0_17, %c0_18] : memref<8x8xf32, #tpu.memory_space<vmem>>, vector<8x8xf32>
      %18 = arith.mulf %16, %16 : vector<8x8xf32>
      %cst_19 = arith.constant dense<0.000000e+00> : vector<8xf32>
      %19 = vector.multi_reduction <add>, %18, %cst_19 [1] : vector<8x8xf32> to vector<8xf32>
      %20 = vector.shape_cast %19 : vector<8xf32> to vector<8x1xf32>
      %cst_20 = arith.constant 1.000000e-24 : f32
      %21 = vector.broadcast %cst_20 : f32 to vector<8x1xf32>
      %22 = arith.maximumf %20, %21 : vector<8x1xf32>
      %23 = math.rsqrt %22 : vector<8x1xf32>
      %24 = arith.mulf %17, %17 : vector<8x8xf32>
      %cst_21 = arith.constant dense<0.000000e+00> : vector<8xf32>
      %25 = vector.multi_reduction <add>, %24, %cst_21 [1] : vector<8x8xf32> to vector<8xf32>
      %26 = vector.shape_cast %25 : vector<8xf32> to vector<8x1xf32>
      %cst_22 = arith.constant 1.000000e-24 : f32
      %27 = vector.broadcast %cst_22 : f32 to vector<8x1xf32>
      %28 = arith.maximumf %26, %27 : vector<8x1xf32>
      %29 = math.rsqrt %28 : vector<8x1xf32>
      %30 = vector.broadcast %23 : vector<8x1xf32> to vector<8x8xf32>
      %31 = arith.mulf %16, %30 : vector<8x8xf32>
      %32 = vector.broadcast %29 : vector<8x1xf32> to vector<8x8xf32>
      %33 = arith.mulf %17, %32 : vector<8x8xf32>
      %34 = arith.subf %31, %33 : vector<8x8xf32>
      %35 = arith.mulf %34, %34 : vector<8x8xf32>
      %36 = vector.shape_cast %35 : vector<8x8xf32> to vector<1x8x8xf32>
      %cst_23 = arith.constant dense<0.000000e+00> : vector<1xf32>
      %37 = vector.multi_reduction <add>, %36, %cst_23 [1, 2] : vector<1x8x8xf32> to vector<1xf32>
      %38 = vector.shape_cast %37 : vector<1xf32> to vector<1x1x1xf32>
      %39 = vector.extract %38[0, 0, 0] : f32 from vector<1x1x1xf32>
      %cst_24 = arith.constant 1.562500e-02 : f32
      %40 = arith.mulf %39, %cst_24 : f32
      %c0_25 = arith.constant 0 : index
      %c0_26 = arith.constant 0 : index
      %41 = memref.load %arg3[%c0_25, %c0_26] : memref<1x1xf32, #tpu.memory_space<smem>>
      memref.store %40, %arg3[%c0_25, %c0_26] : memref<1x1xf32, #tpu.memory_space<smem>>
    } else {
    }
    return
  }
  func.func @transform_0(%arg0: i32) -> (i32, i32) {
    %c0_i32 = arith.constant 0 : i32
    %c0_i32_0 = arith.constant 0 : i32
    return %c0_i32, %arg0 : i32, i32
  }
  func.func @transform_1(%arg0: i32) -> (i32, i32) {
    %c0_i32 = arith.constant 0 : i32
    %c0_i32_0 = arith.constant 0 : i32
    return %c0_i32, %arg0 : i32, i32
  }
  func.func @transform_2(%arg0: i32) -> (i32, i32) {
    %c0_i32 = arith.constant 0 : i32
    %c0_i32_0 = arith.constant 0 : i32
    %c0_i32_1 = arith.constant 0 : i32
    return %c0_i32, %c0_i32_0 : i32, i32
  }
}

</mosaic_0001>

<llo_original>
// kernel: tpu_custom_call.1
$region0: #{tpu_custom_call.1}
  #allocation0 [shape = 'u32[]', space=smem, size = 0x4, offset = 0x4, fixed_abs, tag = 'smem constant byte address 0x4 - core index']
  #allocation1 [shape = 'u32[144,128]{1,0:T(1,128)}', space=vmem, size = 0x12000, scoped, tag = 'internal scratch']
  #allocation2 [shape = 'f32[8,8]{1,0:T(8,128)}', space=vmem, size = 0x1000, scoped, tag = 'scratch operand']
  #allocation3 [shape = 'f32[8,8]{1,0:T(8,128)}', space=vmem, size = 0x1000, scoped, tag = 'scratch operand']
  %s0 = inlined_call_operand.hbm [shape: f32[8,1024], index: 0, kind: input, shape index: {}]
  %s1 = inlined_call_operand.hbm [shape: f32[8,1024], index: 1, kind: input, shape index: {}]
  %s2 = inlined_call_operand.hbm [shape: f32[1,1], index: 2, kind: output, shape index: {}]
  %s3 = sld [smem:[#allocation0]]
  $region34: #{tpu_custom_call.1} parent=0
    _
  %s5 = ssub.s32 1, %s3
  %s6 = scalar_select 0, %s5, %s3
  $region1: #{tpu_custom_call.1} parent=0
    #allocation4 [shape = 'u8[32768]{0}', space=vmem, size = 0x8000, scoped, tag = 'input window, operand 0, single buffered']
    #allocation5 [shape = 's32[1]{0}', space=sflag, size = 0x4, scoped, tag = 'scoped memory for tpu_custom_call.1']
    #allocation6 [shape = 's32[1]{0}', space=sflag, size = 0x4, scoped, tag = 'scoped memory for tpu_custom_call.1']
    #allocation7 [shape = 'u8[32768]{0}', space=vmem, size = 0x8000, scoped, tag = 'input window, operand 1, single buffered']
    #allocation8 [shape = 's32[1]{0}', space=sflag, size = 0x4, scoped, tag = 'scoped memory for tpu_custom_call.1']
    #allocation9 [shape = 'u8[512]{0}', space=smem, size = 0x200, scoped, tag = 'output window, operand 0, single buffered']
    %7 = vsyncpa [#allocation5], 0
    %8 = vsyncpa [#allocation8], 0
    %9 = vsyncpa [#allocation6], 0
    // Predicated region
    $region2: #{tpu_custom_call.1} parent=1 // pred_check
      _
    $region3: #{tpu_custom_call.1} parent=1 // pred_check_branch
      %11 = sbr.rel (0) target = $region5
    $region4: #{tpu_custom_call.1} parent=1 // pred_region
      %s13 = ssub.s32 1024, 1024
      %14 = vsyncadd [#allocation5], %s13
      %s16 = sshll.u32 [#allocation4], 4
      %s17 = int_to_ptr.vmem [resolvable:$true] %s16
      %19 = dma.hbm_to_vmem [thread:$0]  %s0, 1024, %s17, [#allocation5]
    $region5: #{tpu_custom_call.1} parent=1 // pred_fallthru
      _
    // Predicated region
    $region6: #{tpu_custom_call.1} parent=1 // pred_check
      _
    $region7: #{tpu_custom_call.1} parent=1 // pred_check_branch
      %21 = sbr.rel (0) target = $region9
    $region8: #{tpu_custom_call.1} parent=1 // pred_region
      %s23 = ssub.s32 1024, 1024
      %24 = vsyncadd [#allocation8], %s23
      %s26 = sshll.u32 [#allocation7], 4
      %s27 = int_to_ptr.vmem [resolvable:$true] %s26
      %29 = dma.hbm_to_vmem [thread:$0]  %s1, 1024, %s27, [#allocation8]
    $region9: #{tpu_custom_call.1} parent=1 // pred_fallthru
      _
    // Predicated region
    $region10: #{tpu_custom_call.1} parent=1 // pred_check
      _
    $region11: #{tpu_custom_call.1} parent=1 // pred_check_branch
      %31 = sbr.rel (0) target = $region13
    $region12: #{tpu_custom_call.1} parent=1 // pred_region
      %32 = dma.done [#allocation5], 1024
    $region13: #{tpu_custom_call.1} parent=1 // pred_fallthru
      _
    // Predicated region
    $region14: #{tpu_custom_call.1} parent=1 // pred_check
      _
    $region15: #{tpu_custom_call.1} parent=1 // pred_check_branch
      %34 = sbr.rel (0) target = $region17
    $region16: #{tpu_custom_call.1} parent=1 // pred_region
      %35 = dma.done [#allocation8], 1024
    $region17: #{tpu_custom_call.1} parent=1 // pred_fallthru
      _
    %p36 = scmp.eq.s32.totalorder 0, 0
    // Predicated region
    $region18: #{tpu_custom_call.1} parent=1 // pred_check
      %p37 = pneg %p36
    $region19: #{tpu_custom_call.1} parent=1 // pred_check_branch
      %39 = sbr.rel (%p37) target = $region21
    $region20: #{tpu_custom_call.1} parent=1 // pred_region
      %vm40 = vcmask 64512
      %41 = vst.msk [vmem:[#allocation2] sm:$0xff] %vm40, 0.0
      %42 = vst.msk [vmem:[#allocation3] sm:$0xff] %vm40, 0.0
    $region21: #{tpu_custom_call.1} parent=1 // pred_fallthru
      _
    %v43 = vld [vmem:[#allocation4] sm:$0xff]
    %v44 = vld [vmem:[#allocation4 + $0x8] sm:$0xff]
    %v45 = vld [vmem:[#allocation4 + $0x10] sm:$0xff]
    %v46 = vld [vmem:[#allocation4 + $0x18] sm:$0xff]
    %v47 = vld [vmem:[#allocation4 + $0x20] sm:$0xff]
    %v48 = vld [vmem:[#allocation4 + $0x28] sm:$0xff]
    %v49 = vld [vmem:[#allocation4 + $0x30] sm:$0xff]
    %v50 = vld [vmem:[#allocation4 + $0x38] sm:$0xff]
    %v51 = vld [vmem:[#allocation7] sm:$0xff]
    %v52 = vld [vmem:[#allocation7 + $0x8] sm:$0xff]
    %v53 = vld [vmem:[#allocation7 + $0x10] sm:$0xff]
    %v54 = vld [vmem:[#allocation7 + $0x18] sm:$0xff]
    %v55 = vld [vmem:[#allocation7 + $0x20] sm:$0xff]
    %v56 = vld [vmem:[#allocation7 + $0x28] sm:$0xff]
    %v57 = vld [vmem:[#allocation7 + $0x30] sm:$0xff]
    %v58 = vld [vmem:[#allocation7 + $0x38] sm:$0xff]
    %v59 = vld [vmem:[#allocation2] sm:$0xff]
    %v60 = vand.u32 %v44, 4294901760
    %61 = vmatprep.subr.mxu0 %v60
    %v62 = vand.u32 %v43, 4294901760
    %63 = vmatpush1.xpose.msra.mxu0 %v62
    %64 = vmatprep.subr.mxu0 0.0
    %65 = vmatpush1.xpose.msra.mxu0 0.0
    %66 = vmatprep.subr.mxu0 0.0
    %67 = vmatpush1.xpose.msra.mxu0 0.0
    %68 = vmatprep.subr.mxu0 0.0
    %69 = vmatpush1.xpose.msra.mxu0 0.0
    %70 = vmatprep.subr.mxu0 0.0
    %71 = vmatpush1.xpose.msra.mxu0 0.0
    %72 = vmatprep.subr.mxu0 0.0
    %73 = vmatpush1.xpose.msra.mxu0 0.0
    %74 = vmatprep.subr.mxu0 0.0
    %75 = vmatpush1.xpose.msra.mxu0 0.0
    %76 = vmatprep.subr.mxu0 0.0
    %77 = vmatpush1.xpose.msra.mxu0 0.0
    %78 = vmatprep.subr.mxu0 0.0
    %79 = vmatpush1.xpose.msra.mxu0 0.0
    %80 = vmatprep.subr.mxu0 0.0
    %81 = vmatpush1.xpose.msra.mxu0 0.0
    %82 = vmatprep.subr.mxu0 0.0
    %83 = vmatpush1.xpose.msra.mxu0 0.0
    %84 = vmatprep.subr.mxu0 0.0
    %85 = vmatpush1.xpose.msra.mxu0 0.0
    %86 = vmatprep.subr.mxu0 0.0
    %87 = vmatpush1.xpose.msra.mxu0 0.0
    %88 = vmatprep.subr.mxu0 0.0
    %89 = vmatpush1.xpose.msra.mxu0 0.0
    %90 = vmatprep.subr.mxu0 0.0
    %91 = vmatpush1.xpose.msra.mxu0 0.0
    %92 = vmatprep.subr.mxu0 0.0
    %93 = vmatpush1.xpose.msra.mxu0 0.0
    %94 = vmatprep.subr.mxu0 0.0
    %95 = vmatpush1.xpose.msra.mxu0 0.0
    %96 = vmatprep.subr.mxu0 0.0
    %97 = vmatpush1.xpose.msra.mxu0 0.0
    %98 = vmatprep.subr.mxu0 0.0
    %99 = vmatpush1.xpose.msra.mxu0 0.0
    %100 = vmatprep.subr.mxu0 0.0
    %101 = vmatpush1.xpose.msra.mxu0 0.0
    %102 = vmatprep.subr.mxu0 0.0
    %103 = vmatpush1.xpose.msra.mxu0 0.0
    %104 = vmatprep.subr.mxu0 0.0
    %105 = vmatpush1.xpose.msra.mxu0 0.0
    %106 = vmatprep.subr.mxu0 0.0
    %107 = vmatpush1.xpose.msra.mxu0 0.0
    %108 = vmatprep.subr.mxu0 0.0
    %109 = vmatpush1.xpose.msra.mxu0 0.0
    %110 = vmatprep.subr.mxu0 0.0
    %111 = vmatpush1.xpose.msra.mxu0 0.0
    %112 = vmatprep.subr.mxu0 0.0
    %113 = vmatpush1.xpose.msra.mxu0 0.0
    %114 = vmatprep.subr.mxu0 0.0
    %115 = vmatpush1.xpose.msra.mxu0 0.0
    %116 = vmatprep.subr.mxu0 0.0
    %117 = vmatpush1.xpose.msra.mxu0 0.0
    %118 = vmatprep.subr.mxu0 0.0
    %119 = vmatpush1.xpose.msra.mxu0 0.0
    %120 = vmatprep.subr.mxu0 0.0
    %121 = vmatpush1.xpose.msra.mxu0 0.0
    %122 = vmatprep.subr.mxu0 0.0
    %123 = vmatpush1.xpose.msra.mxu0 0.0
    %124 = vmatprep.subr.mxu0 0.0
    %125 = vmatpush1.xpose.msra.mxu0 0.0
    %v126 = vand.u32 %v44, 4294901760
    %v127 = vsub.f32 %v44, %v126
    %v128 = vand.u32 %v127, 4294901760
    %v129 = vsub.f32 %v127, %v128
    %v130 = vand.u32 %v129, 4294901760
    %131 = vmatprep.mubr.f32.mxu0 %v130
    %v132 = vand.u32 %v43, 4294901760
    %v133 = vsub.f32 %v43, %v132
    %v134 = vand.u32 %v133, 4294901760
    %v135 = vsub.f32 %v133, %v134
    %v136 = vand.u32 %v135, 4294901760
    %137 = vmatmul.mubr.f32.gmra.mrb[0].mxu0 %v136
    %v138 = vpop.f32.mrb[0].mxu0
    %v139 = vadd.f32 0.0, %v138
    %v140 = vpop.f32.mrb[0].mxu0
    %141 = vdwg.mxu0
    %v142 = vand.u32 %v44, 4294901760
    %v143 = vsub.f32 %v44, %v142
    %v144 = vand.u32 %v143, 4294901760
    %v145 = vsub.f32 %v143, %v144
    %v146 = vand.u32 %v145, 4294901760
    %147 = vmatprep.subr.mxu0 %v146
    %v148 = vand.u32 %v43, 4294901760
    %v149 = vsub.f32 %v43, %v148
    %v150 = vand.u32 %v149, 4294901760
    %v151 = vsub.f32 %v149, %v150
    %v152 = vand.u32 %v151, 4294901760
    %153 = vmatpush1.xpose.msra.mxu0 %v152
    %154 = vmatprep.subr.mxu0 0.0
    %155 = vmatpush1.xpose.msra.mxu0 0.0
    %156 = vmatprep.subr.mxu0 0.0
    %157 = vmatpush1.xpose.msra.mxu0 0.0
    %158 = vmatprep.subr.mxu0 0.0
    %159 = vmatpush1.xpose.msra.mxu0 0.0
    %160 = vmatprep.subr.mxu0 0.0
    %161 = vmatpush1.xpose.msra.mxu0 0.0
    %162 = vmatprep.subr.mxu0 0.0
    %163 = vmatpush1.xpose.msra.mxu0 0.0
    %164 = vmatprep.subr.mxu0 0.0
    %165 = vmatpush1.xpose.msra.mxu0 0.0
    %166 = vmatprep.subr.mxu0 0.0
    %167 = vmatpush1.xpose.msra.mxu0 0.0
    %168 = vmatprep.subr.mxu0 0.0
    %169 = vmatpush1.xpose.msra.mxu0 0.0
    %170 = vmatprep.subr.mxu0 0.0
    %171 = vmatpush1.xpose.msra.mxu0 0.0
    %172 = vmatprep.subr.mxu0 0.0
    %173 = vmatpush1.xpose.msra.mxu0 0.0
    %174 = vmatprep.subr.mxu0 0.0
    %175 = vmatpush1.xpose.msra.mxu0 0.0
    %176 = vmatprep.subr.mxu0 0.0
    %177 = vmatpush1.xpose.msra.mxu0 0.0
    %178 = vmatprep.subr.mxu0 0.0
    %179 = vmatpush1.xpose.msra.mxu0 0.0
    %180 = vmatprep.subr.mxu0 0.0
    %181 = vmatpush1.xpose.msra.mxu0 0.0
    %182 = vmatprep.subr.mxu0 0.0
    %183 = vmatpush1.xpose.msra.mxu0 0.0
    %184 = vmatprep.subr.mxu0 0.0
    %185 = vmatpush1.xpose.msra.mxu0 0.0
    %186 = vmatprep.subr.mxu0 0.0
    %187 = vmatpush1.xpose.msra.mxu0 0.0
    %188 = vmatprep.subr.mxu0 0.0
    %189 = vmatpush1.xpose.msra.mxu0 0.0
    %190 = vmatprep.subr.mxu0 0.0
    %191 = vmatpush1.xpose.msra.mxu0 0.0
    %192 = vmatprep.subr.mxu0 0.0
    %193 = vmatpush1.xpose.msra.mxu0 0.0
    %194 = vmatprep.subr.mxu0 0.0
    %195 = vmatpush1.xpose.msra.mxu0 0.0
    %196 = vmatprep.subr.mxu0 0.0
    %197 = vmatpush1.xpose.msra.mxu0 0.0
    %198 = vmatprep.subr.mxu0 0.0
    %199 = vmatpush1.xpose.msra.mxu0 0.0
    %200 = vmatprep.subr.mxu0 0.0
    %201 = vmatpush1.xpose.msra.mxu0 0.0
    %202 = vmatprep.subr.mxu0 0.0
    %203 = vmatpush1.xpose.msra.mxu0 0.0
    %204 = vmatprep.subr.mxu0 0.0
    %205 = vmatpush1.xpose.msra.mxu0 0.0
    %206 = vmatprep.subr.mxu0 0.0
    %207 = vmatpush1.xpose.msra.mxu0 0.0
    %208 = vmatprep.subr.mxu0 0.0
    %209 = vmatpush1.xpose.msra.mxu0 0.0
    %210 = vmatprep.subr.mxu0 0.0
    %211 = vmatpush1.xpose.msra.mxu0 0.0
    %212 = vmatprep.subr.mxu0 0.0
    %213 = vmatpush1.xpose.msra.mxu0 0.0
    %214 = vmatprep.subr.mxu0 0.0
    %215 = vmatpush1.xpose.msra.mxu0 0.0
    %v216 = vand.u32 %v44, 4294901760
    %217 = vmatprep.mubr.f32.mxu0 %v216
    %v218 = vand.u32 %v43, 4294901760
    %219 = vmatmul.mubr.f32.gmra.mrb[0].mxu0 %v218
    %v220 = vpop.f32.mrb[0].mxu0
    %v221 = vadd.f32 %v139, %v220
    %v222 = vpop.f32.mrb[0].mxu0
    %223 = vdwg.mxu0
    %v224 = vand.u32 %v44, 4294901760
    %v225 = vsub.f32 %v44, %v224
    %226 = vmatprep.subr.mxu0 %v225
    %v227 = vand.u32 %v43, 4294901760
    %v228 = vsub.f32 %v43, %v227
    %229 = vmatpush1.xpose.msra.mxu0 %v228
    %230 = vmatprep.subr.mxu0 0.0
    %231 = vmatpush1.xpose.msra.mxu0 0.0
    %232 = vmatprep.subr.mxu0 0.0
    %233 = vmatpush1.xpose.msra.mxu0 0.0
    %234 = vmatprep.subr.mxu0 0.0
    %235 = vmatpush1.xpose.msra.mxu0 0.0
    %236 = vmatprep.subr.mxu0 0.0
    %237 = vmatpush1.xpose.msra.mxu0 0.0
    %238 = vmatprep.subr.mxu0 0.0
    %239 = vmatpush1.xpose.msra.mxu0 0.0
    %240 = vmatprep.subr.mxu0 0.0
    %241 = vmatpush1.xpose.msra.mxu0 0.0
    %242 = vmatprep.subr.mxu0 0.0
    %243 = vmatpush1.xpose.msra.mxu0 0.0
    %244 = vmatprep.subr.mxu0 0.0
    %245 = vmatpush1.xpose.msra.mxu0 0.0
    %246 = vmatprep.subr.mxu0 0.0
    %247 = vmatpush1.xpose.msra.mxu0 0.0
    %248 = vmatprep.subr.mxu0 0.0
    %249 = vmatpush1.xpose.msra.mxu0 0.0
    %250 = vmatprep.subr.mxu0 0.0
    %251 = vmatpush1.xpose.msra.mxu0 0.0
    %252 = vmatprep.subr.mxu0 0.0
    %253 = vmatpush1.xpose.msra.mxu0 0.0
    %254 = vmatprep.subr.mxu0 0.0
    %255 = vmatpush1.xpose.msra.mxu0 0.0
    %256 = vmatprep.subr.mxu0 0.0
    %257 = vmatpush1.xpose.msra.mxu0 0.0
    %258 = vmatprep.subr.mxu0 0.0
    %259 = vmatpush1.xpose.msra.mxu0 0.0
    %260 = vmatprep.subr.mxu0 0.0
    %261 = vmatpush1.xpose.msra.mxu0 0.0
    %262 = vmatprep.subr.mxu0 0.0
    %263 = vmatpush1.xpose.msra.mxu0 0.0
    %264 = vmatprep.subr.mxu0 0.0
    %265 = vmatpush1.xpose.msra.mxu0 0.0
    %266 = vmatprep.subr.mxu0 0.0
    %267 = vmatpush1.xpose.msra.mxu0 0.0
    %268 = vmatprep.subr.mxu0 0.0
    %269 = vmatpush1.xpose.msra.mxu0 0.0
    %270 = vmatprep.subr.mxu0 0.0
    %271 = vmatpush1.xpose.msra.mxu0 0.0
    %272 = vmatprep.subr.mxu0 0.0
    %273 = vmatpush1.xpose.msra.mxu0 0.0
    %274 = vmatprep.subr.mxu0 0.0
    %275 = vmatpush1.xpose.msra.mxu0 0.0
    %276 = vmatprep.subr.mxu0 0.0
    %277 = vmatpush1.xpose.msra.mxu0 0.0
    %278 = vmatprep.subr.mxu0 0.0
    %279 = vmatpush1.xpose.msra.mxu0 0.0
    %280 = vmatprep.subr.mxu0 0.0
    %281 = vmatpush1.xpose.msra.mxu0 0.0
    %282 = vmatprep.subr.mxu0 0.0
    %283 = vmatpush1.xpose.msra.mxu0 0.0
    %284 = vmatprep.subr.mxu0 0.0
    %285 = vmatpush1.xpose.msra.mxu0 0.0
    %286 = vmatprep.subr.mxu0 0.0
    %287 = vmatpush1.xpose.msra.mxu0 0.0
    %288 = vmatprep.subr.mxu0 0.0
    %289 = vmatpush1.xpose.msra.mxu0 0.0
    %290 = vmatprep.subr.mxu0 0.0
    %291 = vmatpush1.xpose.msra.mxu0 0.0
    %v292 = vand.u32 %v44, 4294901760
    %v293 = vsub.f32 %v44, %v292
    %294 = vmatprep.mubr.f32.mxu0 %v293
    %v295 = vand.u32 %v43, 4294901760
    %v296 = vsub.f32 %v43, %v295
    %297 = vmatmul.mubr.f32.gmra.mrb[0].mxu0 %v296
    %v298 = vpop.f32.mrb[0].mxu0
    %v299 = vadd.f32 %v221, %v298
    %v300 = vpop.f32.mrb[0].mxu0
    %301 = vdwg.mxu0
    %v302 = vand.u32 %v44, 4294901760
    %303 = vmatprep.subr.mxu0 %v302
    %v304 = vand.u32 %v43, 4294901760
    %305 = vmatpush1.xpose.msra.mxu0 %v304
    %306 = vmatprep.subr.mxu0 0.0
    %307 = vmatpush1.xpose.msra.mxu0 0.0
    %308 = vmatprep.subr.mxu0 0.0
    %309 = vmatpush1.xpose.msra.mxu0 0.0
    %310 = vmatprep.subr.mxu0 0.0
    %311 = vmatpush1.xpose.msra.mxu0 0.0
    %312 = vmatprep.subr.mxu0 0.0
    %313 = vmatpush1.xpose.msra.mxu0 0.0
    %314 = vmatprep.subr.mxu0 0.0
    %315 = vmatpush1.xpose.msra.mxu0 0.0
    %316 = vmatprep.subr.mxu0 0.0
    %317 = vmatpush1.xpose.msra.mxu0 0.0
    %318 = vmatprep.subr.mxu0 0.0
    %319 = vmatpush1.xpose.msra.mxu0 0.0
    %320 = vmatprep.subr.mxu0 0.0
    %321 = vmatpush1.xpose.msra.mxu0 0.0
    %322 = vmatprep.subr.mxu0 0.0
    %323 = vmatpush1.xpose.msra.mxu0 0.0
    %324 = vmatprep.subr.mxu0 0.0
    %325 = vmatpush1.xpose.msra.mxu0 0.0
    %326 = vmatprep.subr.mxu0 0.0
    %327 = vmatpush1.xpose.msra.mxu0 0.0
    %328 = vmatprep.subr.mxu0 0.0
    %329 = vmatpush1.xpose.msra.mxu0 0.0
    %330 = vmatprep.subr.mxu0 0.0
    %331 = vmatpush1.xpose.msra.mxu0 0.0
    %332 = vmatprep.subr.mxu0 0.0
    %333 = vmatpush1.xpose.msra.mxu0 0.0
    %334 = vmatprep.subr.mxu0 0.0
    %335 = vmatpush1.xpose.msra.mxu0 0.0
    %336 = vmatprep.subr.mxu0 0.0
    %337 = vmatpush1.xpose.msra.mxu0 0.0
    %338 = vmatprep.subr.mxu0 0.0
    %339 = vmatpush1.xpose.msra.mxu0 0.0
    %340 = vmatprep.subr.mxu0 0.0
    %341 = vmatpush1.xpose.msra.mxu0 0.0
    %342 = vmatprep.subr.mxu0 0.0
    %343 = vmatpush1.xpose.msra.mxu0 0.0
    %344 = vmatprep.subr.mxu0 0.0
    %345 = vmatpush1.xpose.msra.mxu0 0.0
    %346 = vmatprep.subr.mxu0 0.0
    %347 = vmatpush1.xpose.msra.mxu0 0.0
    %348 = vmatprep.subr.mxu0 0.0
    %349 = vmatpush1.xpose.msra.mxu0 0.0
    %350 = vmatprep.subr.mxu0 0.0
    %351 = vmatpush1.xpose.msra.mxu0 0.0
    %352 = vmatprep.subr.mxu0 0.0
    %353 = vmatpush1.xpose.msra.mxu0 0.0
    %354 = vmatprep.subr.mxu0 0.0
    %355 = vmatpush1.xpose.msra.mxu0 0.0
    %356 = vmatprep.subr.mxu0 0.0
    %357 = vmatpush1.xpose.msra.mxu0 0.0
    %358 = vmatprep.subr.mxu0 0.0
    %359 = vmatpush1.xpose.msra.mxu0 0.0
    %360 = vmatprep.subr.mxu0 0.0
    %361 = vmatpush1.xpose.msra.mxu0 0.0
    %362 = vmatprep.subr.mxu0 0.0
    %363 = vmatpush1.xpose.msra.mxu0 0.0
    %364 = vmatprep.subr.mxu0 0.0
    %365 = vmatpush1.xpose.msra.mxu0 0.0
    %366 = vmatprep.subr.mxu0 0.0
    %367 = vmatpush1.xpose.msra.mxu0 0.0
    %v368 = vand.u32 %v44, 4294901760
    %v369 = vsub.f32 %v44, %v368
    %v370 = vand.u32 %v369, 4294901760
    %371 = vmatprep.mubr.f32.mxu0 %v370
    %v372 = vand.u32 %v43, 4294901760
    %v373 = vsub.f32 %v43, %v372
    %v374 = vand.u32 %v373, 4294901760
    %375 = vmatmul.mubr.f32.gmra.mrb[0].mxu0 %v374
    %v376 = vpop.f32.mrb[0].mxu0
    %v377 = vadd.f32 %v299, %v376
    %v378 = vpop.f32.mrb[0].mxu0
    %379 = vdwg.mxu0
    %v380 = vand.u32 %v44, 4294901760
    %v381 = vsub.f32 %v44, %v380
    %v382 = vand.u32 %v381, 4294901760
    %383 = vmatprep.subr.mxu0 %v382
    %v384 = vand.u32 %v43, 4294901760
    %v385 = vsub.f32 %v43, %v384
    %v386 = vand.u32 %v385, 4294901760
    %387 = vmatpush1.xpose.msra.mxu0 %v386
    %388 = vmatprep.subr.mxu0 0.0
    %389 = vmatpush1.xpose.msra.mxu0 0.0
    %390 = vmatprep.subr.mxu0 0.0
    %391 = vmatpush1.xpose.msra.mxu0 0.0
    %392 = vmatprep.subr.mxu0 0.0
    %393 = vmatpush1.xpose.msra.mxu0 0.0
    %394 = vmatprep.subr.mxu0 0.0
    %395 = vmatpush1.xpose.msra.mxu0 0.0
    %396 = vmatprep.subr.mxu0 0.0
    %397 = vmatpush1.xpose.msra.mxu0 0.0
    %398 = vmatprep.subr.mxu0 0.0
    %399 = vmatpush1.xpose.msra.mxu0 0.0
    %400 = vmatprep.subr.mxu0 0.0
    %401 = vmatpush1.xpose.msra.mxu0 0.0
    %402 = vmatprep.subr.mxu0 0.0
    %403 = vmatpush1.xpose.msra.mxu0 0.0
    %404 = vmatprep.subr.mxu0 0.0
    %405 = vmatpush1.xpose.msra.mxu0 0.0
    %406 = vmatprep.subr.mxu0 0.0
    %407 = vmatpush1.xpose.msra.mxu0 0.0
    %408 = vmatprep.subr.mxu0 0.0
    %409 = vmatpush1.xpose.msra.mxu0 0.0
    %410 = vmatprep.subr.mxu0 0.0
    %411 = vmatpush1.xpose.msra.mxu0 0.0
    %412 = vmatprep.subr.mxu0 0.0
    %413 = vmatpush1.xpose.msra.mxu0 0.0
    %414 = vmatprep.subr.mxu0 0.0
    %415 = vmatpush1.xpose.msra.mxu0 0.0
    %416 = vmatprep.subr.mxu0 0.0
    %417 = vmatpush1.xpose.msra.mxu0 0.0
    %418 = vmatprep.subr.mxu0 0.0
    %419 = vmatpush1.xpose.msra.mxu0 0.0
    %420 = vmatprep.subr.mxu0 0.0
    %421 = vmatpush1.xpose.msra.mxu0 0.0
    %422 = vmatprep.subr.mxu0 0.0
    %423 = vmatpush1.xpose.msra.mxu0 0.0
    %424 = vmatprep.subr.mxu0 0.0
    %425 = vmatpush1.xpose.msra.mxu0 0.0
    %426 = vmatprep.subr.mxu0 0.0
    %427 = vmatpush1.xpose.msra.mxu0 0.0
    %428 = vmatprep.subr.mxu0 0.0
    %429 = vmatpush1.xpose.msra.mxu0 0.0
    %430 = vmatprep.subr.mxu0 0.0
    %431 = vmatpush1.xpose.msra.mxu0 0.0
    %432 = vmatprep.subr.mxu0 0.0
    %433 = vmatpush1.xpose.msra.mxu0 0.0
    %434 = vmatprep.subr.mxu0 0.0
    %435 = vmatpush1.xpose.msra.mxu0 0.0
    %436 = vmatprep.subr.mxu0 0.0
    %437 = vmatpush1.xpose.msra.mxu0 0.0
    %438 = vmatprep.subr.mxu0 0.0
    %439 = vmatpush1.xpose.msra.mxu0 0.0
    %440 = vmatprep.subr.mxu0 0.0
    %441 = vmatpush1.xpose.msra.mxu0 0.0
    %442 = vmatprep.subr.mxu0 0.0
    %443 = vmatpush1.xpose.msra.mxu0 0.0
    %444 = vmatprep.subr.mxu0 0.0
    %445 = vmatpush1.xpose.msra.mxu0 0.0
    %446 = vmatprep.subr.mxu0 0.0
    %447 = vmatpush1.xpose.msra.mxu0 0.0
    %448 = vmatprep.subr.mxu0 0.0
    %449 = vmatpush1.xpose.msra.mxu0 0.0
    %v450 = vand.u32 %v44, 4294901760
    %451 = vmatprep.mubr.f32.mxu0 %v450
    %v452 = vand.u32 %v43, 4294901760
    %453 = vmatmul.mubr.f32.gmra.mrb[0].mxu0 %v452
    %v454 = vpop.f32.mrb[0].mxu0
    %v455 = vadd.f32 %v377, %v454
    %v456 = vpop.f32.mrb[0].mxu0
    %457 = vdwg.mxu0
    %v458 = vand.u32 %v44, 4294901760
    %459 = vmatprep.subr.mxu0 %v458
    %v460 = vand.u32 %v43, 4294901760
    %461 = vmatpush1.xpose.msra.mxu0 %v460
    %462 = vmatprep.subr.mxu0 0.0
    %463 = vmatpush1.xpose.msra.mxu0 0.0
    %464 = vmatprep.subr.mxu0 0.0
    %465 = vmatpush1.xpose.msra.mxu0 0.0
    %466 = vmatprep.subr.mxu0 0.0
    %467 = vmatpush1.xpose.msra.mxu0 0.0
    %468 = vmatprep.subr.mxu0 0.0
    %469 = vmatpush1.xpose.msra.mxu0 0.0
    %470 = vmatprep.subr.mxu0 0.0
    %471 = vmatpush1.xpose.msra.mxu0 0.0
    %472 = vmatprep.subr.mxu0 0.0
    %473 = vmatpush1.xpose.msra.mxu0 0.0
    %474 = vmatprep.subr.mxu0 0.0
    %475 = vmatpush1.xpose.msra.mxu0 0.0
    %476 = vmatprep.subr.mxu0 0.0
    %477 = vmatpush1.xpose.msra.mxu0 0.0
    %478 = vmatprep.subr.mxu0 0.0
    %479 = vmatpush1.xpose.msra.mxu0 0.0
    %480 = vmatprep.subr.mxu0 0.0
    %481 = vmatpush1.xpose.msra.mxu0 0.0
    %482 = vmatprep.subr.mxu0 0.0
    %483 = vmatpush1.xpose.msra.mxu0 0.0
    %484 = vmatprep.subr.mxu0 0.0
    %485 = vmatpush1.xpose.msra.mxu0 0.0
    %486 = vmatprep.subr.mxu0 0.0
    %487 = vmatpush1.xpose.msra.mxu0 0.0
    %488 = vmatprep.subr.mxu0 0.0
    %489 = vmatpush1.xpose.msra.mxu0 0.0
    %490 = vmatprep.subr.mxu0 0.0
    %491 = vmatpush1.xpose.msra.mxu0 0.0
    %492 = vmatprep.subr.mxu0 0.0
    %493 = vmatpush1.xpose.msra.mxu0 0.0
    %494 = vmatprep.subr.mxu0 0.0
    %495 = vmatpush1.xpose.msra.mxu0 0.0
    %496 = vmatprep.subr.mxu0 0.0
    %497 = vmatpush1.xpose.msra.mxu0 0.0
    %498 = vmatprep.subr.mxu0 0.0
    %499 = vmatpush1.xpose.msra.mxu0 0.0
    %500 = vmatprep.subr.mxu0 0.0
    %501 = vmatpush1.xpose.msra.mxu0 0.0
    %502 = vmatprep.subr.mxu0 0.0
    %503 = vmatpush1.xpose.msra.mxu0 0.0
    %504 = vmatprep.subr.mxu0 0.0
    %505 = vmatpush1.xpose.msra.mxu0 0.0
    %506 = vmatprep.subr.mxu0 0.0
    %507 = vmatpush1.xpose.msra.mxu0 0.0
    %508 = vmatprep.subr.mxu0 0.0
    %509 = vmatpush1.xpose.msra.mxu0 0.0
    %510 = vmatprep.subr.mxu0 0.0
    %511 = vmatpush1.xpose.msra.mxu0 0.0
    %512 = vmatprep.subr.mxu0 0.0
    %513 = vmatpush1.xpose.msra.mxu0 0.0
    %514 = vmatprep.subr.mxu0 0.0
    %515 = vmatpush1.xpose.msra.mxu0 0.0
    %516 = vmatprep.subr.mxu0 0.0
    %517 = vmatpush1.xpose.msra.mxu0 0.0
    %518 = vmatprep.subr.mxu0 0.0
    %519 = vmatpush1.xpose.msra.mxu0 0.0
    %520 = vmatprep.subr.mxu0 0.0
    %521 = vmatpush1.xpose.msra.mxu0 0.0
    %522 = vmatprep.subr.mxu0 0.0
    %523 = vmatpush1.xpose.msra.mxu0 0.0
    %v524 = vand.u32 %v44, 4294901760
    %525 = vmatprep.mubr.f32.mxu0 %v524
    %v526 = vand.u32 %v43, 4294901760
    %527 = vmatmul.mubr.f32.gmra.mrb[0].mxu0 %v526
    %v528 = vpop.f32.mrb[0].mxu0
    %v529 = vadd.f32 %v455, %v528
    %v530 = vpop.f32.mrb[0].mxu0
    %531 = vdwg.mxu0
    %v532 = vand.u32 %v46, 4294901760
    %533 = vmatprep.subr.mxu0 %v532
    %v534 = vand.u32 %v45, 4294901760
    %535 = vmatpush1.xpose.msra.mxu0 %v534
    %536 = vmatprep.subr.mxu0 0.0
    %537 = vmatpush1.xpose.msra.mxu0 0.0
    %538 = vmatprep.subr.mxu0 0.0
    %539 = vmatpush1.xpose.msra.mxu0 0.0
    %540 = vmatprep.subr.mxu0 0.0
    %541 = vmatpush1.xpose.msra.mxu0 0.0
    %542 = vmatprep.subr.mxu0 0.0
    %543 = vmatpush1.xpose.msra.mxu0 0.0
    %544 = vmatprep.subr.mxu0 0.0
    %545 = vmatpush1.xpose.msra.mxu0 0.0
    %546 = vmatprep.subr.mxu0 0.0
    %547 = vmatpush1.xpose.msra.mxu0 0.0
    %548 = vmatprep.subr.mxu0 0.0
    %549 = vmatpush1.xpose.msra.mxu0 0.0
    %550 = vmatprep.subr.mxu0 0.0
    %551 = vmatpush1.xpose.msra.mxu0 0.0
    %552 = vmatprep.subr.mxu0 0.0
    %553 = vmatpush1.xpose.msra.mxu0 0.0
    %554 = vmatprep.subr.mxu0 0.0
    %555 = vmatpush1.xpose.msra.mxu0 0.0
    %556 = vmatprep.subr.mxu0 0.0
    %557 = vmatpush1.xpose.msra.mxu0 0.0
    %558 = vmatprep.subr.mxu0 0.0
    %559 = vmatpush1.xpose.msra.mxu0 0.0
    %560 = vmatprep.subr.mxu0 0.0
    %561 = vmatpush1.xpose.msra.mxu0 0.0
    %562 = vmatprep.subr.mxu0 0.0
    %563 = vmatpush1.xpose.msra.mxu0 0.0
    %564 = vmatprep.subr.mxu0 0.0
    %565 = vmatpush1.xpose.msra.mxu0 0.0
    %566 = vmatprep.subr.mxu0 0.0
    %567 = vmatpush1.xpose.msra.mxu0 0.0
    %568 = vmatprep.subr.mxu0 0.0
    %569 = vmatpush1.xpose.msra.mxu0 0.0
    %570 = vmatprep.subr.mxu0 0.0
    %571 = vmatpush1.xpose.msra.mxu0 0.0
    %572 = vmatprep.subr.mxu0 0.0
    %573 = vmatpush1.xpose.msra.mxu0 0.0
    %574 = vmatprep.subr.mxu0 0.0
    %575 = vmatpush1.xpose.msra.mxu0 0.0
    %576 = vmatprep.subr.mxu0 0.0
    %577 = vmatpush1.xpose.msra.mxu0 0.0
    %578 = vmatprep.subr.mxu0 0.0
    %579 = vmatpush1.xpose.msra.mxu0 0.0
    %580 = vmatprep.subr.mxu0 0.0
    %581 = vmatpush1.xpose.msra.mxu0 0.0
    %582 = vmatprep.subr.mxu0 0.0
    %583 = vmatpush1.xpose.msra.mxu0 0.0
    %584 = vmatprep.subr.mxu0 0.0
    %585 = vmatpush1.xpose.msra.mxu0 0.0
    %586 = vmatprep.subr.mxu0 0.0
    %587 = vmatpush1.xpose.msra.mxu0 0.0
    %588 = vmatprep.subr.mxu0 0.0
    %589 = vmatpush1.xpose.msra.mxu0 0.0
    %590 = vmatprep.subr.mxu0 0.0
    %591 = vmatpush1.xpose.msra.mxu0 0.0
    %592 = vmatprep.subr.mxu0 0.0
    %593 = vmatpush1.xpose.msra.mxu0 0.0
    %594 = vmatprep.subr.mxu0 0.0
    %595 = vmatpush1.xpose.msra.mxu0 0.0
    %596 = vmatprep.subr.mxu0 0.0
    %597 = vmatpush1.xpose.msra.mxu0 0.0
    %v598 = vand.u32 %v46, 4294901760
    %v599 = vsub.f32 %v46, %v598
    %v600 = vand.u32 %v599, 4294901760
    %v601 = vsub.f32 %v599, %v600
    %v602 = vand.u32 %v601, 4294901760
    %603 = vmatprep.mubr.f32.mxu0 %v602
    %v604 = vand.u32 %v45, 4294901760
    %v605 = vsub.f32 %v45, %v604
    %v606 = vand.u32 %v605, 4294901760
    %v607 = vsub.f32 %v605, %v606
    %v608 = vand.u32 %v607, 4294901760
    %609 = vmatmul.mubr.f32.gmra.mrb[0].mxu0 %v608
    %v610 = vpop.f32.mrb[0].mxu0
    %v611 = vadd.f32 %v529, %v610
    %v612 = vpop.f32.mrb[0].mxu0
    %613 = vdwg.mxu0
    %v614 = vand.u32 %v46, 4294901760
    %v615 = vsub.f32 %v46, %v614
    %v616 = vand.u32 %v615, 4294901760
    %v617 = vsub.f32 %v615, %v616
    %v618 = vand.u32 %v617, 4294901760
    %619 = vmatprep.subr.mxu0 %v618
    %v620 = vand.u32 %v45, 4294901760
    %v621 = vsub.f32 %v45, %v620
    %v622 = vand.u32 %v621, 4294901760
    %v623 = vsub.f32 %v621, %v622
    %v624 = vand.u32 %v623, 4294901760
    %625 = vmatpush1.xpose.msra.mxu0 %v624
    %626 = vmatprep.subr.mxu0 0.0
    %627 = vmatpush1.xpose.msra.mxu0 0.0
    %628 = vmatprep.subr.mxu0 0.0
    %629 = vmatpush1.xpose.msra.mxu0 0.0
    %630 = vmatprep.subr.mxu0 0.0
    %631 = vmatpush1.xpose.msra.mxu0 0.0
    %632 = vmatprep.subr.mxu0 0.0
    %633 = vmatpush1.xpose.msra.mxu0 0.0
    %634 = vmatprep.subr.mxu0 0.0
    %635 = vmatpush1.xpose.msra.mxu0 0.0
    %636 = vmatprep.subr.mxu0 0.0
    %637 = vmatpush1.xpose.msra.mxu0 0.0
    %638 = vmatprep.subr.mxu0 0.0
    %639 = vmatpush1.xpose.msra.mxu0 0.0
    %640 = vmatprep.subr.mxu0 0.0
    %641 = vmatpush1.xpose.msra.mxu0 0.0
    %642 = vmatprep.subr.mxu0 0.0
    %643 = vmatpush1.xpose.msra.mxu0 0.0
    %644 = vmatprep.subr.mxu0 0.0
    %645 = vmatpush1.xpose.msra.mxu0 0.0
    %646 = vmatprep.subr.mxu0 0.0
    %647 = vmatpush1.xpose.msra.mxu0 0.0
    %648 = vmatprep.subr.mxu0 0.0
    %649 = vmatpush1.xpose.msra.mxu0 0.0
    %650 = vmatprep.subr.mxu0 0.0
    %651 = vmatpush1.xpose.msra.mxu0 0.0
    %652 = vmatprep.subr.mxu0 0.0
    %653 = vmatpush1.xpose.msra.mxu0 0.0
    %654 = vmatprep.subr.mxu0 0.0
    %655 = vmatpush1.xpose.msra.mxu0 0.0
    %656 = vmatprep.subr.mxu0 0.0
    %657 = vmatpush1.xpose.msra.mxu0 0.0
    %658 = vmatprep.subr.mxu0 0.0
    %659 = vmatpush1.xpose.msra.mxu0 0.0
    %660 = vmatprep.subr.mxu0 0.0
    %661 = vmatpush1.xpose.msra.mxu0 0.0
    %662 = vmatprep.subr.mxu0 0.0
    %663 = vmatpush1.xpose.msra.mxu0 0.0
    %664 = vmatprep.subr.mxu0 0.0
    %665 = vmatpush1.xpose.msra.mxu0 0.0
    %666 = vmatprep.subr.mxu0 0.0
    %667 = vmatpush1.xpose.msra.mxu0 0.0
    %668 = vmatprep.subr.mxu0 0.0
    %669 = vmatpush1.xpose.msra.mxu0 0.0
    %670 = vmatprep.subr.mxu0 0.0
    %671 = vmatpush1.xpose.msra.mxu0 0.0
    %672 = vmatprep.subr.mxu0 0.0
    %673 = vmatpush1.xpose.msra.mxu0 0.0
    %674 = vmatprep.subr.mxu0 0.0
    %675 = vmatpush1.xpose.msra.mxu0 0.0
    %676 = vmatprep.subr.mxu0 0.0
    %677 = vmatpush1.xpose.msra.mxu0 0.0
    %678 = vmatprep.subr.mxu0 0.0
    %679 = vmatpush1.xpose.msra.mxu0 0.0
    %680 = vmatprep.subr.mxu0 0.0
    %681 = vmatpush1.xpose.msra.mxu0 0.0
    %682 = vmatprep.subr.mxu0 0.0
    %683 = vmatpush1.xpose.msra.mxu0 0.0
    %684 = vmatprep.subr.mxu0 0.0
    %685 = vmatpush1.xpose.msra.mxu0 0.0
    %686 = vmatprep.subr.mxu0 0.0
    %687 = vmatpush1.xpose.msra.mxu0 0.0
    %v688 = vand.u32 %v46, 4294901760
    %689 = vmatprep.mubr.f32.mxu0 %v688
    %v690 = vand.u32 %v45, 4294901760
    %691 = vmatmul.mubr.f32.gmra.mrb[0].mxu0 %v690
    %v692 = vpop.f32.mrb[0].mxu0
    %v693 = vadd.f32 %v611, %v692
    %v694 = vpop.f32.mrb[0].mxu0
    %695 = vdwg.mxu0
    %v696 = vand.u32 %v46, 4294901760
    %v697 = vsub.f32 %v46, %v696
    %698 = vmatprep.subr.mxu0 %v697
    %v699 = vand.u32 %v45, 4294901760
    %v700 = vsub.f32 %v45, %v699
    %701 = vmatpush1.xpose.msra.mxu0 %v700
    %702 = vmatprep.subr.mxu0 0.0
    %703 = vmatpush1.xpose.msra.mxu0 0.0
    %704 = vmatprep.subr.mxu0 0.0
    %705 = vmatpush1.xpose.msra.mxu0 0.0
    %706 = vmatprep.subr.mxu0 0.0
    %707 = vmatpush1.xpose.msra.mxu0 0.0
    %708 = vmatprep.subr.mxu0 0.0
    %709 = vmatpush1.xpose.msra.mxu0 0.0
    %710 = vmatprep.subr.mxu0 0.0
    %711 = vmatpush1.xpose.msra.mxu0 0.0
    %712 = vmatprep.subr.mxu0 0.0
    %713 = vmatpush1.xpose.msra.mxu0 0.0
    %714 = vmatprep.subr.mxu0 0.0
    %715 = vmatpush1.xpose.msra.mxu0 0.0
    %716 = vmatprep.subr.mxu0 0.0
    %717 = vmatpush1.xpose.msra.mxu0 0.0
    %718 = vmatprep.subr.mxu0 0.0
    %719 = vmatpush1.xpose.msra.mxu0 0.0
    %720 = vmatprep.subr.mxu0 0.0
    %721 = vmatpush1.xpose.msra.mxu0 0.0
    %722 = vmatprep.subr.mxu0 0.0
    %723 = vmatpush1.xpose.msra.mxu0 0.0
    %724 = vmatprep.subr.mxu0 0.0
    %725 = vmatpush1.xpose.msra.mxu0 0.0
    %726 = vmatprep.subr.mxu0 0.0
    %727 = vmatpush1.xpose.msra.mxu0 0.0
    %728 = vmatprep.subr.mxu0 0.0
    %729 = vmatpush1.xpose.msra.mxu0 0.0
    %730 = vmatprep.subr.mxu0 0.0
    %731 = vmatpush1.xpose.msra.mxu0 0.0
    %732 = vmatprep.subr.mxu0 0.0
    %733 = vmatpush1.xpose.msra.mxu0 0.0
    %734 = vmatprep.subr.mxu0 0.0
    %735 = vmatpush1.xpose.msra.mxu0 0.0
    %736 = vmatprep.subr.mxu0 0.0
    %737 = vmatpush1.xpose.msra.mxu0 0.0
    %738 = vmatprep.subr.mxu0 0.0
    %739 = vmatpush1.xpose.msra.mxu0 0.0
    %740 = vmatprep.subr.mxu0 0.0
    %741 = vmatpush1.xpose.msra.mxu0 0.0
    %742 = vmatprep.subr.mxu0 0.0
    %743 = vmatpush1.xpose.msra.mxu0 0.0
    %744 = vmatprep.subr.mxu0 0.0
    %745 = vmatpush1.xpose.msra.mxu0 0.0
    %746 = vmatprep.subr.mxu0 0.0
    %747 = vmatpush1.xpose.msra.mxu0 0.0
    %748 = vmatprep.subr.mxu0 0.0
    %749 = vmatpush1.xpose.msra.mxu0 0.0
    %750 = vmatprep.subr.mxu0 0.0
    %751 = vmatpush1.xpose.msra.mxu0 0.0
    %752 = vmatprep.subr.mxu0 0.0
    %753 = vmatpush1.xpose.msra.mxu0 0.0
    %754 = vmatprep.subr.mxu0 0.0
    %755 = vmatpush1.xpose.msra.mxu0 0.0
    %756 = vmatprep.subr.mxu0 0.0
    %757 = vmatpush1.xpose.msra.mxu0 0.0
    %758 = vmatprep.subr.mxu0 0.0
    %759 = vmatpush1.xpose.msra.mxu0 0.0
    %760 = vmatprep.subr.mxu0 0.0
    %761 = vmatpush1.xpose.msra.mxu0 0.0
    %762 = vmatprep.subr.mxu0 0.0
    %763 = vmatpush1.xpose.msra.mxu0 0.0
    %v764 = vand.u32 %v46, 4294901760
    %v765 = vsub.f32 %v46, %v764
    %766 = vmatprep.mubr.f32.mxu0 %v765
    %v767 = vand.u32 %v45, 4294901760
    %v768 = vsub.f32 %v45, %v767
    %769 = vmatmul.mubr.f32.gmra.mrb[0].mxu0 %v768
    %v770 = vpop.f32.mrb[0].mxu0
    %v771 = vadd.f32 %v693, %v770
    %v772 = vpop.f32.mrb[0].mxu0
    %773 = vdwg.mxu0
    %v774 = vand.u32 %v46, 4294901760
    %775 = vmatprep.subr.mxu0 %v774
    %v776 = vand.u32 %v45, 4294901760
    %777 = vmatpush1.xpose.msra.mxu0 %v776
    %778 = vmatprep.subr.mxu0 0.0
    %779 = vmatpush1.xpose.msra.mxu0 0.0
    %780 = vmatprep.subr.mxu0 0.0
    %781 = vmatpush1.xpose.msra.mxu0 0.0
    %782 = vmatprep.subr.mxu0 0.0
    %783 = vmatpush1.xpose.msra.mxu0 0.0
    %784 = vmatprep.subr.mxu0 0.0
    %785 = vmatpush1.xpose.msra.mxu0 0.0
    %786 = vmatprep.subr.mxu0 0.0
    %787 = vmatpush1.xpose.msra.mxu0 0.0
    %788 = vmatprep.subr.mxu0 0.0
    %789 = vmatpush1.xpose.msra.mxu0 0.0
    %790 = vmatprep.subr.mxu0 0.0
    %791 = vmatpush1.xpose.msra.mxu0 0.0
    %792 = vmatprep.subr.mxu0 0.0
    %793 = vmatpush1.xpose.msra.mxu0 0.0
    %794 = vmatprep.subr.mxu0 0.0
    %795 = vmatpush1.xpose.msra.mxu0 0.0
    %796 = vmatprep.subr.mxu0 0.0
    %797 = vmatpush1.xpose.msra.mxu0 0.0
    %798 = vmatprep.subr.mxu0 0.0
    %799 = vmatpush1.xpose.msra.mxu0 0.0
    %800 = vmatprep.subr.mxu0 0.0
    %801 = vmatpush1.xpose.msra.mxu0 0.0
    %802 = vmatprep.subr.mxu0 0.0
    %803 = vmatpush1.xpose.msra.mxu0 0.0
    %804 = vmatprep.subr.mxu0 0.0
    %805 = vmatpush1.xpose.msra.mxu0 0.0
    %806 = vmatprep.subr.mxu0 0.0
    %807 = vmatpush1.xpose.msra.mxu0 0.0
    %808 = vmatprep.subr.mxu0 0.0
    %809 = vmatpush1.xpose.msra.mxu0 0.0
    %810 = vmatprep.subr.mxu0 0.0
    %811 = vmatpush1.xpose.msra.mxu0 0.0
    %812 = vmatprep.subr.mxu0 0.0
    %813 = vmatpush1.xpose.msra.mxu0 0.0
    %814 = vmatprep.subr.mxu0 0.0
    %815 = vmatpush1.xpose.msra.mxu0 0.0
    %816 = vmatprep.subr.mxu0 0.0
    %817 = vmatpush1.xpose.msra.mxu0 0.0
    %818 = vmatprep.subr.mxu0 0.0
    %819 = vmatpush1.xpose.msra.mxu0 0.0
    %820 = vmatprep.subr.mxu0 0.0
    %821 = vmatpush1.xpose.msra.mxu0 0.0
    %822 = vmatprep.subr.mxu0 0.0
    %823 = vmatpush1.xpose.msra.mxu0 0.0
    %824 = vmatprep.subr.mxu0 0.0
    %825 = vmatpush1.xpose.msra.mxu0 0.0
    %826 = vmatprep.subr.mxu0 0.0
    %827 = vmatpush1.xpose.msra.mxu0 0.0
    %828 = vmatprep.subr.mxu0 0.0
    %829 = vmatpush1.xpose.msra.mxu0 0.0
    %830 = vmatprep.subr.mxu0 0.0
    %831 = vmatpush1.xpose.msra.mxu0 0.0
    %832 = vmatprep.subr.mxu0 0.0
    %833 = vmatpush1.xpose.msra.mxu0 0.0
    %834 = vmatprep.subr.mxu0 0.0
    %835 = vmatpush1.xpose.msra.mxu0 0.0
    %836 = vmatprep.subr.mxu0 0.0
    %837 = vmatpush1.xpose.msra.mxu0 0.0
    %838 = vmatprep.subr.mxu0 0.0
    %839 = vmatpush1.xpose.msra.mxu0 0.0
    %v840 = vand.u32 %v46, 4294901760
    %v841 = vsub.f32 %v46, %v840
    %v842 = vand.u32 %v841, 4294901760
    %843 = vmatprep.mubr.f32.mxu0 %v842
    %v844 = vand.u32 %v45, 4294901760
    %v845 = vsub.f32 %v45, %v844
    %v846 = vand.u32 %v845, 4294901760
    %847 = vmatmul.mubr.f32.gmra.mrb[0].mxu0 %v846
    %v848 = vpop.f32.mrb[0].mxu0
    %v849 = vadd.f32 %v771, %v848
    %v850 = vpop.f32.mrb[0].mxu0
    %851 = vdwg.mxu0
    %v852 = vand.u32 %v46, 4294901760
    %v853 = vsub.f32 %v46, %v852
    %v854 = vand.u32 %v853, 4294901760
    %855 = vmatprep.subr.mxu0 %v854
    %v856 = vand.u32 %v45, 4294901760
    %v857 = vsub.f32 %v45, %v856
    %v858 = vand.u32 %v857, 4294901760
    %859 = vmatpush1.xpose.msra.mxu0 %v858
    %860 = vmatprep.subr.mxu0 0.0
    %861 = vmatpush1.xpose.msra.mxu0 0.0
    %862 = vmatprep.subr.mxu0 0.0
    %863 = vmatpush1.xpose.msra.mxu0 0.0
    %864 = vmatprep.subr.mxu0 0.0
    %865 = vmatpush1.xpose.msra.mxu0 0.0
    %866 = vmatprep.subr.mxu0 0.0
    %867 = vmatpush1.xpose.msra.mxu0 0.0
    %868 = vmatprep.subr.mxu0 0.0
    %869 = vmatpush1.xpose.msra.mxu0 0.0
    %870 = vmatprep.subr.mxu0 0.0
    %871 = vmatpush1.xpose.msra.mxu0 0.0
    %872 = vmatprep.subr.mxu0 0.0
    %873 = vmatpush1.xpose.msra.mxu0 0.0
    %874 = vmatprep.subr.mxu0 0.0
    %875 = vmatpush1.xpose.msra.mxu0 0.0
    %876 = vmatprep.subr.mxu0 0.0
    %877 = vmatpush1.xpose.msra.mxu0 0.0
    %878 = vmatprep.subr.mxu0 0.0
    %879 = vmatpush1.xpose.msra.mxu0 0.0
    %880 = vmatprep.subr.mxu0 0.0
    %881 = vmatpush1.xpose.msra.mxu0 0.0
    %882 = vmatprep.subr.mxu0 0.0
    %883 = vmatpush1.xpose.msra.mxu0 0.0
    %884 = vmatprep.subr.mxu0 0.0
    %885 = vmatpush1.xpose.msra.mxu0 0.0
    %886 = vmatprep.subr.mxu0 0.0
    %887 = vmatpush1.xpose.msra.mxu0 0.0
    %888 = vmatprep.subr.mxu0 0.0
    %889 = vmatpush1.xpose.msra.mxu0 0.0
    %890 = vmatprep.subr.mxu0 0.0
    %891 = vmatpush1.xpose.msra.mxu0 0.0
    %892 = vmatprep.subr.mxu0 0.0
    %893 = vmatpush1.xpose.msra.mxu0 0.0
    %894 = vmatprep.subr.mxu0 0.0
    %895 = vmatpush1.xpose.msra.mxu0 0.0
    %896 = vmatprep.subr.mxu0 0.0
    %897 = vmatpush1.xpose.msra.mxu0 0.0
    %898 = vmatprep.subr.mxu0 0.0
    %899 = vmatpush1.xpose.msra.mxu0 0.0
    %900 = vmatprep.subr.mxu0 0.0
    %901 = vmatpush1.xpose.msra.mxu0 0.0
    %902 = vmatprep.subr.mxu0 0.0
    %903 = vmatpush1.xpose.msra.mxu0 0.0
    %904 = vmatprep.subr.mxu0 0.0
    %905 = vmatpush1.xpose.msra.mxu0 0.0
    %906 = vmatprep.subr.mxu0 0.0
    %907 = vmatpush1.xpose.msra.mxu0 0.0
    %908 = vmatprep.subr.mxu0 0.0
    %909 = vmatpush1.xpose.msra.mxu0 0.0
    %910 = vmatprep.subr.mxu0 0.0
    %911 = vmatpush1.xpose.msra.mxu0 0.0
    %912 = vmatprep.subr.mxu0 0.0
    %913 = vmatpush1.xpose.msra.mxu0 0.0
    %914 = vmatprep.subr.mxu0 0.0
    %915 = vmatpush1.xpose.msra.mxu0 0.0
    %916 = vmatprep.subr.mxu0 0.0
    %917 = vmatpush1.xpose.msra.mxu0 0.0
    %918 = vmatprep.subr.mxu0 0.0
    %919 = vmatpush1.xpose.msra.mxu0 0.0
    %920 = vmatprep.subr.mxu0 0.0
    %921 = vmatpush1.xpose.msra.mxu0 0.0
    %v922 = vand.u32 %v46, 4294901760
    %923 = vmatprep.mubr.f32.mxu0 %v922
    %v924 = vand.u32 %v45, 4294901760
    %925 = vmatmul.mubr.f32.gmra.mrb[0].mxu0 %v924
    %v926 = vpop.f32.mrb[0].mxu0
    %v927 = vadd.f32 %v849, %v926
    %v928 = vpop.f32.mrb[0].mxu0
    %929 = vdwg.mxu0
    %v930 = vand.u32 %v46, 4294901760
    %931 = vmatprep.subr.mxu0 %v930
    %v932 = vand.u32 %v45, 4294901760
    %933 = vmatpush1.xpose.msra.mxu0 %v932
    %934 = vmatprep.subr.mxu0 0.0
    %935 = vmatpush1.xpose.msra.mxu0 0.0
    %936 = vmatprep.subr.mxu0 0.0
    %937 = vmatpush1.xpose.msra.mxu0 0.0
    %938 = vmatprep.subr.mxu0 0.0
    %939 = vmatpush1.xpose.msra.mxu0 0.0
    %940 = vmatprep.subr.mxu0 0.0
    %941 = vmatpush1.xpose.msra.mxu0 0.0
    %942 = vmatprep.subr.mxu0 0.0
    %943 = vmatpush1.xpose.msra.mxu0 0.0
    %944 = vmatprep.subr.mxu0 0.0
    %945 = vmatpush1.xpose.msra.mxu0 0.0
    %946 = vmatprep.subr.mxu0 0.0
    %947 = vmatpush1.xpose.msra.mxu0 0.0
    %948 = vmatprep.subr.mxu0 0.0
    %949 = vmatpush1.xpose.msra.mxu0 0.0
    %950 = vmatprep.subr.mxu0 0.0
    %951 = vmatpush1.xpose.msra.mxu0 0.0
    %952 = vmatprep.subr.mxu0 0.0
    %953 = vmatpush1.xpose.msra.mxu0 0.0
    %954 = vmatprep.subr.mxu0 0.0
    %955 = vmatpush1.xpose.msra.mxu0 0.0
    %956 = vmatprep.subr.mxu0 0.0
    %957 = vmatpush1.xpose.msra.mxu0 0.0
    %958 = vmatprep.subr.mxu0 0.0
    %959 = vmatpush1.xpose.msra.mxu0 0.0
    %960 = vmatprep.subr.mxu0 0.0
    %961 = vmatpush1.xpose.msra.mxu0 0.0
    %962 = vmatprep.subr.mxu0 0.0
    %963 = vmatpush1.xpose.msra.mxu0 0.0
    %964 = vmatprep.subr.mxu0 0.0
    %965 = vmatpush1.xpose.msra.mxu0 0.0
    %966 = vmatprep.subr.mxu0 0.0
    %967 = vmatpush1.xpose.msra.mxu0 0.0
    %968 = vmatprep.subr.mxu0 0.0
    %969 = vmatpush1.xpose.msra.mxu0 0.0
    %970 = vmatprep.subr.mxu0 0.0
    %971 = vmatpush1.xpose.msra.mxu0 0.0
    %972 = vmatprep.subr.mxu0 0.0
    %973 = vmatpush1.xpose.msra.mxu0 0.0
    %974 = vmatprep.subr.mxu0 0.0
    %975 = vmatpush1.xpose.msra.mxu0 0.0
    %976 = vmatprep.subr.mxu0 0.0
    %977 = vmatpush1.xpose.msra.mxu0 0.0
    %978 = vmatprep.subr.mxu0 0.0
    %979 = vmatpush1.xpose.msra.mxu0 0.0
    %980 = vmatprep.subr.mxu0 0.0
    %981 = vmatpush1.xpose.msra.mxu0 0.0
    %982 = vmatprep.subr.mxu0 0.0
    %983 = vmatpush1.xpose.msra.mxu0 0.0
    %984 = vmatprep.subr.mxu0 0.0
    %985 = vmatpush1.xpose.msra.mxu0 0.0
    %986 = vmatprep.subr.mxu0 0.0
    %987 = vmatpush1.xpose.msra.mxu0 0.0
    %988 = vmatprep.subr.mxu0 0.0
    %989 = vmatpush1.xpose.msra.mxu0 0.0
    %990 = vmatprep.subr.mxu0 0.0
    %991 = vmatpush1.xpose.msra.mxu0 0.0
    %992 = vmatprep.subr.mxu0 0.0
    %993 = vmatpush1.xpose.msra.mxu0 0.0
    %994 = vmatprep.subr.mxu0 0.0
    %995 = vmatpush1.xpose.msra.mxu0 0.0
    %v996 = vand.u32 %v46, 4294901760
    %997 = vmatprep.mubr.f32.mxu0 %v996
    %v998 = vand.u32 %v45, 4294901760
    %999 = vmatmul.mubr.f32.gmra.mrb[0].mxu0 %v998
    %v1000 = vpop.f32.mrb[0].mxu0
    %v1001 = vadd.f32 %v927, %v1000
    %v1002 = vpop.f32.mrb[0].mxu0
    %1003 = vdwg.mxu0
    %v1004 = vand.u32 %v48, 4294901760
    %1005 = vmatprep.subr.mxu0 %v1004
    %v1006 = vand.u32 %v47, 4294901760
    %1007 = vmatpush1.xpose.msra.mxu0 %v1006
    %1008 = vmatprep.subr.mxu0 0.0
    %1009 = vmatpush1.xpose.msra.mxu0 0.0
    %1010 = vmatprep.subr.mxu0 0.0
    %1011 = vmatpush1.xpose.msra.mxu0 0.0
    %1012 = vmatprep.subr.mxu0 0.0
    %1013 = vmatpush1.xpose.msra.mxu0 0.0
    %1014 = vmatprep.subr.mxu0 0.0
    %1015 = vmatpush1.xpose.msra.mxu0 0.0
    %1016 = vmatprep.subr.mxu0 0.0
    %1017 = vmatpush1.xpose.msra.mxu0 0.0
    %1018 = vmatprep.subr.mxu0 0.0
    %1019 = vmatpush1.xpose.msra.mxu0 0.0
    %1020 = vmatprep.subr.mxu0 0.0
    %1021 = vmatpush1.xpose.msra.mxu0 0.0
    %1022 = vmatprep.subr.mxu0 0.0
    %1023 = vmatpush1.xpose.msra.mxu0 0.0
    %1024 = vmatprep.subr.mxu0 0.0
    %1025 = vmatpush1.xpose.msra.mxu0 0.0
    %1026 = vmatprep.subr.mxu0 0.0
    %1027 = vmatpush1.xpose.msra.mxu0 0.0
    %1028 = vmatprep.subr.mxu0 0.0
    %1029 = vmatpush1.xpose.msra.mxu0 0.0
    %1030 = vmatprep.subr.mxu0 0.0
    %1031 = vmatpush1.xpose.msra.mxu0 0.0
    %1032 = vmatprep.subr.mxu0 0.0
    %1033 = vmatpush1.xpose.msra.mxu0 0.0
    %1034 = vmatprep.subr.mxu0 0.0
    %1035 = vmatpush1.xpose.msra.mxu0 0.0
    %1036 = vmatprep.subr.mxu0 0.0
    %1037 = vmatpush1.xpose.msra.mxu0 0.0
    %1038 = vmatprep.subr.mxu0 0.0
    %1039 = vmatpush1.xpose.msra.mxu0 0.0
    %1040 = vmatprep.subr.mxu0 0.0
    %1041 = vmatpush1.xpose.msra.mxu0 0.0
    %1042 = vmatprep.subr.mxu0 0.0
    %1043 = vmatpush1.xpose.msra.mxu0 0.0
    %1044 = vmatprep.subr.mxu0 0.0
    %1045 = vmatpush1.xpose.msra.mxu0 0.0
    %1046 = vmatprep.subr.mxu0 0.0
    %1047 = vmatpush1.xpose.msra.mxu0 0.0
    %1048 = vmatprep.subr.mxu0 0.0
    %1049 = vmatpush1.xpose.msra.mxu0 0.0
    %1050 = vmatprep.subr.mxu0 0.0
    %1051 = vmatpush1.xpose.msra.mxu0 0.0
    %1052 = vmatprep.subr.mxu0 0.0
    %1053 = vmatpush1.xpose.msra.mxu0 0.0
    %1054 = vmatprep.subr.mxu0 0.0
    %1055 = vmatpush1.xpose.msra.mxu0 0.0
    %1056 = vmatprep.subr.mxu0 0.0
    %1057 = vmatpush1.xpose.msra.mxu0 0.0
    %1058 = vmatprep.subr.mxu0 0.0
    %1059 = vmatpush1.xpose.msra.mxu0 0.0
    %1060 = vmatprep.subr.mxu0 0.0
    %1061 = vmatpush1.xpose.msra.mxu0 0.0
    %1062 = vmatprep.subr.mxu0 0.0
    %1063 = vmatpush1.xpose.msra.mxu0 0.0
    %1064 = vmatprep.subr.mxu0 0.0
    %1065 = vmatpush1.xpose.msra.mxu0 0.0
    %1066 = vmatprep.subr.mxu0 0.0
    %1067 = vmatpush1.xpose.msra.mxu0 0.0
    %1068 = vmatprep.subr.mxu0 0.0
    %1069 = vmatpush1.xpose.msra.mxu0 0.0
    %v1070 = vand.u32 %v48, 4294901760
    %v1071 = vsub.f32 %v48, %v1070
    %v1072 = vand.u32 %v1071, 4294901760
    %v1073 = vsub.f32 %v1071, %v1072
    %v1074 = vand.u32 %v1073, 4294901760
    %1075 = vmatprep.mubr.f32.mxu0 %v1074
    %v1076 = vand.u32 %v47, 4294901760
    %v1077 = vsub.f32 %v47, %v1076
    %v1078 = vand.u32 %v1077, 4294901760
    %v1079 = vsub.f32 %v1077, %v1078
    %v1080 = vand.u32 %v1079, 4294901760
    %1081 = vmatmul.mubr.f32.gmra.mrb[0].mxu0 %v1080
    %v1082 = vpop.f32.mrb[0].mxu0
    %v1083 = vadd.f32 %v1001, %v1082
    %v1084 = vpop.f32.mrb[0].mxu0
    %1085 = vdwg.mxu0
    %v1086 = vand.u32 %v48, 4294901760
    %v1087 = vsub.f32 %v48, %v1086
    %v1088 = vand.u32 %v1087, 4294901760
    %v1089 = vsub.f32 %v1087, %v1088
    %v1090 = vand.u32 %v1089, 4294901760
    %1091 = vmatprep.subr.mxu0 %v1090
    %v1092 = vand.u32 %v47, 4294901760
    %v1093 = vsub.f32 %v47, %v1092
    %v1094 = vand.u32 %v1093, 4294901760
    %v1095 = vsub.f32 %v1093, %v1094
    %v1096 = vand.u32 %v1095, 4294901760
    %1097 = vmatpush1.xpose.msra.mxu0 %v1096
    %1098 = vmatprep.subr.mxu0 0.0
    %1099 = vmatpush1.xpose.msra.mxu0 0.0
    %1100 = vmatprep.subr.mxu0 0.0
    %1101 = vmatpush1.xpose.msra.mxu0 0.0
    %1102 = vmatprep.subr.mxu0 0.0
    %1103 = vmatpush1.xpose.msra.mxu0 0.0
    %1104 = vmatprep.subr.mxu0 0.0
    %1105 = vmatpush1.xpose.msra.mxu0 0.0
    %1106 = vmatprep.subr.mxu0 0.0
    %1107 = vmatpush1.xpose.msra.mxu0 0.0
    %1108 = vmatprep.subr.mxu0 0.0
    %1109 = vmatpush1.xpose.msra.mxu0 0.0
    %1110 = vmatprep.subr.mxu0 0.0
    %1111 = vmatpush1.xpose.msra.mxu0 0.0
    %1112 = vmatprep.subr.mxu0 0.0
    %1113 = vmatpush1.xpose.msra.mxu0 0.0
    %1114 = vmatprep.subr.mxu0 0.0
    %1115 = vmatpush1.xpose.msra.mxu0 0.0
    %1116 = vmatprep.subr.mxu0 0.0
    %1117 = vmatpush1.xpose.msra.mxu0 0.0
    %1118 = vmatprep.subr.mxu0 0.0
    %1119 = vmatpush1.xpose.msra.mxu0 0.0
    %1120 = vmatprep.subr.mxu0 0.0
    %1121 = vmatpush1.xpose.msra.mxu0 0.0
    %1122 = vmatprep.subr.mxu0 0.0
    %1123 = vmatpush1.xpose.msra.mxu0 0.0
    %1124 = vmatprep.subr.mxu0 0.0
    %1125 = vmatpush1.xpose.msra.mxu0 0.0
    %1126 = vmatprep.subr.mxu0 0.0
    %1127 = vmatpush1.xpose.msra.mxu0 0.0
    %1128 = vmatprep.subr.mxu0 0.0
    %1129 = vmatpush1.xpose.msra.mxu0 0.0
    %1130 = vmatprep.subr.mxu0 0.0
    %1131 = vmatpush1.xpose.msra.mxu0 0.0
    %1132 = vmatprep.subr.mxu0 0.0
    %1133 = vmatpush1.xpose.msra.mxu0 0.0
    %1134 = vmatprep.subr.mxu0 0.0
    %1135 = vmatpush1.xpose.msra.mxu0 0.0
    %1136 = vmatprep.subr.mxu0 0.0
    %1137 = vmatpush1.xpose.msra.mxu0 0.0
    %1138 = vmatprep.subr.mxu0 0.0
    %1139 = vmatpush1.xpose.msra.mxu0 0.0
    %1140 = vmatprep.subr.mxu0 0.0
    %1141 = vmatpush1.xpose.msra.mxu0 0.0
    %1142 = vmatprep.subr.mxu0 0.0
    %1143 = vmatpush1.xpose.msra.mxu0 0.0
    %1144 = vmatprep.subr.mxu0 0.0
    %1145 = vmatpush1.xpose.msra.mxu0 0.0
    %1146 = vmatprep.subr.mxu0 0.0
    %1147 = vmatpush1.xpose.msra.mxu0 0.0
    %1148 = vmatprep.subr.mxu0 0.0
    %1149 = vmatpush1.xpose.msra.mxu0 0.0
    %1150 = vmatprep.subr.mxu0 0.0
    %1151 = vmatpush1.xpose.msra.mxu0 0.0
    %1152 = vmatprep.subr.mxu0 0.0
    %1153 = vmatpush1.xpose.msra.mxu0 0.0
    %1154 = vmatprep.subr.mxu0 0.0
    %1155 = vmatpush1.xpose.msra.mxu0 0.0
    %1156 = vmatprep.subr.mxu0 0.0
    %1157 = vmatpush1.xpose.msra.mxu0 0.0
    %1158 = vmatprep.subr.mxu0 0.0
    %1159 = vmatpush1.xpose.msra.mxu0 0.0
    %v1160 = vand.u32 %v48, 4294901760
    %1161 = vmatprep.mubr.f32.mxu0 %v1160
    %v1162 = vand.u32 %v47, 4294901760
    %1163 = vmatmul.mubr.f32.gmra.mrb[0].mxu0 %v1162
    %v1164 = vpop.f32.mrb[0].mxu0
    %v1165 = vadd.f32 %v1083, %v1164
    %v1166 = vpop.f32.mrb[0].mxu0
    %1167 = vdwg.mxu0
    %v1168 = vand.u32 %v48, 4294901760
    %v1169 = vsub.f32 %v48, %v1168
    %1170 = vmatprep.subr.mxu0 %v1169
    %v1171 = vand.u32 %v47, 4294901760
    %v1172 = vsub.f32 %v47, %v1171
    %1173 = vmatpush1.xpose.msra.mxu0 %v1172
    %1174 = vmatprep.subr.mxu0 0.0
    %1175 = vmatpush1.xpose.msra.mxu0 0.0
    %1176 = vmatprep.subr.mxu0 0.0
    %1177 = vmatpush1.xpose.msra.mxu0 0.0
    %1178 = vmatprep.subr.mxu0 0.0
    %1179 = vmatpush1.xpose.msra.mxu0 0.0
    %1180 = vmatprep.subr.mxu0 0.0
    %1181 = vmatpush1.xpose.msra.mxu0 0.0
    %1182 = vmatprep.subr.mxu0 0.0
    %1183 = vmatpush1.xpose.msra.mxu0 0.0
    %1184 = vmatprep.subr.mxu0 0.0
    %1185 = vmatpush1.xpose.msra.mxu0 0.0
    %1186 = vmatprep.subr.mxu0 0.0
    %1187 = vmatpush1.xpose.msra.mxu0 0.0
    %1188 = vmatprep.subr.mxu0 0.0
    %1189 = vmatpush1.xpose.msra.mxu0 0.0
    %1190 = vmatprep.subr.mxu0 0.0
    %1191 = vmatpush1.xpose.msra.mxu0 0.0
    %1192 = vmatprep.subr.mxu0 0.0
    %1193 = vmatpush1.xpose.msra.mxu0 0.0
    %1194 = vmatprep.subr.mxu0 0.0
    %1195 = vmatpush1.xpose.msra.mxu0 0.0
    %1196 = vmatprep.subr.mxu0 0.0
    %1197 = vmatpush1.xpose.msra.mxu0 0.0
    %1198 = vmatprep.subr.mxu0 0.0
    %1199 = vmatpush1.xpose.msra.mxu0 0.0
    %1200 = vmatprep.subr.mxu0 0.0
    %1201 = vmatpush1.xpose.msra.mxu0 0.0
    %1202 = vmatprep.subr.mxu0 0.0
    %1203 = vmatpush1.xpose.msra.mxu0 0.0
    %1204 = vmatprep.subr.mxu0 0.0
    %1205 = vmatpush1.xpose.msra.mxu0 0.0
    %1206 = vmatprep.subr.mxu0 0.0
    %1207 = vmatpush1.xpose.msra.mxu0 0.0
    %1208 = vmatprep.subr.mxu0 0.0
    %1209 = vmatpush1.xpose.msra.mxu0 0.0
    %1210 = vmatprep.subr.mxu0 0.0
    %1211 = vmatpush1.xpose.msra.mxu0 0.0
    %1212 = vmatprep.subr.mxu0 0.0
    %1213 = vmatpush1.xpose.msra.mxu0 0.0
    %1214 = vmatprep.subr.mxu0 0.0
    %1215 = vmatpush1.xpose.msra.mxu0 0.0
    %1216 = vmatprep.subr.mxu0 0.0
    %1217 = vmatpush1.xpose.msra.mxu0 0.0
    %1218 = vmatprep.subr.mxu0 0.0
    %1219 = vmatpush1.xpose.msra.mxu0 0.0
    %1220 = vmatprep.subr.mxu0 0.0
    %1221 = vmatpush1.xpose.msra.mxu0 0.0
    %1222 = vmatprep.subr.mxu0 0.0
    %1223 = vmatpush1.xpose.msra.mxu0 0.0
    %1224 = vmatprep.subr.mxu0 0.0
    %1225 = vmatpush1.xpose.msra.mxu0 0.0
    %1226 = vmatprep.subr.mxu0 0.0
    %1227 = vmatpush1.xpose.msra.mxu0 0.0
    %1228 = vmatprep.subr.mxu0 0.0
    %1229 = vmatpush1.xpose.msra.mxu0 0.0
    %1230 = vmatprep.subr.mxu0 0.0
    %1231 = vmatpush1.xpose.msra.mxu0 0.0
    %1232 = vmatprep.subr.mxu0 0.0
    %1233 = vmatpush1.xpose.msra.mxu0 0.0
    %1234 = vmatprep.subr.mxu0 0.0
    %1235 = vmatpush1.xpose.msra.mxu0 0.0
    %v1236 = vand.u32 %v48, 4294901760
    %v1237 = vsub.f32 %v48, %v1236
    %1238 = vmatprep.mubr.f32.mxu0 %v1237
    %v1239 = vand.u32 %v47, 4294901760
    %v1240 = vsub.f32 %v47, %v1239
    %1241 = vmatmul.mubr.f32.gmra.mrb[0].mxu0 %v1240
    %v1242 = vpop.f32.mrb[0].mxu0
    %v1243 = vadd.f32 %v1165, %v1242
    %v1244 = vpop.f32.mrb[0].mxu0
    %1245 = vdwg.mxu0
    %v1246 = vand.u32 %v48, 4294901760
    %1247 = vmatprep.subr.mxu0 %v1246
    %v1248 = vand.u32 %v47, 4294901760
    %1249 = vmatpush1.xpose.msra.mxu0 %v1248
    %1250 = vmatprep.subr.mxu0 0.0
    %1251 = vmatpush1.xpose.msra.mxu0 0.0
    %1252 = vmatprep.subr.mxu0 0.0
    %1253 = vmatpush1.xpose.msra.mxu0 0.0
    %1254 = vmatprep.subr.mxu0 0.0
    %1255 = vmatpush1.xpose.msra.mxu0 0.0
    %1256 = vmatprep.subr.mxu0 0.0
    %1257 = vmatpush1.xpose.msra.mxu0 0.0
    %1258 = vmatprep.subr.mxu0 0.0
    %1259 = vmatpush1.xpose.msra.mxu0 0.0
    %1260 = vmatprep.subr.mxu0 0.0
    %1261 = vmatpush1.xpose.msra.mxu0 0.0
    %1262 = vmatprep.subr.mxu0 0.0
    %1263 = vmatpush1.xpose.msra.mxu0 0.0
    %1264 = vmatprep.subr.mxu0 0.0
    %1265 = vmatpush1.xpose.msra.mxu0 0.0
    %1266 = vmatprep.subr.mxu0 0.0
    %1267 = vmatpush1.xpose.msra.mxu0 0.0
    %1268 = vmatprep.subr.mxu0 0.0
    %1269 = vmatpush1.xpose.msra.mxu0 0.0
    %1270 = vmatprep.subr.mxu0 0.0
    %1271 = vmatpush1.xpose.msra.mxu0 0.0
    %1272 = vmatprep.subr.mxu0 0.0
    %1273 = vmatpush1.xpose.msra.mxu0 0.0
    %1274 = vmatprep.subr.mxu0 0.0
    %1275 = vmatpush1.xpose.msra.mxu0 0.0
    %1276 = vmatprep.subr.mxu0 0.0
    %1277 = vmatpush1.xpose.msra.mxu0 0.0
    %1278 = vmatprep.subr.mxu0 0.0
    %1279 = vmatpush1.xpose.msra.mxu0 0.0
    %1280 = vmatprep.subr.mxu0 0.0
    %1281 = vmatpush1.xpose.msra.mxu0 0.0
    %1282 = vmatprep.subr.mxu0 0.0
    %1283 = vmatpush1.xpose.msra.mxu0 0.0
    %1284 = vmatprep.subr.mxu0 0.0
    %1285 = vmatpush1.xpose.msra.mxu0 0.0
    %1286 = vmatprep.subr.mxu0 0.0
    %1287 = vmatpush1.xpose.msra.mxu0 0.0
    %1288 = vmatprep.subr.mxu0 0.0
    %1289 = vmatpush1.xpose.msra.mxu0 0.0
    %1290 = vmatprep.subr.mxu0 0.0
    %1291 = vmatpush1.xpose.msra.mxu0 0.0
    %1292 = vmatprep.subr.mxu0 0.0
    %1293 = vmatpush1.xpose.msra.mxu0 0.0
    %1294 = vmatprep.subr.mxu0 0.0
    %1295 = vmatpush1.xpose.msra.mxu0 0.0
    %1296 = vmatprep.subr.mxu0 0.0
    %1297 = vmatpush1.xpose.msra.mxu0 0.0
    %1298 = vmatprep.subr.mxu0 0.0
    %1299 = vmatpush1.xpose.msra.mxu0 0.0
    %1300 = vmatprep.subr.mxu0 0.0
    %1301 = vmatpush1.xpose.msra.mxu0 0.0
    %1302 = vmatprep.subr.mxu0 0.0
    %1303 = vmatpush1.xpose.msra.mxu0 0.0
    %1304 = vmatprep.subr.mxu0 0.0
    %1305 = vmatpush1.xpose.msra.mxu0 0.0
    %1306 = vmatprep.subr.mxu0 0.0
    %1307 = vmatpush1.xpose.msra.mxu0 0.0
    %1308 = vmatprep.subr.mxu0 0.0
    %1309 = vmatpush1.xpose.msra.mxu0 0.0
    %1310 = vmatprep.subr.mxu0 0.0
    %1311 = vmatpush1.xpose.msra.mxu0 0.0
    %v1312 = vand.u32 %v48, 4294901760
    %v1313 = vsub.f32 %v48, %v1312
    %v1314 = vand.u32 %v1313, 4294901760
    %1315 = vmatprep.mubr.f32.mxu0 %v1314
    %v1316 = vand.u32 %v47, 4294901760
    %v1317 = vsub.f32 %v47, %v1316
    %v1318 = vand.u32 %v1317, 4294901760
    %1319 = vmatmul.mubr.f32.gmra.mrb[0].mxu0 %v1318
    %v1320 = vpop.f32.mrb[0].mxu0
    %v1321 = vadd.f32 %v1243, %v1320
    %v1322 = vpop.f32.mrb[0].mxu0
    %1323 = vdwg.mxu0
    %v1324 = vand.u32 %v48, 4294901760
    %v1325 = vsub.f32 %v48, %v1324
    %v1326 = vand.u32 %v1325, 4294901760
    %1327 = vmatprep.subr.mxu0 %v1326
    %v1328 = vand.u32 %v47, 4294901760
    %v1329 = vsub.f32 %v47, %v1328
    %v1330 = vand.u32 %v1329, 4294901760
    %1331 = vmatpush1.xpose.msra.mxu0 %v1330
    %1332 = vmatprep.subr.mxu0 0.0
    %1333 = vmatpush1.xpose.msra.mxu0 0.0
    %1334 = vmatprep.subr.mxu0 0.0
    %1335 = vmatpush1.xpose.msra.mxu0 0.0
    %1336 = vmatprep.subr.mxu0 0.0
    %1337 = vmatpush1.xpose.msra.mxu0 0.0
    %1338 = vmatprep.subr.mxu0 0.0
    %1339 = vmatpush1.xpose.msra.mxu0 0.0
    %1340 = vmatprep.subr.mxu0 0.0
    %1341 = vmatpush1.xpose.msra.mxu0 0.0
    %1342 = vmatprep.subr.mxu0 0.0
    %1343 = vmatpush1.xpose.msra.mxu0 0.0
    %1344 = vmatprep.subr.mxu0 0.0
    %1345 = vmatpush1.xpose.msra.mxu0 0.0
    %1346 = vmatprep.subr.mxu0 0.0
    %1347 = vmatpush1.xpose.msra.mxu0 0.0
    %1348 = vmatprep.subr.mxu0 0.0
    %1349 = vmatpush1.xpose.msra.mxu0 0.0
    %1350 = vmatprep.subr.mxu0 0.0
    %1351 = vmatpush1.xpose.msra.mxu0 0.0
    %1352 = vmatprep.subr.mxu0 0.0
    %1353 = vmatpush1.xpose.msra.mxu0 0.0
    %1354 = vmatprep.subr.mxu0 0.0
    %1355 = vmatpush1.xpose.msra.mxu0 0.0
    %1356 = vmatprep.subr.mxu0 0.0
    %1357 = vmatpush1.xpose.msra.mxu0 0.0
    %1358 = vmatprep.subr.mxu0 0.0
    %1359 = vmatpush1.xpose.msra.mxu0 0.0
    %1360 = vmatprep.subr.mxu0 0.0
    %1361 = vmatpush1.xpose.msra.mxu0 0.0
    %1362 = vmatprep.subr.mxu0 0.0
    %1363 = vmatpush1.xpose.msra.mxu0 0.0
    %1364 = vmatprep.subr.mxu0 0.0
    %1365 = vmatpush1.xpose.msra.mxu0 0.0
    %1366 = vmatprep.subr.mxu0 0.0
    %1367 = vmatpush1.xpose.msra.mxu0 0.0
    %1368 = vmatprep.subr.mxu0 0.0
    %1369 = vmatpush1.xpose.msra.mxu0 0.0
    %1370 = vmatprep.subr.mxu0 0.0
    %1371 = vmatpush1.xpose.msra.mxu0 0.0
    %1372 = vmatprep.subr.mxu0 0.0
    %1373 = vmatpush1.xpose.msra.mxu0 0.0
    %1374 = vmatprep.subr.mxu0 0.0
    %1375 = vmatpush1.xpose.msra.mxu0 0.0
    %1376 = vmatprep.subr.mxu0 0.0
    %1377 = vmatpush1.xpose.msra.mxu0 0.0
    %1378 = vmatprep.subr.mxu0 0.0
    %1379 = vmatpush1.xpose.msra.mxu0 0.0
    %1380 = vmatprep.subr.mxu0 0.0
    %1381 = vmatpush1.xpose.msra.mxu0 0.0
    %1382 = vmatprep.subr.mxu0 0.0
    %1383 = vmatpush1.xpose.msra.mxu0 0.0
    %1384 = vmatprep.subr.mxu0 0.0
    %1385 = vmatpush1.xpose.msra.mxu0 0.0
    %1386 = vmatprep.subr.mxu0 0.0
    %1387 = vmatpush1.xpose.msra.mxu0 0.0
    %1388 = vmatprep.subr.mxu0 0.0
    %1389 = vmatpush1.xpose.msra.mxu0 0.0
    %1390 = vmatprep.subr.mxu0 0.0
    %1391 = vmatpush1.xpose.msra.mxu0 0.0
    %1392 = vmatprep.subr.mxu0 0.0
    %1393 = vmatpush1.xpose.msra.mxu0 0.0
    %v1394 = vand.u32 %v48, 4294901760
    %1395 = vmatprep.mubr.f32.mxu0 %v1394
    %v1396 = vand.u32 %v47, 4294901760
    %1397 = vmatmul.mubr.f32.gmra.mrb[0].mxu0 %v1396
    %v1398 = vpop.f32.mrb[0].mxu0
    %v1399 = vadd.f32 %v1321, %v1398
    %v1400 = vpop.f32.mrb[0].mxu0
    %1401 = vdwg.mxu0
    %v1402 = vand.u32 %v48, 4294901760
    %1403 = vmatprep.subr.mxu0 %v1402
    %v1404 = vand.u32 %v47, 4294901760
    %1405 = vmatpush1.xpose.msra.mxu0 %v1404
    %1406 = vmatprep.subr.mxu0 0.0
    %1407 = vmatpush1.xpose.msra.mxu0 0.0
    %1408 = vmatprep.subr.mxu0 0.0
    %1409 = vmatpush1.xpose.msra.mxu0 0.0
    %1410 = vmatprep.subr.mxu0 0.0
    %1411 = vmatpush1.xpose.msra.mxu0 0.0
    %1412 = vmatprep.subr.mxu0 0.0
    %1413 = vmatpush1.xpose.msra.mxu0 0.0
    %1414 = vmatprep.subr.mxu0 0.0
    %1415 = vmatpush1.xpose.msra.mxu0 0.0
    %1416 = vmatprep.subr.mxu0 0.0
    %1417 = vmatpush1.xpose.msra.mxu0 0.0
    %1418 = vmatprep.subr.mxu0 0.0
    %1419 = vmatpush1.xpose.msra.mxu0 0.0
    %1420 = vmatprep.subr.mxu0 0.0
    %1421 = vmatpush1.xpose.msra.mxu0 0.0
    %1422 = vmatprep.subr.mxu0 0.0
    %1423 = vmatpush1.xpose.msra.mxu0 0.0
    %1424 = vmatprep.subr.mxu0 0.0
    %1425 = vmatpush1.xpose.msra.mxu0 0.0
    %1426 = vmatprep.subr.mxu0 0.0
    %1427 = vmatpush1.xpose.msra.mxu0 0.0
    %1428 = vmatprep.subr.mxu0 0.0
    %1429 = vmatpush1.xpose.msra.mxu0 0.0
    %1430 = vmatprep.subr.mxu0 0.0
    %1431 = vmatpush1.xpose.msra.mxu0 0.0
    %1432 = vmatprep.subr.mxu0 0.0
    %1433 = vmatpush1.xpose.msra.mxu0 0.0
    %1434 = vmatprep.subr.mxu0 0.0
    %1435 = vmatpush1.xpose.msra.mxu0 0.0
    %1436 = vmatprep.subr.mxu0 0.0
    %1437 = vmatpush1.xpose.msra.mxu0 0.0
    %1438 = vmatprep.subr.mxu0 0.0
    %1439 = vmatpush1.xpose.msra.mxu0 0.0
    %1440 = vmatprep.subr.mxu0 0.0
    %1441 = vmatpush1.xpose.msra.mxu0 0.0
    %1442 = vmatprep.subr.mxu0 0.0
    %1443 = vmatpush1.xpose.msra.mxu0 0.0
    %1444 = vmatprep.subr.mxu0 0.0
    %1445 = vmatpush1.xpose.msra.mxu0 0.0
    %1446 = vmatprep.subr.mxu0 0.0
    %1447 = vmatpush1.xpose.msra.mxu0 0.0
    %1448 = vmatprep.subr.mxu0 0.0
    %1449 = vmatpush1.xpose.msra.mxu0 0.0
    %1450 = vmatprep.subr.mxu0 0.0
    %1451 = vmatpush1.xpose.msra.mxu0 0.0
    %1452 = vmatprep.subr.mxu0 0.0
    %1453 = vmatpush1.xpose.msra.mxu0 0.0
    %1454 = vmatprep.subr.mxu0 0.0
    %1455 = vmatpush1.xpose.msra.mxu0 0.0
    %1456 = vmatprep.subr.mxu0 0.0
    %1457 = vmatpush1.xpose.msra.mxu0 0.0
    %1458 = vmatprep.subr.mxu0 0.0
    %1459 = vmatpush1.xpose.msra.mxu0 0.0
    %1460 = vmatprep.subr.mxu0 0.0
    %1461 = vmatpush1.xpose.msra.mxu0 0.0
    %1462 = vmatprep.subr.mxu0 0.0
    %1463 = vmatpush1.xpose.msra.mxu0 0.0
    %1464 = vmatprep.subr.mxu0 0.0
    %1465 = vmatpush1.xpose.msra.mxu0 0.0
    %1466 = vmatprep.subr.mxu0 0.0
    %1467 = vmatpush1.xpose.msra.mxu0 0.0
    %v1468 = vand.u32 %v48, 4294901760
    %1469 = vmatprep.mubr.f32.mxu0 %v1468
    %v1470 = vand.u32 %v47, 4294901760
    %1471 = vmatmul.mubr.f32.gmra.mrb[0].mxu0 %v1470
    %v1472 = vpop.f32.mrb[0].mxu0
    %v1473 = vadd.f32 %v1399, %v1472
    %v1474 = vpop.f32.mrb[0].mxu0
    %1475 = vdwg.mxu0
    %v1476 = vand.u32 %v50, 4294901760
    %1477 = vmatprep.subr.mxu0 %v1476
    %v1478 = vand.u32 %v49, 4294901760
    %1479 = vmatpush1.xpose.msra.mxu0 %v1478
    %1480 = vmatprep.subr.mxu0 0.0
    %1481 = vmatpush1.xpose.msra.mxu0 0.0
    %1482 = vmatprep.subr.mxu0 0.0
    %1483 = vmatpush1.xpose.msra.mxu0 0.0
    %1484 = vmatprep.subr.mxu0 0.0
    %1485 = vmatpush1.xpose.msra.mxu0 0.0
    %1486 = vmatprep.subr.mxu0 0.0
    %1487 = vmatpush1.xpose.msra.mxu0 0.0
    %1488 = vmatprep.subr.mxu0 0.0
    %1489 = vmatpush1.xpose.msra.mxu0 0.0
    %1490 = vmatprep.subr.mxu0 0.0
    %1491 = vmatpush1.xpose.msra.mxu0 0.0
    %1492 = vmatprep.subr.mxu0 0.0
    %1493 = vmatpush1.xpose.msra.mxu0 0.0
    %1494 = vmatprep.subr.mxu0 0.0
    %1495 = vmatpush1.xpose.msra.mxu0 0.0
    %1496 = vmatprep.subr.mxu0 0.0
    %1497 = vmatpush1.xpose.msra.mxu0 0.0
    %1498 = vmatprep.subr.mxu0 0.0
    %1499 = vmatpush1.xpose.msra.mxu0 0.0
    %1500 = vmatprep.subr.mxu0 0.0
    %1501 = vmatpush1.xpose.msra.mxu0 0.0
    %1502 = vmatprep.subr.mxu0 0.0
    %1503 = vmatpush1.xpose.msra.mxu0 0.0
    %1504 = vmatprep.subr.mxu0 0.0
    %1505 = vmatpush1.xpose.msra.mxu0 0.0
    %1506 = vmatprep.subr.mxu0 0.0
    %1507 = vmatpush1.xpose.msra.mxu0 0.0
    %1508 = vmatprep.subr.mxu0 0.0
    %1509 = vmatpush1.xpose.msra.mxu0 0.0
    %1510 = vmatprep.subr.mxu0 0.0
    %1511 = vmatpush1.xpose.msra.mxu0 0.0
    %1512 = vmatprep.subr.mxu0 0.0
    %1513 = vmatpush1.xpose.msra.mxu0 0.0
    %1514 = vmatprep.subr.mxu0 0.0
    %1515 = vmatpush1.xpose.msra.mxu0 0.0
    %1516 = vmatprep.subr.mxu0 0.0
    %1517 = vmatpush1.xpose.msra.mxu0 0.0
    %1518 = vmatprep.subr.mxu0 0.0
    %1519 = vmatpush1.xpose.msra.mxu0 0.0
    %1520 = vmatprep.subr.mxu0 0.0
    %1521 = vmatpush1.xpose.msra.mxu0 0.0
    %1522 = vmatprep.subr.mxu0 0.0
    %1523 = vmatpush1.xpose.msra.mxu0 0.0
    %1524 = vmatprep.subr.mxu0 0.0
    %1525 = vmatpush1.xpose.msra.mxu0 0.0
    %1526 = vmatprep.subr.mxu0 0.0
    %1527 = vmatpush1.xpose.msra.mxu0 0.0
    %1528 = vmatprep.subr.mxu0 0.0
    %1529 = vmatpush1.xpose.msra.mxu0 0.0
    %1530 = vmatprep.subr.mxu0 0.0
    %1531 = vmatpush1.xpose.msra.mxu0 0.0
    %1532 = vmatprep.subr.mxu0 0.0
    %1533 = vmatpush1.xpose.msra.mxu0 0.0
    %1534 = vmatprep.subr.mxu0 0.0
    %1535 = vmatpush1.xpose.msra.mxu0 0.0
    %1536 = vmatprep.subr.mxu0 0.0
    %1537 = vmatpush1.xpose.msra.mxu0 0.0
    %1538 = vmatprep.subr.mxu0 0.0
    %1539 = vmatpush1.xpose.msra.mxu0 0.0
    %1540 = vmatprep.subr.mxu0 0.0
    %1541 = vmatpush1.xpose.msra.mxu0 0.0
    %v1542 = vand.u32 %v50, 4294901760
    %v1543 = vsub.f32 %v50, %v1542
    %v1544 = vand.u32 %v1543, 4294901760
    %v1545 = vsub.f32 %v1543, %v1544
    %v1546 = vand.u32 %v1545, 4294901760
    %1547 = vmatprep.mubr.f32.mxu0 %v1546
    %v1548 = vand.u32 %v49, 4294901760
    %v1549 = vsub.f32 %v49, %v1548
    %v1550 = vand.u32 %v1549, 4294901760
    %v1551 = vsub.f32 %v1549, %v1550
    %v1552 = vand.u32 %v1551, 4294901760
    %1553 = vmatmul.mubr.f32.gmra.mrb[0].mxu0 %v1552
    %v1554 = vpop.f32.mrb[0].mxu0
    %v1555 = vadd.f32 %v1473, %v1554
    %v1556 = vpop.f32.mrb[0].mxu0
    %1557 = vdwg.mxu0
    %v1558 = vand.u32 %v50, 4294901760
    %v1559 = vsub.f32 %v50, %v1558
    %v1560 = vand.u32 %v1559, 4294901760
    %v1561 = vsub.f32 %v1559, %v1560
    %v1562 = vand.u32 %v1561, 4294901760
    %1563 = vmatprep.subr.mxu0 %v1562
    %v1564 = vand.u32 %v49, 4294901760
    %v1565 = vsub.f32 %v49, %v1564
    %v1566 = vand.u32 %v1565, 4294901760
    %v1567 = vsub.f32 %v1565, %v1566
    %v1568 = vand.u32 %v1567, 4294901760
    %1569 = vmatpush1.xpose.msra.mxu0 %v1568
    %1570 = vmatprep.subr.mxu0 0.0
    %1571 = vmatpush1.xpose.msra.mxu0 0.0
    %1572 = vmatprep.subr.mxu0 0.0
    %1573 = vmatpush1.xpose.msra.mxu0 0.0
    %1574 = vmatprep.subr.mxu0 0.0
    %1575 = vmatpush1.xpose.msra.mxu0 0.0
    %1576 = vmatprep.subr.mxu0 0.0
    %1577 = vmatpush1.xpose.msra.mxu0 0.0
    %1578 = vmatprep.subr.mxu0 0.0
    %1579 = vmatpush1.xpose.msra.mxu0 0.0
    %1580 = vmatprep.subr.mxu0 0.0
    %1581 = vmatpush1.xpose.msra.mxu0 0.0
    %1582 = vmatprep.subr.mxu0 0.0
    %1583 = vmatpush1.xpose.msra.mxu0 0.0
    %1584 = vmatprep.subr.mxu0 0.0
    %1585 = vmatpush1.xpose.msra.mxu0 0.0
    %1586 = vmatprep.subr.mxu0 0.0
    %1587 = vmatpush1.xpose.msra.mxu0 0.0
    %1588 = vmatprep.subr.mxu0 0.0
    %1589 = vmatpush1.xpose.msra.mxu0 0.0
    %1590 = vmatprep.subr.mxu0 0.0
    %1591 = vmatpush1.xpose.msra.mxu0 0.0
    %1592 = vmatprep.subr.mxu0 0.0
    %1593 = vmatpush1.xpose.msra.mxu0 0.0
    %1594 = vmatprep.subr.mxu0 0.0
    %1595 = vmatpush1.xpose.msra.mxu0 0.0
    %1596 = vmatprep.subr.mxu0 0.0
    %1597 = vmatpush1.xpose.msra.mxu0 0.0
    %1598 = vmatprep.subr.mxu0 0.0
    %1599 = vmatpush1.xpose.msra.mxu0 0.0
    %1600 = vmatprep.subr.mxu0 0.0
    %1601 = vmatpush1.xpose.msra.mxu0 0.0
    %1602 = vmatprep.subr.mxu0 0.0
    %1603 = vmatpush1.xpose.msra.mxu0 0.0
    %1604 = vmatprep.subr.mxu0 0.0
    %1605 = vmatpush1.xpose.msra.mxu0 0.0
    %1606 = vmatprep.subr.mxu0 0.0
    %1607 = vmatpush1.xpose.msra.mxu0 0.0
    %1608 = vmatprep.subr.mxu0 0.0
    %1609 = vmatpush1.xpose.msra.mxu0 0.0
    %1610 = vmatprep.subr.mxu0 0.0
    %1611 = vmatpush1.xpose.msra.mxu0 0.0
    %1612 = vmatprep.subr.mxu0 0.0
    %1613 = vmatpush1.xpose.msra.mxu0 0.0
    %1614 = vmatprep.subr.mxu0 0.0
    %1615 = vmatpush1.xpose.msra.mxu0 0.0
    %1616 = vmatprep.subr.mxu0 0.0
    %1617 = vmatpush1.xpose.msra.mxu0 0.0
    %1618 = vmatprep.subr.mxu0 0.0
    %1619 = vmatpush1.xpose.msra.mxu0 0.0
    %1620 = vmatprep.subr.mxu0 0.0
    %1621 = vmatpush1.xpose.msra.mxu0 0.0
    %1622 = vmatprep.subr.mxu0 0.0
    %1623 = vmatpush1.xpose.msra.mxu0 0.0
    %1624 = vmatprep.subr.mxu0 0.0
    %1625 = vmatpush1.xpose.msra.mxu0 0.0
    %1626 = vmatprep.subr.mxu0 0.0
    %1627 = vmatpush1.xpose.msra.mxu0 0.0
    %1628 = vmatprep.subr.mxu0 0.0
    %1629 = vmatpush1.xpose.msra.mxu0 0.0
    %1630 = vmatprep.subr.mxu0 0.0
    %1631 = vmatpush1.xpose.msra.mxu0 0.0
    %v1632 = vand.u32 %v50, 4294901760
    %1633 = vmatprep.mubr.f32.mxu0 %v1632
    %v1634 = vand.u32 %v49, 4294901760
    %1635 = vmatmul.mubr.f32.gmra.mrb[0].mxu0 %v1634
    %v1636 = vpop.f32.mrb[0].mxu0
    %v1637 = vadd.f32 %v1555, %v1636
    %v1638 = vpop.f32.mrb[0].mxu0
    %1639 = vdwg.mxu0
    %v1640 = vand.u32 %v50, 4294901760
    %v1641 = vsub.f32 %v50, %v1640
    %1642 = vmatprep.subr.mxu0 %v1641
    %v1643 = vand.u32 %v49, 4294901760
    %v1644 = vsub.f32 %v49, %v1643
    %1645 = vmatpush1.xpose.msra.mxu0 %v1644
    %1646 = vmatprep.subr.mxu0 0.0
    %1647 = vmatpush1.xpose.msra.mxu0 0.0
    %1648 = vmatprep.subr.mxu0 0.0
    %1649 = vmatpush1.xpose.msra.mxu0 0.0
    %1650 = vmatprep.subr.mxu0 0.0
    %1651 = vmatpush1.xpose.msra.mxu0 0.0
    %1652 = vmatprep.subr.mxu0 0.0
    %1653 = vmatpush1.xpose.msra.mxu0 0.0
    %1654 = vmatprep.subr.mxu0 0.0
    %1655 = vmatpush1.xpose.msra.mxu0 0.0
    %1656 = vmatprep.subr.mxu0 0.0
    %1657 = vmatpush1.xpose.msra.mxu0 0.0
    %1658 = vmatprep.subr.mxu0 0.0
    %1659 = vmatpush1.xpose.msra.mxu0 0.0
    %1660 = vmatprep.subr.mxu0 0.0
    %1661 = vmatpush1.xpose.msra.mxu0 0.0
    %1662 = vmatprep.subr.mxu0 0.0
    %1663 = vmatpush1.xpose.msra.mxu0 0.0
    %1664 = vmatprep.subr.mxu0 0.0
    %1665 = vmatpush1.xpose.msra.mxu0 0.0
    %1666 = vmatprep.subr.mxu0 0.0
    %1667 = vmatpush1.xpose.msra.mxu0 0.0
    %1668 = vmatprep.subr.mxu0 0.0
    %1669 = vmatpush1.xpose.msra.mxu0 0.0
    %1670 = vmatprep.subr.mxu0 0.0
    %1671 = vmatpush1.xpose.msra.mxu0 0.0
    %1672 = vmatprep.subr.mxu0 0.0
    %1673 = vmatpush1.xpose.msra.mxu0 0.0
    %1674 = vmatprep.subr.mxu0 0.0
    %1675 = vmatpush1.xpose.msra.mxu0 0.0
    %1676 = vmatprep.subr.mxu0 0.0
    %1677 = vmatpush1.xpose.msra.mxu0 0.0
    %1678 = vmatprep.subr.mxu0 0.0
    %1679 = vmatpush1.xpose.msra.mxu0 0.0
    %1680 = vmatprep.subr.mxu0 0.0
    %1681 = vmatpush1.xpose.msra.mxu0 0.0
    %1682 = vmatprep.subr.mxu0 0.0
    %1683 = vmatpush1.xpose.msra.mxu0 0.0
    %1684 = vmatprep.subr.mxu0 0.0
    %1685 = vmatpush1.xpose.msra.mxu0 0.0
    %1686 = vmatprep.subr.mxu0 0.0
    %1687 = vmatpush1.xpose.msra.mxu0 0.0
    %1688 = vmatprep.subr.mxu0 0.0
    %1689 = vmatpush1.xpose.msra.mxu0 0.0
    %1690 = vmatprep.subr.mxu0 0.0
    %1691 = vmatpush1.xpose.msra.mxu0 0.0
    %1692 = vmatprep.subr.mxu0 0.0
    %1693 = vmatpush1.xpose.msra.mxu0 0.0
    %1694 = vmatprep.subr.mxu0 0.0
    %1695 = vmatpush1.xpose.msra.mxu0 0.0
    %1696 = vmatprep.subr.mxu0 0.0
    %1697 = vmatpush1.xpose.msra.mxu0 0.0
    %1698 = vmatprep.subr.mxu0 0.0
    %1699 = vmatpush1.xpose.msra.mxu0 0.0
    %1700 = vmatprep.subr.mxu0 0.0
    %1701 = vmatpush1.xpose.msra.mxu0 0.0
    %1702 = vmatprep.subr.mxu0 0.0
    %1703 = vmatpush1.xpose.msra.mxu0 0.0
    %1704 = vmatprep.subr.mxu0 0.0
    %1705 = vmatpush1.xpose.msra.mxu0 0.0
    %1706 = vmatprep.subr.mxu0 0.0
    %1707 = vmatpush1.xpose.msra.mxu0 0.0
    %v1708 = vand.u32 %v50, 4294901760
    %v1709 = vsub.f32 %v50, %v1708
    %1710 = vmatprep.mubr.f32.mxu0 %v1709
    %v1711 = vand.u32 %v49, 4294901760
    %v1712 = vsub.f32 %v49, %v1711
    %1713 = vmatmul.mubr.f32.gmra.mrb[0].mxu0 %v1712
    %v1714 = vpop.f32.mrb[0].mxu0
    %v1715 = vadd.f32 %v1637, %v1714
    %v1716 = vpop.f32.mrb[0].mxu0
    %1717 = vdwg.mxu0
    %v1718 = vand.u32 %v50, 4294901760
    %1719 = vmatprep.subr.mxu0 %v1718
    %v1720 = vand.u32 %v49, 4294901760
    %1721 = vmatpush1.xpose.msra.mxu0 %v1720
    %1722 = vmatprep.subr.mxu0 0.0
    %1723 = vmatpush1.xpose.msra.mxu0 0.0
    %1724 = vmatprep.subr.mxu0 0.0
    %1725 = vmatpush1.xpose.msra.mxu0 0.0
    %1726 = vmatprep.subr.mxu0 0.0
    %1727 = vmatpush1.xpose.msra.mxu0 0.0
    %1728 = vmatprep.subr.mxu0 0.0
    %1729 = vmatpush1.xpose.msra.mxu0 0.0
    %1730 = vmatprep.subr.mxu0 0.0
    %1731 = vmatpush1.xpose.msra.mxu0 0.0
    %1732 = vmatprep.subr.mxu0 0.0
    %1733 = vmatpush1.xpose.msra.mxu0 0.0
    %1734 = vmatprep.subr.mxu0 0.0
    %1735 = vmatpush1.xpose.msra.mxu0 0.0
    %1736 = vmatprep.subr.mxu0 0.0
    %1737 = vmatpush1.xpose.msra.mxu0 0.0
    %1738 = vmatprep.subr.mxu0 0.0
    %1739 = vmatpush1.xpose.msra.mxu0 0.0
    %1740 = vmatprep.subr.mxu0 0.0
    %1741 = vmatpush1.xpose.msra.mxu0 0.0
    %1742 = vmatprep.subr.mxu0 0.0
    %1743 = vmatpush1.xpose.msra.mxu0 0.0
    %1744 = vmatprep.subr.mxu0 0.0
    %1745 = vmatpush1.xpose.msra.mxu0 0.0
    %1746 = vmatprep.subr.mxu0 0.0
    %1747 = vmatpush1.xpose.msra.mxu0 0.0
    %1748 = vmatprep.subr.mxu0 0.0
    %1749 = vmatpush1.xpose.msra.mxu0 0.0
    %1750 = vmatprep.subr.mxu0 0.0
    %1751 = vmatpush1.xpose.msra.mxu0 0.0
    %1752 = vmatprep.subr.mxu0 0.0
    %1753 = vmatpush1.xpose.msra.mxu0 0.0
    %1754 = vmatprep.subr.mxu0 0.0
    %1755 = vmatpush1.xpose.msra.mxu0 0.0
    %1756 = vmatprep.subr.mxu0 0.0
    %1757 = vmatpush1.xpose.msra.mxu0 0.0
    %1758 = vmatprep.subr.mxu0 0.0
    %1759 = vmatpush1.xpose.msra.mxu0 0.0
    %1760 = vmatprep.subr.mxu0 0.0
    %1761 = vmatpush1.xpose.msra.mxu0 0.0
    %1762 = vmatprep.subr.mxu0 0.0
    %1763 = vmatpush1.xpose.msra.mxu0 0.0
    %1764 = vmatprep.subr.mxu0 0.0
    %1765 = vmatpush1.xpose.msra.mxu0 0.0
    %1766 = vmatprep.subr.mxu0 0.0
    %1767 = vmatpush1.xpose.msra.mxu0 0.0
    %1768 = vmatprep.subr.mxu0 0.0
    %1769 = vmatpush1.xpose.msra.mxu0 0.0
    %1770 = vmatprep.subr.mxu0 0.0
    %1771 = vmatpush1.xpose.msra.mxu0 0.0
    %1772 = vmatprep.subr.mxu0 0.0
    %1773 = vmatpush1.xpose.msra.mxu0 0.0
    %1774 = vmatprep.subr.mxu0 0.0
    %1775 = vmatpush1.xpose.msra.mxu0 0.0
    %1776 = vmatprep.subr.mxu0 0.0
    %1777 = vmatpush1.xpose.msra.mxu0 0.0
    %1778 = vmatprep.subr.mxu0 0.0
    %1779 = vmatpush1.xpose.msra.mxu0 0.0
    %1780 = vmatprep.subr.mxu0 0.0
    %1781 = vmatpush1.xpose.msra.mxu0 0.0
    %1782 = vmatprep.subr.mxu0 0.0
    %1783 = vmatpush1.xpose.msra.mxu0 0.0
    %v1784 = vand.u32 %v50, 4294901760
    %v1785 = vsub.f32 %v50, %v1784
    %v1786 = vand.u32 %v1785, 4294901760
    %1787 = vmatprep.mubr.f32.mxu0 %v1786
    %v1788 = vand.u32 %v49, 4294901760
    %v1789 = vsub.f32 %v49, %v1788
    %v1790 = vand.u32 %v1789, 4294901760
    %1791 = vmatmul.mubr.f32.gmra.mrb[0].mxu0 %v1790
    %v1792 = vpop.f32.mrb[0].mxu0
    %v1793 = vadd.f32 %v1715, %v1792
    %v1794 = vpop.f32.mrb[0].mxu0
    %1795 = vdwg.mxu0
    %v1796 = vand.u32 %v50, 4294901760
    %v1797 = vsub.f32 %v50, %v1796
    %v1798 = vand.u32 %v1797, 4294901760
    %1799 = vmatprep.subr.mxu0 %v1798
    %v1800 = vand.u32 %v49, 4294901760
    %v1801 = vsub.f32 %v49, %v1800
    %v1802 = vand.u32 %v1801, 4294901760
    %1803 = vmatpush1.xpose.msra.mxu0 %v1802
    %1804 = vmatprep.subr.mxu0 0.0
    %1805 = vmatpush1.xpose.msra.mxu0 0.0
    %1806 = vmatprep.subr.mxu0 0.0
    %1807 = vmatpush1.xpose.msra.mxu0 0.0
    %1808 = vmatprep.subr.mxu0 0.0
    %1809 = vmatpush1.xpose.msra.mxu0 0.0
    %1810 = vmatprep.subr.mxu0 0.0
    %1811 = vmatpush1.xpose.msra.mxu0 0.0
    %1812 = vmatprep.subr.mxu0 0.0
    %1813 = vmatpush1.xpose.msra.mxu0 0.0
    %1814 = vmatprep.subr.mxu0 0.0
    %1815 = vmatpush1.xpose.msra.mxu0 0.0
    %1816 = vmatprep.subr.mxu0 0.0
    %1817 = vmatpush1.xpose.msra.mxu0 0.0
    %1818 = vmatprep.subr.mxu0 0.0
    %1819 = vmatpush1.xpose.msra.mxu0 0.0
    %1820 = vmatprep.subr.mxu0 0.0
    %1821 = vmatpush1.xpose.msra.mxu0 0.0
    %1822 = vmatprep.subr.mxu0 0.0
    %1823 = vmatpush1.xpose.msra.mxu0 0.0
    %1824 = vmatprep.subr.mxu0 0.0
    %1825 = vmatpush1.xpose.msra.mxu0 0.0
    %1826 = vmatprep.subr.mxu0 0.0
    %1827 = vmatpush1.xpose.msra.mxu0 0.0
    %1828 = vmatprep.subr.mxu0 0.0
    %1829 = vmatpush1.xpose.msra.mxu0 0.0
    %1830 = vmatprep.subr.mxu0 0.0
    %1831 = vmatpush1.xpose.msra.mxu0 0.0
    %1832 = vmatprep.subr.mxu0 0.0
    %1833 = vmatpush1.xpose.msra.mxu0 0.0
    %1834 = vmatprep.subr.mxu0 0.0
    %1835 = vmatpush1.xpose.msra.mxu0 0.0
    %1836 = vmatprep.subr.mxu0 0.0
    %1837 = vmatpush1.xpose.msra.mxu0 0.0
    %1838 = vmatprep.subr.mxu0 0.0
    %1839 = vmatpush1.xpose.msra.mxu0 0.0
    %1840 = vmatprep.subr.mxu0 0.0
    %1841 = vmatpush1.xpose.msra.mxu0 0.0
    %1842 = vmatprep.subr.mxu0 0.0
    %1843 = vmatpush1.xpose.msra.mxu0 0.0
    %1844 = vmatprep.subr.mxu0 0.0
    %1845 = vmatpush1.xpose.msra.mxu0 0.0
    %1846 = vmatprep.subr.mxu0 0.0
    %1847 = vmatpush1.xpose.msra.mxu0 0.0
    %1848 = vmatprep.subr.mxu0 0.0
    %1849 = vmatpush1.xpose.msra.mxu0 0.0
    %1850 = vmatprep.subr.mxu0 0.0
    %1851 = vmatpush1.xpose.msra.mxu0 0.0
    %1852 = vmatprep.subr.mxu0 0.0
    %1853 = vmatpush1.xpose.msra.mxu0 0.0
    %1854 = vmatprep.subr.mxu0 0.0
    %1855 = vmatpush1.xpose.msra.mxu0 0.0
    %1856 = vmatprep.subr.mxu0 0.0
    %1857 = vmatpush1.xpose.msra.mxu0 0.0
    %1858 = vmatprep.subr.mxu0 0.0
    %1859 = vmatpush1.xpose.msra.mxu0 0.0
    %1860 = vmatprep.subr.mxu0 0.0
    %1861 = vmatpush1.xpose.msra.mxu0 0.0
    %1862 = vmatprep.subr.mxu0 0.0
    %1863 = vmatpush1.xpose.msra.mxu0 0.0
    %1864 = vmatprep.subr.mxu0 0.0
    %1865 = vmatpush1.xpose.msra.mxu0 0.0
    %v1866 = vand.u32 %v50, 4294901760
    %1867 = vmatprep.mubr.f32.mxu0 %v1866
    %v1868 = vand.u32 %v49, 4294901760
    %1869 = vmatmul.mubr.f32.gmra.mrb[0].mxu0 %v1868
    %v1870 = vpop.f32.mrb[0].mxu0
    %v1871 = vadd.f32 %v1793, %v1870
    %v1872 = vpop.f32.mrb[0].mxu0
    %1873 = vdwg.mxu0
    %v1874 = vand.u32 %v50, 4294901760
    %1875 = vmatprep.subr.mxu0 %v1874
    %v1876 = vand.u32 %v49, 4294901760
    %1877 = vmatpush1.xpose.msra.mxu0 %v1876
    %1878 = vmatprep.subr.mxu0 0.0
    %1879 = vmatpush1.xpose.msra.mxu0 0.0
    %1880 = vmatprep.subr.mxu0 0.0
    %1881 = vmatpush1.xpose.msra.mxu0 0.0
    %1882 = vmatprep.subr.mxu0 0.0
    %1883 = vmatpush1.xpose.msra.mxu0 0.0
    %1884 = vmatprep.subr.mxu0 0.0
    %1885 = vmatpush1.xpose.msra.mxu0 0.0
    %1886 = vmatprep.subr.mxu0 0.0
    %1887 = vmatpush1.xpose.msra.mxu0 0.0
    %1888 = vmatprep.subr.mxu0 0.0
    %1889 = vmatpush1.xpose.msra.mxu0 0.0
    %1890 = vmatprep.subr.mxu0 0.0
    %1891 = vmatpush1.xpose.msra.mxu0 0.0
    %1892 = vmatprep.subr.mxu0 0.0
    %1893 = vmatpush1.xpose.msra.mxu0 0.0
    %1894 = vmatprep.subr.mxu0 0.0
    %1895 = vmatpush1.xpose.msra.mxu0 0.0
    %1896 = vmatprep.subr.mxu0 0.0
    %1897 = vmatpush1.xpose.msra.mxu0 0.0
    %1898 = vmatprep.subr.mxu0 0.0
    %1899 = vmatpush1.xpose.msra.mxu0 0.0
    %1900 = vmatprep.subr.mxu0 0.0
    %1901 = vmatpush1.xpose.msra.mxu0 0.0
    %1902 = vmatprep.subr.mxu0 0.0
    %1903 = vmatpush1.xpose.msra.mxu0 0.0
    %1904 = vmatprep.subr.mxu0 0.0
    %1905 = vmatpush1.xpose.msra.mxu0 0.0
    %1906 = vmatprep.subr.mxu0 0.0
    %1907 = vmatpush1.xpose.msra.mxu0 0.0
    %1908 = vmatprep.subr.mxu0 0.0
    %1909 = vmatpush1.xpose.msra.mxu0 0.0
    %1910 = vmatprep.subr.mxu0 0.0
    %1911 = vmatpush1.xpose.msra.mxu0 0.0
    %1912 = vmatprep.subr.mxu0 0.0
    %1913 = vmatpush1.xpose.msra.mxu0 0.0
    %1914 = vmatprep.subr.mxu0 0.0
    %1915 = vmatpush1.xpose.msra.mxu0 0.0
    %1916 = vmatprep.subr.mxu0 0.0
    %1917 = vmatpush1.xpose.msra.mxu0 0.0
    %1918 = vmatprep.subr.mxu0 0.0
    %1919 = vmatpush1.xpose.msra.mxu0 0.0
    %1920 = vmatprep.subr.mxu0 0.0
    %1921 = vmatpush1.xpose.msra.mxu0 0.0
    %1922 = vmatprep.subr.mxu0 0.0
    %1923 = vmatpush1.xpose.msra.mxu0 0.0
    %1924 = vmatprep.subr.mxu0 0.0
    %1925 = vmatpush1.xpose.msra.mxu0 0.0
    %1926 = vmatprep.subr.mxu0 0.0
    %1927 = vmatpush1.xpose.msra.mxu0 0.0
    %1928 = vmatprep.subr.mxu0 0.0
    %1929 = vmatpush1.xpose.msra.mxu0 0.0
    %1930 = vmatprep.subr.mxu0 0.0
    %1931 = vmatpush1.xpose.msra.mxu0 0.0
    %1932 = vmatprep.subr.mxu0 0.0
    %1933 = vmatpush1.xpose.msra.mxu0 0.0
    %1934 = vmatprep.subr.mxu0 0.0
    %1935 = vmatpush1.xpose.msra.mxu0 0.0
    %1936 = vmatprep.subr.mxu0 0.0
    %1937 = vmatpush1.xpose.msra.mxu0 0.0
    %1938 = vmatprep.subr.mxu0 0.0
    %1939 = vmatpush1.xpose.msra.mxu0 0.0
    %v1940 = vand.u32 %v50, 4294901760
    %1941 = vmatprep.mubr.f32.mxu0 %v1940
    %v1942 = vand.u32 %v49, 4294901760
    %1943 = vmatmul.mubr.f32.gmra.mrb[0].mxu0 %v1942
    %v1944 = vpop.f32.mrb[0].mxu0
    %v1945 = vadd.f32 %v1871, %v1944
    %v1946 = vpop.f32.mrb[0].mxu0
    %1947 = vdwg.mxu0
    %v1948 = vadd.f32 %v59, %v1945
    %vm1949 = vcmask 64512
    %1950 = vst.msk [vmem:[#allocation2] sm:$0xff] %vm1949, %v1948
    %v1951 = vld [vmem:[#allocation3] sm:$0xff]
    %v1952 = vand.u32 %v52, 4294901760
    %1953 = vmatprep.subr.mxu0 %v1952
    %v1954 = vand.u32 %v51, 4294901760
    %1955 = vmatpush1.xpose.msra.mxu0 %v1954
    %1956 = vmatprep.subr.mxu0 0.0
    %1957 = vmatpush1.xpose.msra.mxu0 0.0
    %1958 = vmatprep.subr.mxu0 0.0
    %1959 = vmatpush1.xpose.msra.mxu0 0.0
    %1960 = vmatprep.subr.mxu0 0.0
    %1961 = vmatpush1.xpose.msra.mxu0 0.0
    %1962 = vmatprep.subr.mxu0 0.0
    %1963 = vmatpush1.xpose.msra.mxu0 0.0
    %1964 = vmatprep.subr.mxu0 0.0
    %1965 = vmatpush1.xpose.msra.mxu0 0.0
    %1966 = vmatprep.subr.mxu0 0.0
    %1967 = vmatpush1.xpose.msra.mxu0 0.0
    %1968 = vmatprep.subr.mxu0 0.0
    %1969 = vmatpush1.xpose.msra.mxu0 0.0
    %1970 = vmatprep.subr.mxu0 0.0
    %1971 = vmatpush1.xpose.msra.mxu0 0.0
    %1972 = vmatprep.subr.mxu0 0.0
    %1973 = vmatpush1.xpose.msra.mxu0 0.0
    %1974 = vmatprep.subr.mxu0 0.0
    %1975 = vmatpush1.xpose.msra.mxu0 0.0
    %1976 = vmatprep.subr.mxu0 0.0
    %1977 = vmatpush1.xpose.msra.mxu0 0.0
    %1978 = vmatprep.subr.mxu0 0.0
    %1979 = vmatpush1.xpose.msra.mxu0 0.0
    %1980 = vmatprep.subr.mxu0 0.0
    %1981 = vmatpush1.xpose.msra.mxu0 0.0
    %1982 = vmatprep.subr.mxu0 0.0
    %1983 = vmatpush1.xpose.msra.mxu0 0.0
    %1984 = vmatprep.subr.mxu0 0.0
    %1985 = vmatpush1.xpose.msra.mxu0 0.0
    %1986 = vmatprep.subr.mxu0 0.0
    %1987 = vmatpush1.xpose.msra.mxu0 0.0
    %1988 = vmatprep.subr.mxu0 0.0
    %1989 = vmatpush1.xpose.msra.mxu0 0.0
    %1990 = vmatprep.subr.mxu0 0.0
    %1991 = vmatpush1.xpose.msra.mxu0 0.0
    %1992 = vmatprep.subr.mxu0 0.0
    %1993 = vmatpush1.xpose.msra.mxu0 0.0
    %1994 = vmatprep.subr.mxu0 0.0
    %1995 = vmatpush1.xpose.msra.mxu0 0.0
    %1996 = vmatprep.subr.mxu0 0.0
    %1997 = vmatpush1.xpose.msra.mxu0 0.0
    %1998 = vmatprep.subr.mxu0 0.0
    %1999 = vmatpush1.xpose.msra.mxu0 0.0
    %2000 = vmatprep.subr.mxu0 0.0
    %2001 = vmatpush1.xpose.msra.mxu0 0.0
    %2002 = vmatprep.subr.mxu0 0.0
    %2003 = vmatpush1.xpose.msra.mxu0 0.0
    %2004 = vmatprep.subr.mxu0 0.0
    %2005 = vmatpush1.xpose.msra.mxu0 0.0
    %2006 = vmatprep.subr.mxu0 0.0
    %2007 = vmatpush1.xpose.msra.mxu0 0.0
    %2008 = vmatprep.subr.mxu0 0.0
    %2009 = vmatpush1.xpose.msra.mxu0 0.0
    %2010 = vmatprep.subr.mxu0 0.0
    %2011 = vmatpush1.xpose.msra.mxu0 0.0
    %2012 = vmatprep.subr.mxu0 0.0
    %2013 = vmatpush1.xpose.msra.mxu0 0.0
    %2014 = vmatprep.subr.mxu0 0.0
    %2015 = vmatpush1.xpose.msra.mxu0 0.0
    %2016 = vmatprep.subr.mxu0 0.0
    %2017 = vmatpush1.xpose.msra.mxu0 0.0
    %v2018 = vand.u32 %v52, 4294901760
    %v2019 = vsub.f32 %v52, %v2018
    %v2020 = vand.u32 %v2019, 4294901760
    %v2021 = vsub.f32 %v2019, %v2020
    %v2022 = vand.u32 %v2021, 4294901760
    %2023 = vmatprep.mubr.f32.mxu0 %v2022
    %v2024 = vand.u32 %v51, 4294901760
    %v2025 = vsub.f32 %v51, %v2024
    %v2026 = vand.u32 %v2025, 4294901760
    %v2027 = vsub.f32 %v2025, %v2026
    %v2028 = vand.u32 %v2027, 4294901760
    %2029 = vmatmul.mubr.f32.gmra.mrb[0].mxu0 %v2028
    %v2030 = vpop.f32.mrb[0].mxu0
    %v2031 = vadd.f32 0.0, %v2030
    %v2032 = vpop.f32.mrb[0].mxu0
    %2033 = vdwg.mxu0
    %v2034 = vand.u32 %v52, 4294901760
    %v2035 = vsub.f32 %v52, %v2034
    %v2036 = vand.u32 %v2035, 4294901760
    %v2037 = vsub.f32 %v2035, %v2036
    %v2038 = vand.u32 %v2037, 4294901760
    %2039 = vmatprep.subr.mxu0 %v2038
    %v2040 = vand.u32 %v51, 4294901760
    %v2041 = vsub.f32 %v51, %v2040
    %v2042 = vand.u32 %v2041, 4294901760
    %v2043 = vsub.f32 %v2041, %v2042
    %v2044 = vand.u32 %v2043, 4294901760
    %2045 = vmatpush1.xpose.msra.mxu0 %v2044
    %2046 = vmatprep.subr.mxu0 0.0
    %2047 = vmatpush1.xpose.msra.mxu0 0.0
    %2048 = vmatprep.subr.mxu0 0.0
    %2049 = vmatpush1.xpose.msra.mxu0 0.0
    %2050 = vmatprep.subr.mxu0 0.0
    %2051 = vmatpush1.xpose.msra.mxu0 0.0
    %2052 = vmatprep.subr.mxu0 0.0
    %2053 = vmatpush1.xpose.msra.mxu0 0.0
    %2054 = vmatprep.subr.mxu0 0.0
    %2055 = vmatpush1.xpose.msra.mxu0 0.0
    %2056 = vmatprep.subr.mxu0 0.0
    %2057 = vmatpush1.xpose.msra.mxu0 0.0
    %2058 = vmatprep.subr.mxu0 0.0
    %2059 = vmatpush1.xpose.msra.mxu0 0.0
    %2060 = vmatprep.subr.mxu0 0.0
    %2061 = vmatpush1.xpose.msra.mxu0 0.0
    %2062 = vmatprep.subr.mxu0 0.0
    %2063 = vmatpush1.xpose.msra.mxu0 0.0
    %2064 = vmatprep.subr.mxu0 0.0
    %2065 = vmatpush1.xpose.msra.mxu0 0.0
    %2066 = vmatprep.subr.mxu0 0.0
    %2067 = vmatpush1.xpose.msra.mxu0 0.0
    %2068 = vmatprep.subr.mxu0 0.0
    %2069 = vmatpush1.xpose.msra.mxu0 0.0
    %2070 = vmatprep.subr.mxu0 0.0
    %2071 = vmatpush1.xpose.msra.mxu0 0.0
    %2072 = vmatprep.subr.mxu0 0.0
    %2073 = vmatpush1.xpose.msra.mxu0 0.0
    %2074 = vmatprep.subr.mxu0 0.0
    %2075 = vmatpush1.xpose.msra.mxu0 0.0
    %2076 = vmatprep.subr.mxu0 0.0
    %2077 = vmatpush1.xpose.msra.mxu0 0.0
    %2078 = vmatprep.subr.mxu0 0.0
    %2079 = vmatpush1.xpose.msra.mxu0 0.0
    %2080 = vmatprep.subr.mxu0 0.0
    %2081 = vmatpush1.xpose.msra.mxu0 0.0
    %2082 = vmatprep.subr.mxu0 0.0
    %2083 = vmatpush1.xpose.msra.mxu0 0.0
    %2084 = vmatprep.subr.mxu0 0.0
    %2085 = vmatpush1.xpose.msra.mxu0 0.0
    %2086 = vmatprep.subr.mxu0 0.0
    %2087 = vmatpush1.xpose.msra.mxu0 0.0
    %2088 = vmatprep.subr.mxu0 0.0
    %2089 = vmatpush1.xpose.msra.mxu0 0.0
    %2090 = vmatprep.subr.mxu0 0.0
    %2091 = vmatpush1.xpose.msra.mxu0 0.0
    %2092 = vmatprep.subr.mxu0 0.0
    %2093 = vmatpush1.xpose.msra.mxu0 0.0
    %2094 = vmatprep.subr.mxu0 0.0
    %2095 = vmatpush1.xpose.msra.mxu0 0.0
    %2096 = vmatprep.subr.mxu0 0.0
    %2097 = vmatpush1.xpose.msra.mxu0 0.0
    %2098 = vmatprep.subr.mxu0 0.0
    %2099 = vmatpush1.xpose.msra.mxu0 0.0
    %2100 = vmatprep.subr.mxu0 0.0
    %2101 = vmatpush1.xpose.msra.mxu0 0.0
    %2102 = vmatprep.subr.mxu0 0.0
    %2103 = vmatpush1.xpose.msra.mxu0 0.0
    %2104 = vmatprep.subr.mxu0 0.0
    %2105 = vmatpush1.xpose.msra.mxu0 0.0
    %2106 = vmatprep.subr.mxu0 0.0
    %2107 = vmatpush1.xpose.msra.mxu0 0.0
    %v2108 = vand.u32 %v52, 4294901760
    %2109 = vmatprep.mubr.f32.mxu0 %v2108
    %v2110 = vand.u32 %v51, 4294901760
    %2111 = vmatmul.mubr.f32.gmra.mrb[0].mxu0 %v2110
    %v2112 = vpop.f32.mrb[0].mxu0
    %v2113 = vadd.f32 %v2031, %v2112
    %v2114 = vpop.f32.mrb[0].mxu0
    %2115 = vdwg.mxu0
    %v2116 = vand.u32 %v52, 4294901760
    %v2117 = vsub.f32 %v52, %v2116
    %2118 = vmatprep.subr.mxu0 %v2117
    %v2119 = vand.u32 %v51, 4294901760
    %v2120 = vsub.f32 %v51, %v2119
    %2121 = vmatpush1.xpose.msra.mxu0 %v2120
    %2122 = vmatprep.subr.mxu0 0.0
    %2123 = vmatpush1.xpose.msra.mxu0 0.0
    %2124 = vmatprep.subr.mxu0 0.0
    %2125 = vmatpush1.xpose.msra.mxu0 0.0
    %2126 = vmatprep.subr.mxu0 0.0
    %2127 = vmatpush1.xpose.msra.mxu0 0.0
    %2128 = vmatprep.subr.mxu0 0.0
    %2129 = vmatpush1.xpose.msra.mxu0 0.0
    %2130 = vmatprep.subr.mxu0 0.0
    %2131 = vmatpush1.xpose.msra.mxu0 0.0
    %2132 = vmatprep.subr.mxu0 0.0
    %2133 = vmatpush1.xpose.msra.mxu0 0.0
    %2134 = vmatprep.subr.mxu0 0.0
    %2135 = vmatpush1.xpose.msra.mxu0 0.0
    %2136 = vmatprep.subr.mxu0 0.0
    %2137 = vmatpush1.xpose.msra.mxu0 0.0
    %2138 = vmatprep.subr.mxu0 0.0
    %2139 = vmatpush1.xpose.msra.mxu0 0.0
    %2140 = vmatprep.subr.mxu0 0.0
    %2141 = vmatpush1.xpose.msra.mxu0 0.0
    %2142 = vmatprep.subr.mxu0 0.0
    %2143 = vmatpush1.xpose.msra.mxu0 0.0
    %2144 = vmatprep.subr.mxu0 0.0
    %2145 = vmatpush1.xpose.msra.mxu0 0.0
    %2146 = vmatprep.subr.mxu0 0.0
    %2147 = vmatpush1.xpose.msra.mxu0 0.0
    %2148 = vmatprep.subr.mxu0 0.0
    %2149 = vmatpush1.xpose.msra.mxu0 0.0
    %2150 = vmatprep.subr.mxu0 0.0
    %2151 = vmatpush1.xpose.msra.mxu0 0.0
    %2152 = vmatprep.subr.mxu0 0.0
    %2153 = vmatpush1.xpose.msra.mxu0 0.0
    %2154 = vmatprep.subr.mxu0 0.0
    %2155 = vmatpush1.xpose.msra.mxu0 0.0
    %2156 = vmatprep.subr.mxu0 0.0
    %2157 = vmatpush1.xpose.msra.mxu0 0.0
    %2158 = vmatprep.subr.mxu0 0.0
    %2159 = vmatpush1.xpose.msra.mxu0 0.0
    %2160 = vmatprep.subr.mxu0 0.0
    %2161 = vmatpush1.xpose.msra.mxu0 0.0
    %2162 = vmatprep.subr.mxu0 0.0
    %2163 = vmatpush1.xpose.msra.mxu0 0.0
    %2164 = vmatprep.subr.mxu0 0.0
    %2165 = vmatpush1.xpose.msra.mxu0 0.0
    %2166 = vmatprep.subr.mxu0 0.0
    %2167 = vmatpush1.xpose.msra.mxu0 0.0
    %2168 = vmatprep.subr.mxu0 0.0
    %2169 = vmatpush1.xpose.msra.mxu0 0.0
    %2170 = vmatprep.subr.mxu0 0.0
    %2171 = vmatpush1.xpose.msra.mxu0 0.0
    %2172 = vmatprep.subr.mxu0 0.0
    %2173 = vmatpush1.xpose.msra.mxu0 0.0
    %2174 = vmatprep.subr.mxu0 0.0
    %2175 = vmatpush1.xpose.msra.mxu0 0.0
    %2176 = vmatprep.subr.mxu0 0.0
    %2177 = vmatpush1.xpose.msra.mxu0 0.0
    %2178 = vmatprep.subr.mxu0 0.0
    %2179 = vmatpush1.xpose.msra.mxu0 0.0
    %2180 = vmatprep.subr.mxu0 0.0
    %2181 = vmatpush1.xpose.msra.mxu0 0.0
    %2182 = vmatprep.subr.mxu0 0.0
    %2183 = vmatpush1.xpose.msra.mxu0 0.0
    %v2184 = vand.u32 %v52, 4294901760
    %v2185 = vsub.f32 %v52, %v2184
    %2186 = vmatprep.mubr.f32.mxu0 %v2185
    %v2187 = vand.u32 %v51, 4294901760
    %v2188 = vsub.f32 %v51, %v2187
    %2189 = vmatmul.mubr.f32.gmra.mrb[0].mxu0 %v2188
    %v2190 = vpop.f32.mrb[0].mxu0
    %v2191 = vadd.f32 %v2113, %v2190
    %v2192 = vpop.f32.mrb[0].mxu0
    %2193 = vdwg.mxu0
    %v2194 = vand.u32 %v52, 4294901760
    %2195 = vmatprep.subr.mxu0 %v2194
    %v2196 = vand.u32 %v51, 4294901760
    %2197 = vmatpush1.xpose.msra.mxu0 %v2196
    %2198 = vmatprep.subr.mxu0 0.0
    %2199 = vmatpush1.xpose.msra.mxu0 0.0
    %2200 = vmatprep.subr.mxu0 0.0
    %2201 = vmatpush1.xpose.msra.mxu0 0.0
    %2202 = vmatprep.subr.mxu0 0.0
    %2203 = vmatpush1.xpose.msra.mxu0 0.0
    %2204 = vmatprep.subr.mxu0 0.0
    %2205 = vmatpush1.xpose.msra.mxu0 0.0
    %2206 = vmatprep.subr.mxu0 0.0
    %2207 = vmatpush1.xpose.msra.mxu0 0.0
    %2208 = vmatprep.subr.mxu0 0.0
    %2209 = vmatpush1.xpose.msra.mxu0 0.0
    %2210 = vmatprep.subr.mxu0 0.0
    %2211 = vmatpush1.xpose.msra.mxu0 0.0
    %2212 = vmatprep.subr.mxu0 0.0
    %2213 = vmatpush1.xpose.msra.mxu0 0.0
    %2214 = vmatprep.subr.mxu0 0.0
    %2215 = vmatpush1.xpose.msra.mxu0 0.0
    %2216 = vmatprep.subr.mxu0 0.0
    %2217 = vmatpush1.xpose.msra.mxu0 0.0
    %2218 = vmatprep.subr.mxu0 0.0
    %2219 = vmatpush1.xpose.msra.mxu0 0.0
    %2220 = vmatprep.subr.mxu0 0.0
    %2221 = vmatpush1.xpose.msra.mxu0 0.0
    %2222 = vmatprep.subr.mxu0 0.0
    %2223 = vmatpush1.xpose.msra.mxu0 0.0
    %2224 = vmatprep.subr.mxu0 0.0
    %2225 = vmatpush1.xpose.msra.mxu0 0.0
    %2226 = vmatprep.subr.mxu0 0.0
    %2227 = vmatpush1.xpose.msra.mxu0 0.0
    %2228 = vmatprep.subr.mxu0 0.0
    %2229 = vmatpush1.xpose.msra.mxu0 0.0
    %2230 = vmatprep.subr.mxu0 0.0
    %2231 = vmatpush1.xpose.msra.mxu0 0.0
    %2232 = vmatprep.subr.mxu0 0.0
    %2233 = vmatpush1.xpose.msra.mxu0 0.0
    %2234 = vmatprep.subr.mxu0 0.0
    %2235 = vmatpush1.xpose.msra.mxu0 0.0
    %2236 = vmatprep.subr.mxu0 0.0
    %2237 = vmatpush1.xpose.msra.mxu0 0.0
    %2238 = vmatprep.subr.mxu0 0.0
    %2239 = vmatpush1.xpose.msra.mxu0 0.0
    %2240 = vmatprep.subr.mxu0 0.0
    %2241 = vmatpush1.xpose.msra.mxu0 0.0
    %2242 = vmatprep.subr.mxu0 0.0
    %2243 = vmatpush1.xpose.msra.mxu0 0.0
    %2244 = vmatprep.subr.mxu0 0.0
    %2245 = vmatpush1.xpose.msra.mxu0 0.0
    %2246 = vmatprep.subr.mxu0 0.0
    %2247 = vmatpush1.xpose.msra.mxu0 0.0
    %2248 = vmatprep.subr.mxu0 0.0
    %2249 = vmatpush1.xpose.msra.mxu0 0.0
    %2250 = vmatprep.subr.mxu0 0.0
    %2251 = vmatpush1.xpose.msra.mxu0 0.0
    %2252 = vmatprep.subr.mxu0 0.0
    %2253 = vmatpush1.xpose.msra.mxu0 0.0
    %2254 = vmatprep.subr.mxu0 0.0
    %2255 = vmatpush1.xpose.msra.mxu0 0.0
    %2256 = vmatprep.subr.mxu0 0.0
    %2257 = vmatpush1.xpose.msra.mxu0 0.0
    %2258 = vmatprep.subr.mxu0 0.0
    %2259 = vmatpush1.xpose.msra.mxu0 0.0
    %v2260 = vand.u32 %v52, 4294901760
    %v2261 = vsub.f32 %v52, %v2260
    %v2262 = vand.u32 %v2261, 4294901760
    %2263 = vmatprep.mubr.f32.mxu0 %v2262
    %v2264 = vand.u32 %v51, 4294901760
    %v2265 = vsub.f32 %v51, %v2264
    %v2266 = vand.u32 %v2265, 4294901760
    %2267 = vmatmul.mubr.f32.gmra.mrb[0].mxu0 %v2266
    %v2268 = vpop.f32.mrb[0].mxu0
    %v2269 = vadd.f32 %v2191, %v2268
    %v2270 = vpop.f32.mrb[0].mxu0
    %2271 = vdwg.mxu0
    %v2272 = vand.u32 %v52, 4294901760
    %v2273 = vsub.f32 %v52, %v2272
    %v2274 = vand.u32 %v2273, 4294901760
    %2275 = vmatprep.subr.mxu0 %v2274
    %v2276 = vand.u32 %v51, 4294901760
    %v2277 = vsub.f32 %v51, %v2276
    %v2278 = vand.u32 %v2277, 4294901760
    %2279 = vmatpush1.xpose.msra.mxu0 %v2278
    %2280 = vmatprep.subr.mxu0 0.0
    %2281 = vmatpush1.xpose.msra.mxu0 0.0
    %2282 = vmatprep.subr.mxu0 0.0
    %2283 = vmatpush1.xpose.msra.mxu0 0.0
    %2284 = vmatprep.subr.mxu0 0.0
    %2285 = vmatpush1.xpose.msra.mxu0 0.0
    %2286 = vmatprep.subr.mxu0 0.0
    %2287 = vmatpush1.xpose.msra.mxu0 0.0
    %2288 = vmatprep.subr.mxu0 0.0
    %2289 = vmatpush1.xpose.msra.mxu0 0.0
    %2290 = vmatprep.subr.mxu0 0.0
    %2291 = vmatpush1.xpose.msra.mxu0 0.0
    %2292 = vmatprep.subr.mxu0 0.0
    %2293 = vmatpush1.xpose.msra.mxu0 0.0
    %2294 = vmatprep.subr.mxu0 0.0
    %2295 = vmatpush1.xpose.msra.mxu0 0.0
    %2296 = vmatprep.subr.mxu0 0.0
    %2297 = vmatpush1.xpose.msra.mxu0 0.0
    %2298 = vmatprep.subr.mxu0 0.0
    %2299 = vmatpush1.xpose.msra.mxu0 0.0
    %2300 = vmatprep.subr.mxu0 0.0
    %2301 = vmatpush1.xpose.msra.mxu0 0.0
    %2302 = vmatprep.subr.mxu0 0.0
    %2303 = vmatpush1.xpose.msra.mxu0 0.0
    %2304 = vmatprep.subr.mxu0 0.0
    %2305 = vmatpush1.xpose.msra.mxu0 0.0
    %2306 = vmatprep.subr.mxu0 0.0
    %2307 = vmatpush1.xpose.msra.mxu0 0.0
    %2308 = vmatprep.subr.mxu0 0.0
    %2309 = vmatpush1.xpose.msra.mxu0 0.0
    %2310 = vmatprep.subr.mxu0 0.0
    %2311 = vmatpush1.xpose.msra.mxu0 0.0
    %2312 = vmatprep.subr.mxu0 0.0
    %2313 = vmatpush1.xpose.msra.mxu0 0.0
    %2314 = vmatprep.subr.mxu0 0.0
    %2315 = vmatpush1.xpose.msra.mxu0 0.0
    %2316 = vmatprep.subr.mxu0 0.0
    %2317 = vmatpush1.xpose.msra.mxu0 0.0
    %2318 = vmatprep.subr.mxu0 0.0
    %2319 = vmatpush1.xpose.msra.mxu0 0.0
    %2320 = vmatprep.subr.mxu0 0.0
    %2321 = vmatpush1.xpose.msra.mxu0 0.0
    %2322 = vmatprep.subr.mxu0 0.0
    %2323 = vmatpush1.xpose.msra.mxu0 0.0
    %2324 = vmatprep.subr.mxu0 0.0
    %2325 = vmatpush1.xpose.msra.mxu0 0.0
    %2326 = vmatprep.subr.mxu0 0.0
    %2327 = vmatpush1.xpose.msra.mxu0 0.0
    %2328 = vmatprep.subr.mxu0 0.0
    %2329 = vmatpush1.xpose.msra.mxu0 0.0
    %2330 = vmatprep.subr.mxu0 0.0
    %2331 = vmatpush1.xpose.msra.mxu0 0.0
    %2332 = vmatprep.subr.mxu0 0.0
    %2333 = vmatpush1.xpose.msra.mxu0 0.0
    %2334 = vmatprep.subr.mxu0 0.0
    %2335 = vmatpush1.xpose.msra.mxu0 0.0
    %2336 = vmatprep.subr.mxu0 0.0
    %2337 = vmatpush1.xpose.msra.mxu0 0.0
    %2338 = vmatprep.subr.mxu0 0.0
    %2339 = vmatpush1.xpose.msra.mxu0 0.0
    %2340 = vmatprep.subr.mxu0 0.0
    %2341 = vmatpush1.xpose.msra.mxu0 0.0
    %v2342 = vand.u32 %v52, 4294901760
    %2343 = vmatprep.mubr.f32.mxu0 %v2342
    %v2344 = vand.u32 %v51, 4294901760
    %2345 = vmatmul.mubr.f32.gmra.mrb[0].mxu0 %v2344
    %v2346 = vpop.f32.mrb[0].mxu0
    %v2347 = vadd.f32 %v2269, %v2346
    %v2348 = vpop.f32.mrb[0].mxu0
    %2349 = vdwg.mxu0
    %v2350 = vand.u32 %v52, 4294901760
    %2351 = vmatprep.subr.mxu0 %v2350
    %v2352 = vand.u32 %v51, 4294901760
    %2353 = vmatpush1.xpose.msra.mxu0 %v2352
    %2354 = vmatprep.subr.mxu0 0.0
    %2355 = vmatpush1.xpose.msra.mxu0 0.0
    %2356 = vmatprep.subr.mxu0 0.0
    %2357 = vmatpush1.xpose.msra.mxu0 0.0
    %2358 = vmatprep.subr.mxu0 0.0
    %2359 = vmatpush1.xpose.msra.mxu0 0.0
    %2360 = vmatprep.subr.mxu0 0.0
    %2361 = vmatpush1.xpose.msra.mxu0 0.0
    %2362 = vmatprep.subr.mxu0 0.0
    %2363 = vmatpush1.xpose.msra.mxu0 0.0
    %2364 = vmatprep.subr.mxu0 0.0
    %2365 = vmatpush1.xpose.msra.mxu0 0.0
    %2366 = vmatprep.subr.mxu0 0.0
    %2367 = vmatpush1.xpose.msra.mxu0 0.0
    %2368 = vmatprep.subr.mxu0 0.0
    %2369 = vmatpush1.xpose.msra.mxu0 0.0
    %2370 = vmatprep.subr.mxu0 0.0
    %2371 = vmatpush1.xpose.msra.mxu0 0.0
    %2372 = vmatprep.subr.mxu0 0.0
    %2373 = vmatpush1.xpose.msra.mxu0 0.0
    %2374 = vmatprep.subr.mxu0 0.0
    %2375 = vmatpush1.xpose.msra.mxu0 0.0
    %2376 = vmatprep.subr.mxu0 0.0
    %2377 = vmatpush1.xpose.msra.mxu0 0.0
    %2378 = vmatprep.subr.mxu0 0.0
    %2379 = vmatpush1.xpose.msra.mxu0 0.0
    %2380 = vmatprep.subr.mxu0 0.0
    %2381 = vmatpush1.xpose.msra.mxu0 0.0
    %2382 = vmatprep.subr.mxu0 0.0
    %2383 = vmatpush1.xpose.msra.mxu0 0.0
    %2384 = vmatprep.subr.mxu0 0.0
    %2385 = vmatpush1.xpose.msra.mxu0 0.0
    %2386 = vmatprep.subr.mxu0 0.0
    %2387 = vmatpush1.xpose.msra.mxu0 0.0
    %2388 = vmatprep.subr.mxu0 0.0
    %2389 = vmatpush1.xpose.msra.mxu0 0.0
    %2390 = vmatprep.subr.mxu0 0.0
    %2391 = vmatpush1.xpose.msra.mxu0 0.0
    %2392 = vmatprep.subr.mxu0 0.0
    %2393 = vmatpush1.xpose.msra.mxu0 0.0
    %2394 = vmatprep.subr.mxu0 0.0
    %2395 = vmatpush1.xpose.msra.mxu0 0.0
    %2396 = vmatprep.subr.mxu0 0.0
    %2397 = vmatpush1.xpose.msra.mxu0 0.0
    %2398 = vmatprep.subr.mxu0 0.0
    %2399 = vmatpush1.xpose.msra.mxu0 0.0
    %2400 = vmatprep.subr.mxu0 0.0
    %2401 = vmatpush1.xpose.msra.mxu0 0.0
    %2402 = vmatprep.subr.mxu0 0.0
    %2403 = vmatpush1.xpose.msra.mxu0 0.0
    %2404 = vmatprep.subr.mxu0 0.0
    %2405 = vmatpush1.xpose.msra.mxu0 0.0
    %2406 = vmatprep.subr.mxu0 0.0
    %2407 = vmatpush1.xpose.msra.mxu0 0.0
    %2408 = vmatprep.subr.mxu0 0.0
    %2409 = vmatpush1.xpose.msra.mxu0 0.0
    %2410 = vmatprep.subr.mxu0 0.0
    %2411 = vmatpush1.xpose.msra.mxu0 0.0
    %2412 = vmatprep.subr.mxu0 0.0
    %2413 = vmatpush1.xpose.msra.mxu0 0.0
    %2414 = vmatprep.subr.mxu0 0.0
    %2415 = vmatpush1.xpose.msra.mxu0 0.0
    %v2416 = vand.u32 %v52, 4294901760
    %2417 = vmatprep.mubr.f32.mxu0 %v2416
    %v2418 = vand.u32 %v51, 4294901760
    %2419 = vmatmul.mubr.f32.gmra.mrb[0].mxu0 %v2418
    %v2420 = vpop.f32.mrb[0].mxu0
    %v2421 = vadd.f32 %v2347, %v2420
    %v2422 = vpop.f32.mrb[0].mxu0
    %2423 = vdwg.mxu0
    %v2424 = vand.u32 %v54, 4294901760
    %2425 = vmatprep.subr.mxu0 %v2424
    %v2426 = vand.u32 %v53, 4294901760
    %2427 = vmatpush1.xpose.msra.mxu0 %v2426
    %2428 = vmatprep.subr.mxu0 0.0
    %2429 = vmatpush1.xpose.msra.mxu0 0.0
    %2430 = vmatprep.subr.mxu0 0.0
    %2431 = vmatpush1.xpose.msra.mxu0 0.0
    %2432 = vmatprep.subr.mxu0 0.0
    %2433 = vmatpush1.xpose.msra.mxu0 0.0
    %2434 = vmatprep.subr.mxu0 0.0
    %2435 = vmatpush1.xpose.msra.mxu0 0.0
    %2436 = vmatprep.subr.mxu0 0.0
    %2437 = vmatpush1.xpose.msra.mxu0 0.0
    %2438 = vmatprep.subr.mxu0 0.0
    %2439 = vmatpush1.xpose.msra.mxu0 0.0
    %2440 = vmatprep.subr.mxu0 0.0
    %2441 = vmatpush1.xpose.msra.mxu0 0.0
    %2442 = vmatprep.subr.mxu0 0.0
    %2443 = vmatpush1.xpose.msra.mxu0 0.0
    %2444 = vmatprep.subr.mxu0 0.0
    %2445 = vmatpush1.xpose.msra.mxu0 0.0
    %2446 = vmatprep.subr.mxu0 0.0
    %2447 = vmatpush1.xpose.msra.mxu0 0.0
    %2448 = vmatprep.subr.mxu0 0.0
    %2449 = vmatpush1.xpose.msra.mxu0 0.0
    %2450 = vmatprep.subr.mxu0 0.0
    %2451 = vmatpush1.xpose.msra.mxu0 0.0
    %2452 = vmatprep.subr.mxu0 0.0
    %2453 = vmatpush1.xpose.msra.mxu0 0.0
    %2454 = vmatprep.subr.mxu0 0.0
    %2455 = vmatpush1.xpose.msra.mxu0 0.0
    %2456 = vmatprep.subr.mxu0 0.0
    %2457 = vmatpush1.xpose.msra.mxu0 0.0
    %2458 = vmatprep.subr.mxu0 0.0
    %2459 = vmatpush1.xpose.msra.mxu0 0.0
    %2460 = vmatprep.subr.mxu0 0.0
    %2461 = vmatpush1.xpose.msra.mxu0 0.0
    %2462 = vmatprep.subr.mxu0 0.0
    %2463 = vmatpush1.xpose.msra.mxu0 0.0
    %2464 = vmatprep.subr.mxu0 0.0
    %2465 = vmatpush1.xpose.msra.mxu0 0.0
    %2466 = vmatprep.subr.mxu0 0.0
    %2467 = vmatpush1.xpose.msra.mxu0 0.0
    %2468 = vmatprep.subr.mxu0 0.0
    %2469 = vmatpush1.xpose.msra.mxu0 0.0
    %2470 = vmatprep.subr.mxu0 0.0
    %2471 = vmatpush1.xpose.msra.mxu0 0.0
    %2472 = vmatprep.subr.mxu0 0.0
    %2473 = vmatpush1.xpose.msra.mxu0 0.0
    %2474 = vmatprep.subr.mxu0 0.0
    %2475 = vmatpush1.xpose.msra.mxu0 0.0
    %2476 = vmatprep.subr.mxu0 0.0
    %2477 = vmatpush1.xpose.msra.mxu0 0.0
    %2478 = vmatprep.subr.mxu0 0.0
    %2479 = vmatpush1.xpose.msra.mxu0 0.0
    %2480 = vmatprep.subr.mxu0 0.0
    %2481 = vmatpush1.xpose.msra.mxu0 0.0
    %2482 = vmatprep.subr.mxu0 0.0
    %2483 = vmatpush1.xpose.msra.mxu0 0.0
    %2484 = vmatprep.subr.mxu0 0.0
    %2485 = vmatpush1.xpose.msra.mxu0 0.0
    %2486 = vmatprep.subr.mxu0 0.0
    %2487 = vmatpush1.xpose.msra.mxu0 0.0
    %2488 = vmatprep.subr.mxu0 0.0
    %2489 = vmatpush1.xpose.msra.mxu0 0.0
    %v2490 = vand.u32 %v54, 4294901760
    %v2491 = vsub.f32 %v54, %v2490
    %v2492 = vand.u32 %v2491, 4294901760
    %v2493 = vsub.f32 %v2491, %v2492
    %v2494 = vand.u32 %v2493, 4294901760
    %2495 = vmatprep.mubr.f32.mxu0 %v2494
    %v2496 = vand.u32 %v53, 4294901760
    %v2497 = vsub.f32 %v53, %v2496
    %v2498 = vand.u32 %v2497, 4294901760
    %v2499 = vsub.f32 %v2497, %v2498
    %v2500 = vand.u32 %v2499, 4294901760
    %2501 = vmatmul.mubr.f32.gmra.mrb[0].mxu0 %v2500
    %v2502 = vpop.f32.mrb[0].mxu0
    %v2503 = vadd.f32 %v2421, %v2502
    %v2504 = vpop.f32.mrb[0].mxu0
    %2505 = vdwg.mxu0
    %v2506 = vand.u32 %v54, 4294901760
    %v2507 = vsub.f32 %v54, %v2506
    %v2508 = vand.u32 %v2507, 4294901760
    %v2509 = vsub.f32 %v2507, %v2508
    %v2510 = vand.u32 %v2509, 4294901760
    %2511 = vmatprep.subr.mxu0 %v2510
    %v2512 = vand.u32 %v53, 4294901760
    %v2513 = vsub.f32 %v53, %v2512
    %v2514 = vand.u32 %v2513, 4294901760
    %v2515 = vsub.f32 %v2513, %v2514
    %v2516 = vand.u32 %v2515, 4294901760
    %2517 = vmatpush1.xpose.msra.mxu0 %v2516
    %2518 = vmatprep.subr.mxu0 0.0
    %2519 = vmatpush1.xpose.msra.mxu0 0.0
    %2520 = vmatprep.subr.mxu0 0.0
    %2521 = vmatpush1.xpose.msra.mxu0 0.0
    %2522 = vmatprep.subr.mxu0 0.0
    %2523 = vmatpush1.xpose.msra.mxu0 0.0
    %2524 = vmatprep.subr.mxu0 0.0
    %2525 = vmatpush1.xpose.msra.mxu0 0.0
    %2526 = vmatprep.subr.mxu0 0.0
    %2527 = vmatpush1.xpose.msra.mxu0 0.0
    %2528 = vmatprep.subr.mxu0 0.0
    %2529 = vmatpush1.xpose.msra.mxu0 0.0
    %2530 = vmatprep.subr.mxu0 0.0
    %2531 = vmatpush1.xpose.msra.mxu0 0.0
    %2532 = vmatprep.subr.mxu0 0.0
    %2533 = vmatpush1.xpose.msra.mxu0 0.0
    %2534 = vmatprep.subr.mxu0 0.0
    %2535 = vmatpush1.xpose.msra.mxu0 0.0
    %2536 = vmatprep.subr.mxu0 0.0
    %2537 = vmatpush1.xpose.msra.mxu0 0.0
    %2538 = vmatprep.subr.mxu0 0.0
    %2539 = vmatpush1.xpose.msra.mxu0 0.0
    %2540 = vmatprep.subr.mxu0 0.0
    %2541 = vmatpush1.xpose.msra.mxu0 0.0
    %2542 = vmatprep.subr.mxu0 0.0
    %2543 = vmatpush1.xpose.msra.mxu0 0.0
    %2544 = vmatprep.subr.mxu0 0.0
    %2545 = vmatpush1.xpose.msra.mxu0 0.0
    %2546 = vmatprep.subr.mxu0 0.0
    %2547 = vmatpush1.xpose.msra.mxu0 0.0
    %2548 = vmatprep.subr.mxu0 0.0
    %2549 = vmatpush1.xpose.msra.mxu0 0.0
    %2550 = vmatprep.subr.mxu0 0.0
    %2551 = vmatpush1.xpose.msra.mxu0 0.0
    %2552 = vmatprep.subr.mxu0 0.0
    %2553 = vmatpush1.xpose.msra.mxu0 0.0
    %2554 = vmatprep.subr.mxu0 0.0
    %2555 = vmatpush1.xpose.msra.mxu0 0.0
    %2556 = vmatprep.subr.mxu0 0.0
    %2557 = vmatpush1.xpose.msra.mxu0 0.0
    %2558 = vmatprep.subr.mxu0 0.0
    %2559 = vmatpush1.xpose.msra.mxu0 0.0
    %2560 = vmatprep.subr.mxu0 0.0
    %2561 = vmatpush1.xpose.msra.mxu0 0.0
    %2562 = vmatprep.subr.mxu0 0.0
    %2563 = vmatpush1.xpose.msra.mxu0 0.0
    %2564 = vmatprep.subr.mxu0 0.0
    %2565 = vmatpush1.xpose.msra.mxu0 0.0
    %2566 = vmatprep.subr.mxu0 0.0
    %2567 = vmatpush1.xpose.msra.mxu0 0.0
    %2568 = vmatprep.subr.mxu0 0.0
    %2569 = vmatpush1.xpose.msra.mxu0 0.0
    %2570 = vmatprep.subr.mxu0 0.0
    %2571 = vmatpush1.xpose.msra.mxu0 0.0
    %2572 = vmatprep.subr.mxu0 0.0
    %2573 = vmatpush1.xpose.msra.mxu0 0.0
    %2574 = vmatprep.subr.mxu0 0.0
    %2575 = vmatpush1.xpose.msra.mxu0 0.0
    %2576 = vmatprep.subr.mxu0 0.0
    %2577 = vmatpush1.xpose.msra.mxu0 0.0
    %2578 = vmatprep.subr.mxu0 0.0
    %2579 = vmatpush1.xpose.msra.mxu0 0.0
    %v2580 = vand.u32 %v54, 4294901760
    %2581 = vmatprep.mubr.f32.mxu0 %v2580
    %v2582 = vand.u32 %v53, 4294901760
    %2583 = vmatmul.mubr.f32.gmra.mrb[0].mxu0 %v2582
    %v2584 = vpop.f32.mrb[0].mxu0
    %v2585 = vadd.f32 %v2503, %v2584
    %v2586 = vpop.f32.mrb[0].mxu0
    %2587 = vdwg.mxu0
    %v2588 = vand.u32 %v54, 4294901760
    %v2589 = vsub.f32 %v54, %v2588
    %2590 = vmatprep.subr.mxu0 %v2589
    %v2591 = vand.u32 %v53, 4294901760
    %v2592 = vsub.f32 %v53, %v2591
    %2593 = vmatpush1.xpose.msra.mxu0 %v2592
    %2594 = vmatprep.subr.mxu0 0.0
    %2595 = vmatpush1.xpose.msra.mxu0 0.0
    %2596 = vmatprep.subr.mxu0 0.0
    %2597 = vmatpush1.xpose.msra.mxu0 0.0
    %2598 = vmatprep.subr.mxu0 0.0
    %2599 = vmatpush1.xpose.msra.mxu0 0.0
    %2600 = vmatprep.subr.mxu0 0.0
    %2601 = vmatpush1.xpose.msra.mxu0 0.0
    %2602 = vmatprep.subr.mxu0 0.0
    %2603 = vmatpush1.xpose.msra.mxu0 0.0
    %2604 = vmatprep.subr.mxu0 0.0
    %2605 = vmatpush1.xpose.msra.mxu0 0.0
    %2606 = vmatprep.subr.mxu0 0.0
    %2607 = vmatpush1.xpose.msra.mxu0 0.0
    %2608 = vmatprep.subr.mxu0 0.0
    %2609 = vmatpush1.xpose.msra.mxu0 0.0
    %2610 = vmatprep.subr.mxu0 0.0
    %2611 = vmatpush1.xpose.msra.mxu0 0.0
    %2612 = vmatprep.subr.mxu0 0.0
    %2613 = vmatpush1.xpose.msra.mxu0 0.0
    %2614 = vmatprep.subr.mxu0 0.0
    %2615 = vmatpush1.xpose.msra.mxu0 0.0
    %2616 = vmatprep.subr.mxu0 0.0
    %2617 = vmatpush1.xpose.msra.mxu0 0.0
    %2618 = vmatprep.subr.mxu0 0.0
    %2619 = vmatpush1.xpose.msra.mxu0 0.0
    %2620 = vmatprep.subr.mxu0 0.0
    %2621 = vmatpush1.xpose.msra.mxu0 0.0
    %2622 = vmatprep.subr.mxu0 0.0
    %2623 = vmatpush1.xpose.msra.mxu0 0.0
    %2624 = vmatprep.subr.mxu0 0.0
    %2625 = vmatpush1.xpose.msra.mxu0 0.0
    %2626 = vmatprep.subr.mxu0 0.0
    %2627 = vmatpush1.xpose.msra.mxu0 0.0
    %2628 = vmatprep.subr.mxu0 0.0
    %2629 = vmatpush1.xpose.msra.mxu0 0.0
    %2630 = vmatprep.subr.mxu0 0.0
    %2631 = vmatpush1.xpose.msra.mxu0 0.0
    %2632 = vmatprep.subr.mxu0 0.0
    %2633 = vmatpush1.xpose.msra.mxu0 0.0
    %2634 = vmatprep.subr.mxu0 0.0
    %2635 = vmatpush1.xpose.msra.mxu0 0.0
    %2636 = vmatprep.subr.mxu0 0.0
    %2637 = vmatpush1.xpose.msra.mxu0 0.0
    %2638 = vmatprep.subr.mxu0 0.0
    %2639 = vmatpush1.xpose.msra.mxu0 0.0
    %2640 = vmatprep.subr.mxu0 0.0
    %2641 = vmatpush1.xpose.msra.mxu0 0.0
    %2642 = vmatprep.subr.mxu0 0.0
    %2643 = vmatpush1.xpose.msra.mxu0 0.0
    %2644 = vmatprep.subr.mxu0 0.0
    %2645 = vmatpush1.xpose.msra.mxu0 0.0
    %2646 = vmatprep.subr.mxu0 0.0
    %2647 = vmatpush1.xpose.msra.mxu0 0.0
    %2648 = vmatprep.subr.mxu0 0.0
    %2649 = vmatpush1.xpose.msra.mxu0 0.0
    %2650 = vmatprep.subr.mxu0 0.0
    %2651 = vmatpush1.xpose.msra.mxu0 0.0
    %2652 = vmatprep.subr.mxu0 0.0
    %2653 = vmatpush1.xpose.msra.mxu0 0.0
    %2654 = vmatprep.subr.mxu0 0.0
    %2655 = vmatpush1.xpose.msra.mxu0 0.0
    %v2656 = vand.u32 %v54, 4294901760
    %v2657 = vsub.f32 %v54, %v2656
    %2658 = vmatprep.mubr.f32.mxu0 %v2657
    %v2659 = vand.u32 %v53, 4294901760
    %v2660 = vsub.f32 %v53, %v2659
    %2661 = vmatmul.mubr.f32.gmra.mrb[0].mxu0 %v2660
    %v2662 = vpop.f32.mrb[0].mxu0
    %v2663 = vadd.f32 %v2585, %v2662
    %v2664 = vpop.f32.mrb[0].mxu0
    %2665 = vdwg.mxu0
    %v2666 = vand.u32 %v54, 4294901760
    %2667 = vmatprep.subr.mxu0 %v2666
    %v2668 = vand.u32 %v53, 4294901760
    %2669 = vmatpush1.xpose.msra.mxu0 %v2668
    %2670 = vmatprep.subr.mxu0 0.0
    %2671 = vmatpush1.xpose.msra.mxu0 0.0
    %2672 = vmatprep.subr.mxu0 0.0
    %2673 = vmatpush1.xpose.msra.mxu0 0.0
    %2674 = vmatprep.subr.mxu0 0.0
    %2675 = vmatpush1.xpose.msra.mxu0 0.0
    %2676 = vmatprep.subr.mxu0 0.0
    %2677 = vmatpush1.xpose.msra.mxu0 0.0
    %2678 = vmatprep.subr.mxu0 0.0
    %2679 = vmatpush1.xpose.msra.mxu0 0.0
    %2680 = vmatprep.subr.mxu0 0.0
    %2681 = vmatpush1.xpose.msra.mxu0 0.0
    %2682 = vmatprep.subr.mxu0 0.0
    %2683 = vmatpush1.xpose.msra.mxu0 0.0
    %2684 = vmatprep.subr.mxu0 0.0
    %2685 = vmatpush1.xpose.msra.mxu0 0.0
    %2686 = vmatprep.subr.mxu0 0.0
    %2687 = vmatpush1.xpose.msra.mxu0 0.0
    %2688 = vmatprep.subr.mxu0 0.0
    %2689 = vmatpush1.xpose.msra.mxu0 0.0
    %2690 = vmatprep.subr.mxu0 0.0
    %2691 = vmatpush1.xpose.msra.mxu0 0.0
    %2692 = vmatprep.subr.mxu0 0.0
    %2693 = vmatpush1.xpose.msra.mxu0 0.0
    %2694 = vmatprep.subr.mxu0 0.0
    %2695 = vmatpush1.xpose.msra.mxu0 0.0
    %2696 = vmatprep.subr.mxu0 0.0
    %2697 = vmatpush1.xpose.msra.mxu0 0.0
    %2698 = vmatprep.subr.mxu0 0.0
    %2699 = vmatpush1.xpose.msra.mxu0 0.0
    %2700 = vmatprep.subr.mxu0 0.0
    %2701 = vmatpush1.xpose.msra.mxu0 0.0
    %2702 = vmatprep.subr.mxu0 0.0
    %2703 = vmatpush1.xpose.msra.mxu0 0.0
    %2704 = vmatprep.subr.mxu0 0.0
    %2705 = vmatpush1.xpose.msra.mxu0 0.0
    %2706 = vmatprep.subr.mxu0 0.0
    %2707 = vmatpush1.xpose.msra.mxu0 0.0
    %2708 = vmatprep.subr.mxu0 0.0
    %2709 = vmatpush1.xpose.msra.mxu0 0.0
    %2710 = vmatprep.subr.mxu0 0.0
    %2711 = vmatpush1.xpose.msra.mxu0 0.0
    %2712 = vmatprep.subr.mxu0 0.0
    %2713 = vmatpush1.xpose.msra.mxu0 0.0
    %2714 = vmatprep.subr.mxu0 0.0
    %2715 = vmatpush1.xpose.msra.mxu0 0.0
    %2716 = vmatprep.subr.mxu0 0.0
    %2717 = vmatpush1.xpose.msra.mxu0 0.0
    %2718 = vmatprep.subr.mxu0 0.0
    %2719 = vmatpush1.xpose.msra.mxu0 0.0
    %2720 = vmatprep.subr.mxu0 0.0
    %2721 = vmatpush1.xpose.msra.mxu0 0.0
    %2722 = vmatprep.subr.mxu0 0.0
    %2723 = vmatpush1.xpose.msra.mxu0 0.0
    %2724 = vmatprep.subr.mxu0 0.0
    %2725 = vmatpush1.xpose.msra.mxu0 0.0
    %2726 = vmatprep.subr.mxu0 0.0
    %2727 = vmatpush1.xpose.msra.mxu0 0.0
    %2728 = vmatprep.subr.mxu0 0.0
    %2729 = vmatpush1.xpose.msra.mxu0 0.0
    %2730 = vmatprep.subr.mxu0 0.0
    %2731 = vmatpush1.xpose.msra.mxu0 0.0
    %v2732 = vand.u32 %v54, 4294901760
    %v2733 = vsub.f32 %v54, %v2732
    %v2734 = vand.u32 %v2733, 4294901760
    %2735 = vmatprep.mubr.f32.mxu0 %v2734
    %v2736 = vand.u32 %v53, 4294901760
    %v2737 = vsub.f32 %v53, %v2736
    %v2738 = vand.u32 %v2737, 4294901760
    %2739 = vmatmul.mubr.f32.gmra.mrb[0].mxu0 %v2738
    %v2740 = vpop.f32.mrb[0].mxu0
    %v2741 = vadd.f32 %v2663, %v2740
    %v2742 = vpop.f32.mrb[0].mxu0
    %2743 = vdwg.mxu0
    %v2744 = vand.u32 %v54, 4294901760
    %v2745 = vsub.f32 %v54, %v2744
    %v2746 = vand.u32 %v2745, 4294901760
    %2747 = vmatprep.subr.mxu0 %v2746
    %v2748 = vand.u32 %v53, 4294901760
    %v2749 = vsub.f32 %v53, %v2748
    %v2750 = vand.u32 %v2749, 4294901760
    %2751 = vmatpush1.xpose.msra.mxu0 %v2750
    %2752 = vmatprep.subr.mxu0 0.0
    %2753 = vmatpush1.xpose.msra.mxu0 0.0
    %2754 = vmatprep.subr.mxu0 0.0
    %2755 = vmatpush1.xpose.msra.mxu0 0.0
    %2756 = vmatprep.subr.mxu0 0.0
    %2757 = vmatpush1.xpose.msra.mxu0 0.0
    %2758 = vmatprep.subr.mxu0 0.0
    %2759 = vmatpush1.xpose.msra.mxu0 0.0
    %2760 = vmatprep.subr.mxu0 0.0
    %2761 = vmatpush1.xpose.msra.mxu0 0.0
    %2762 = vmatprep.subr.mxu0 0.0
    %2763 = vmatpush1.xpose.msra.mxu0 0.0
    %2764 = vmatprep.subr.mxu0 0.0
    %2765 = vmatpush1.xpose.msra.mxu0 0.0
    %2766 = vmatprep.subr.mxu0 0.0
    %2767 = vmatpush1.xpose.msra.mxu0 0.0
    %2768 = vmatprep.subr.mxu0 0.0
    %2769 = vmatpush1.xpose.msra.mxu0 0.0
    %2770 = vmatprep.subr.mxu0 0.0
    %2771 = vmatpush1.xpose.msra.mxu0 0.0
    %2772 = vmatprep.subr.mxu0 0.0
    %2773 = vmatpush1.xpose.msra.mxu0 0.0
    %2774 = vmatprep.subr.mxu0 0.0
    %2775 = vmatpush1.xpose.msra.mxu0 0.0
    %2776 = vmatprep.subr.mxu0 0.0
    %2777 = vmatpush1.xpose.msra.mxu0 0.0
    %2778 = vmatprep.subr.mxu0 0.0
    %2779 = vmatpush1.xpose.msra.mxu0 0.0
    %2780 = vmatprep.subr.mxu0 0.0
    %2781 = vmatpush1.xpose.msra.mxu0 0.0
    %2782 = vmatprep.subr.mxu0 0.0
    %2783 = vmatpush1.xpose.msra.mxu0 0.0
    %2784 = vmatprep.subr.mxu0 0.0
    %2785 = vmatpush1.xpose.msra.mxu0 0.0
    %2786 = vmatprep.subr.mxu0 0.0
    %2787 = vmatpush1.xpose.msra.mxu0 0.0
    %2788 = vmatprep.subr.mxu0 0.0
    %2789 = vmatpush1.xpose.msra.mxu0 0.0
    %2790 = vmatprep.subr.mxu0 0.0
    %2791 = vmatpush1.xpose.msra.mxu0 0.0
    %2792 = vmatprep.subr.mxu0 0.0
    %2793 = vmatpush1.xpose.msra.mxu0 0.0
    %2794 = vmatprep.subr.mxu0 0.0
    %2795 = vmatpush1.xpose.msra.mxu0 0.0
    %2796 = vmatprep.subr.mxu0 0.0
    %2797 = vmatpush1.xpose.msra.mxu0 0.0
    %2798 = vmatprep.subr.mxu0 0.0
    %2799 = vmatpush1.xpose.msra.mxu0 0.0
    %2800 = vmatprep.subr.mxu0 0.0
    %2801 = vmatpush1.xpose.msra.mxu0 0.0
    %2802 = vmatprep.subr.mxu0 0.0
    %2803 = vmatpush1.xpose.msra.mxu0 0.0
    %2804 = vmatprep.subr.mxu0 0.0
    %2805 = vmatpush1.xpose.msra.mxu0 0.0
    %2806 = vmatprep.subr.mxu0 0.0
    %2807 = vmatpush1.xpose.msra.mxu0 0.0
    %2808 = vmatprep.subr.mxu0 0.0
    %2809 = vmatpush1.xpose.msra.mxu0 0.0
    %2810 = vmatprep.subr.mxu0 0.0
    %2811 = vmatpush1.xpose.msra.mxu0 0.0
    %2812 = vmatprep.subr.mxu0 0.0
    %2813 = vmatpush1.xpose.msra.mxu0 0.0
    %v2814 = vand.u32 %v54, 4294901760
    %2815 = vmatprep.mubr.f32.mxu0 %v2814
    %v2816 = vand.u32 %v53, 4294901760
    %2817 = vmatmul.mubr.f32.gmra.mrb[0].mxu0 %v2816
    %v2818 = vpop.f32.mrb[0].mxu0
    %v2819 = vadd.f32 %v2741, %v2818
    %v2820 = vpop.f32.mrb[0].mxu0
    %2821 = vdwg.mxu0
    %v2822 = vand.u32 %v54, 4294901760
    %2823 = vmatprep.subr.mxu0 %v2822
    %v2824 = vand.u32 %v53, 4294901760
    %2825 = vmatpush1.xpose.msra.mxu0 %v2824
    %2826 = vmatprep.subr.mxu0 0.0
    %2827 = vmatpush1.xpose.msra.mxu0 0.0
    %2828 = vmatprep.subr.mxu0 0.0
    %2829 = vmatpush1.xpose.msra.mxu0 0.0
    %2830 = vmatprep.subr.mxu0 0.0
    %2831 = vmatpush1.xpose.msra.mxu0 0.0
    %2832 = vmatprep.subr.mxu0 0.0
    %2833 = vmatpush1.xpose.msra.mxu0 0.0
    %2834 = vmatprep.subr.mxu0 0.0
    %2835 = vmatpush1.xpose.msra.mxu0 0.0
    %2836 = vmatprep.subr.mxu0 0.0
    %2837 = vmatpush1.xpose.msra.mxu0 0.0
    %2838 = vmatprep.subr.mxu0 0.0
    %2839 = vmatpush1.xpose.msra.mxu0 0.0
    %2840 = vmatprep.subr.mxu0 0.0
    %2841 = vmatpush1.xpose.msra.mxu0 0.0
    %2842 = vmatprep.subr.mxu0 0.0
    %2843 = vmatpush1.xpose.msra.mxu0 0.0
    %2844 = vmatprep.subr.mxu0 0.0
    %2845 = vmatpush1.xpose.msra.mxu0 0.0
    %2846 = vmatprep.subr.mxu0 0.0
    %2847 = vmatpush1.xpose.msra.mxu0 0.0
    %2848 = vmatprep.subr.mxu0 0.0
    %2849 = vmatpush1.xpose.msra.mxu0 0.0
    %2850 = vmatprep.subr.mxu0 0.0
    %2851 = vmatpush1.xpose.msra.mxu0 0.0
    %2852 = vmatprep.subr.mxu0 0.0
    %2853 = vmatpush1.xpose.msra.mxu0 0.0
    %2854 = vmatprep.subr.mxu0 0.0
    %2855 = vmatpush1.xpose.msra.mxu0 0.0
    %2856 = vmatprep.subr.mxu0 0.0
    %2857 = vmatpush1.xpose.msra.mxu0 0.0
    %2858 = vmatprep.subr.mxu0 0.0
    %2859 = vmatpush1.xpose.msra.mxu0 0.0
    %2860 = vmatprep.subr.mxu0 0.0
    %2861 = vmatpush1.xpose.msra.mxu0 0.0
    %2862 = vmatprep.subr.mxu0 0.0
    %2863 = vmatpush1.xpose.msra.mxu0 0.0
    %2864 = vmatprep.subr.mxu0 0.0
    %2865 = vmatpush1.xpose.msra.mxu0 0.0
    %2866 = vmatprep.subr.mxu0 0.0
    %2867 = vmatpush1.xpose.msra.mxu0 0.0
    %2868 = vmatprep.subr.mxu0 0.0
    %2869 = vmatpush1.xpose.msra.mxu0 0.0
    %2870 = vmatprep.subr.mxu0 0.0
    %2871 = vmatpush1.xpose.msra.mxu0 0.0
    %2872 = vmatprep.subr.mxu0 0.0
    %2873 = vmatpush1.xpose.msra.mxu0 0.0
    %2874 = vmatprep.subr.mxu0 0.0
    %2875 = vmatpush1.xpose.msra.mxu0 0.0
    %2876 = vmatprep.subr.mxu0 0.0
    %2877 = vmatpush1.xpose.msra.mxu0 0.0
    %2878 = vmatprep.subr.mxu0 0.0
    %2879 = vmatpush1.xpose.msra.mxu0 0.0
    %2880 = vmatprep.subr.mxu0 0.0
    %2881 = vmatpush1.xpose.msra.mxu0 0.0
    %2882 = vmatprep.subr.mxu0 0.0
    %2883 = vmatpush1.xpose.msra.mxu0 0.0
    %2884 = vmatprep.subr.mxu0 0.0
    %2885 = vmatpush1.xpose.msra.mxu0 0.0
    %2886 = vmatprep.subr.mxu0 0.0
    %2887 = vmatpush1.xpose.msra.mxu0 0.0
    %v2888 = vand.u32 %v54, 4294901760
    %2889 = vmatprep.mubr.f32.mxu0 %v2888
    %v2890 = vand.u32 %v53, 4294901760
    %2891 = vmatmul.mubr.f32.gmra.mrb[0].mxu0 %v2890
    %v2892 = vpop.f32.mrb[0].mxu0
    %v2893 = vadd.f32 %v2819, %v2892
    %v2894 = vpop.f32.mrb[0].mxu0
    %2895 = vdwg.mxu0
    %v2896 = vand.u32 %v56, 4294901760
    %2897 = vmatprep.subr.mxu0 %v2896
    %v2898 = vand.u32 %v55, 4294901760
    %2899 = vmatpush1.xpose.msra.mxu0 %v2898
    %2900 = vmatprep.subr.mxu0 0.0
    %2901 = vmatpush1.xpose.msra.mxu0 0.0
    %2902 = vmatprep.subr.mxu0 0.0
    %2903 = vmatpush1.xpose.msra.mxu0 0.0
    %2904 = vmatprep.subr.mxu0 0.0
    %2905 = vmatpush1.xpose.msra.mxu0 0.0
    %2906 = vmatprep.subr.mxu0 0.0
    %2907 = vmatpush1.xpose.msra.mxu0 0.0
    %2908 = vmatprep.subr.mxu0 0.0
    %2909 = vmatpush1.xpose.msra.mxu0 0.0
    %2910 = vmatprep.subr.mxu0 0.0
    %2911 = vmatpush1.xpose.msra.mxu0 0.0
    %2912 = vmatprep.subr.mxu0 0.0
    %2913 = vmatpush1.xpose.msra.mxu0 0.0
    %2914 = vmatprep.subr.mxu0 0.0
    %2915 = vmatpush1.xpose.msra.mxu0 0.0
    %2916 = vmatprep.subr.mxu0 0.0
    %2917 = vmatpush1.xpose.msra.mxu0 0.0
    %2918 = vmatprep.subr.mxu0 0.0
    %2919 = vmatpush1.xpose.msra.mxu0 0.0
    %2920 = vmatprep.subr.mxu0 0.0
    %2921 = vmatpush1.xpose.msra.mxu0 0.0
    %2922 = vmatprep.subr.mxu0 0.0
    %2923 = vmatpush1.xpose.msra.mxu0 0.0
    %2924 = vmatprep.subr.mxu0 0.0
    %2925 = vmatpush1.xpose.msra.mxu0 0.0
    %2926 = vmatprep.subr.mxu0 0.0
    %2927 = vmatpush1.xpose.msra.mxu0 0.0
    %2928 = vmatprep.subr.mxu0 0.0
    %2929 = vmatpush1.xpose.msra.mxu0 0.0
    %2930 = vmatprep.subr.mxu0 0.0
    %2931 = vmatpush1.xpose.msra.mxu0 0.0
    %2932 = vmatprep.subr.mxu0 0.0
    %2933 = vmatpush1.xpose.msra.mxu0 0.0
    %2934 = vmatprep.subr.mxu0 0.0
    %2935 = vmatpush1.xpose.msra.mxu0 0.0
    %2936 = vmatprep.subr.mxu0 0.0
    %2937 = vmatpush1.xpose.msra.mxu0 0.0
    %2938 = vmatprep.subr.mxu0 0.0
    %2939 = vmatpush1.xpose.msra.mxu0 0.0
    %2940 = vmatprep.subr.mxu0 0.0
    %2941 = vmatpush1.xpose.msra.mxu0 0.0
    %2942 = vmatprep.subr.mxu0 0.0
    %2943 = vmatpush1.xpose.msra.mxu0 0.0
    %2944 = vmatprep.subr.mxu0 0.0
    %2945 = vmatpush1.xpose.msra.mxu0 0.0
    %2946 = vmatprep.subr.mxu0 0.0
    %2947 = vmatpush1.xpose.msra.mxu0 0.0
    %2948 = vmatprep.subr.mxu0 0.0
    %2949 = vmatpush1.xpose.msra.mxu0 0.0
    %2950 = vmatprep.subr.mxu0 0.0
    %2951 = vmatpush1.xpose.msra.mxu0 0.0
    %2952 = vmatprep.subr.mxu0 0.0
    %2953 = vmatpush1.xpose.msra.mxu0 0.0
    %2954 = vmatprep.subr.mxu0 0.0
    %2955 = vmatpush1.xpose.msra.mxu0 0.0
    %2956 = vmatprep.subr.mxu0 0.0
    %2957 = vmatpush1.xpose.msra.mxu0 0.0
    %2958 = vmatprep.subr.mxu0 0.0
    %2959 = vmatpush1.xpose.msra.mxu0 0.0
    %2960 = vmatprep.subr.mxu0 0.0
    %2961 = vmatpush1.xpose.msra.mxu0 0.0
    %v2962 = vand.u32 %v56, 4294901760
    %v2963 = vsub.f32 %v56, %v2962
    %v2964 = vand.u32 %v2963, 4294901760
    %v2965 = vsub.f32 %v2963, %v2964
    %v2966 = vand.u32 %v2965, 4294901760
    %2967 = vmatprep.mubr.f32.mxu0 %v2966
    %v2968 = vand.u32 %v55, 4294901760
    %v2969 = vsub.f32 %v55, %v2968
    %v2970 = vand.u32 %v2969, 4294901760
    %v2971 = vsub.f32 %v2969, %v2970
    %v2972 = vand.u32 %v2971, 4294901760
    %2973 = vmatmul.mubr.f32.gmra.mrb[0].mxu0 %v2972
    %v2974 = vpop.f32.mrb[0].mxu0
    %v2975 = vadd.f32 %v2893, %v2974
    %v2976 = vpop.f32.mrb[0].mxu0
    %2977 = vdwg.mxu0
    %v2978 = vand.u32 %v56, 4294901760
    %v2979 = vsub.f32 %v56, %v2978
    %v2980 = vand.u32 %v2979, 4294901760
    %v2981 = vsub.f32 %v2979, %v2980
    %v2982 = vand.u32 %v2981, 4294901760
    %2983 = vmatprep.subr.mxu0 %v2982
    %v2984 = vand.u32 %v55, 4294901760
    %v2985 = vsub.f32 %v55, %v2984
    %v2986 = vand.u32 %v2985, 4294901760
    %v2987 = vsub.f32 %v2985, %v2986
    %v2988 = vand.u32 %v2987, 4294901760
    %2989 = vmatpush1.xpose.msra.mxu0 %v2988
    %2990 = vmatprep.subr.mxu0 0.0
    %2991 = vmatpush1.xpose.msra.mxu0 0.0
    %2992 = vmatprep.subr.mxu0 0.0
    %2993 = vmatpush1.xpose.msra.mxu0 0.0
    %2994 = vmatprep.subr.mxu0 0.0
    %2995 = vmatpush1.xpose.msra.mxu0 0.0
    %2996 = vmatprep.subr.mxu0 0.0
    %2997 = vmatpush1.xpose.msra.mxu0 0.0
    %2998 = vmatprep.subr.mxu0 0.0
    %2999 = vmatpush1.xpose.msra.mxu0 0.0
    %3000 = vmatprep.subr.mxu0 0.0
    %3001 = vmatpush1.xpose.msra.mxu0 0.0
    %3002 = vmatprep.subr.mxu0 0.0
    %3003 = vmatpush1.xpose.msra.mxu0 0.0
    %3004 = vmatprep.subr.mxu0 0.0
    %3005 = vmatpush1.xpose.msra.mxu0 0.0
    %3006 = vmatprep.subr.mxu0 0.0
    %3007 = vmatpush1.xpose.msra.mxu0 0.0
    %3008 = vmatprep.subr.mxu0 0.0
    %3009 = vmatpush1.xpose.msra.mxu0 0.0
    %3010 = vmatprep.subr.mxu0 0.0
    %3011 = vmatpush1.xpose.msra.mxu0 0.0
    %3012 = vmatprep.subr.mxu0 0.0
    %3013 = vmatpush1.xpose.msra.mxu0 0.0
    %3014 = vmatprep.subr.mxu0 0.0
    %3015 = vmatpush1.xpose.msra.mxu0 0.0
    %3016 = vmatprep.subr.mxu0 0.0
    %3017 = vmatpush1.xpose.msra.mxu0 0.0
    %3018 = vmatprep.subr.mxu0 0.0
    %3019 = vmatpush1.xpose.msra.mxu0 0.0
    %3020 = vmatprep.subr.mxu0 0.0
    %3021 = vmatpush1.xpose.msra.mxu0 0.0
    %3022 = vmatprep.subr.mxu0 0.0
    %3023 = vmatpush1.xpose.msra.mxu0 0.0
    %3024 = vmatprep.subr.mxu0 0.0
    %3025 = vmatpush1.xpose.msra.mxu0 0.0
    %3026 = vmatprep.subr.mxu0 0.0
    %3027 = vmatpush1.xpose.msra.mxu0 0.0
    %3028 = vmatprep.subr.mxu0 0.0
    %3029 = vmatpush1.xpose.msra.mxu0 0.0
    %3030 = vmatprep.subr.mxu0 0.0
    %3031 = vmatpush1.xpose.msra.mxu0 0.0
    %3032 = vmatprep.subr.mxu0 0.0
    %3033 = vmatpush1.xpose.msra.mxu0 0.0
    %3034 = vmatprep.subr.mxu0 0.0
    %3035 = vmatpush1.xpose.msra.mxu0 0.0
    %3036 = vmatprep.subr.mxu0 0.0
    %3037 = vmatpush1.xpose.msra.mxu0 0.0
    %3038 = vmatprep.subr.mxu0 0.0
    %3039 = vmatpush1.xpose.msra.mxu0 0.0
    %3040 = vmatprep.subr.mxu0 0.0
    %3041 = vmatpush1.xpose.msra.mxu0 0.0
    %3042 = vmatprep.subr.mxu0 0.0
    %3043 = vmatpush1.xpose.msra.mxu0 0.0
    %3044 = vmatprep.subr.mxu0 0.0
    %3045 = vmatpush1.xpose.msra.mxu0 0.0
    %3046 = vmatprep.subr.mxu0 0.0
    %3047 = vmatpush1.xpose.msra.mxu0 0.0
    %3048 = vmatprep.subr.mxu0 0.0
    %3049 = vmatpush1.xpose.msra.mxu0 0.0
    %3050 = vmatprep.subr.mxu0 0.0
    %3051 = vmatpush1.xpose.msra.mxu0 0.0
    %v3052 = vand.u32 %v56, 4294901760
    %3053 = vmatprep.mubr.f32.mxu0 %v3052
    %v3054 = vand.u32 %v55, 4294901760
    %3055 = vmatmul.mubr.f32.gmra.mrb[0].mxu0 %v3054
    %v3056 = vpop.f32.mrb[0].mxu0
    %v3057 = vadd.f32 %v2975, %v3056
    %v3058 = vpop.f32.mrb[0].mxu0
    %3059 = vdwg.mxu0
    %v3060 = vand.u32 %v56, 4294901760
    %v3061 = vsub.f32 %v56, %v3060
    %3062 = vmatprep.subr.mxu0 %v3061
    %v3063 = vand.u32 %v55, 4294901760
    %v3064 = vsub.f32 %v55, %v3063
    %3065 = vmatpush1.xpose.msra.mxu0 %v3064
    %3066 = vmatprep.subr.mxu0 0.0
    %3067 = vmatpush1.xpose.msra.mxu0 0.0
    %3068 = vmatprep.subr.mxu0 0.0
    %3069 = vmatpush1.xpose.msra.mxu0 0.0
    %3070 = vmatprep.subr.mxu0 0.0
    %3071 = vmatpush1.xpose.msra.mxu0 0.0
    %3072 = vmatprep.subr.mxu0 0.0
    %3073 = vmatpush1.xpose.msra.mxu0 0.0
    %3074 = vmatprep.subr.mxu0 0.0
    %3075 = vmatpush1.xpose.msra.mxu0 0.0
    %3076 = vmatprep.subr.mxu0 0.0
    %3077 = vmatpush1.xpose.msra.mxu0 0.0
    %3078 = vmatprep.subr.mxu0 0.0
    %3079 = vmatpush1.xpose.msra.mxu0 0.0
    %3080 = vmatprep.subr.mxu0 0.0
    %3081 = vmatpush1.xpose.msra.mxu0 0.0
    %3082 = vmatprep.subr.mxu0 0.0
    %3083 = vmatpush1.xpose.msra.mxu0 0.0
    %3084 = vmatprep.subr.mxu0 0.0
    %3085 = vmatpush1.xpose.msra.mxu0 0.0
    %3086 = vmatprep.subr.mxu0 0.0
    %3087 = vmatpush1.xpose.msra.mxu0 0.0
    %3088 = vmatprep.subr.mxu0 0.0
    %3089 = vmatpush1.xpose.msra.mxu0 0.0
    %3090 = vmatprep.subr.mxu0 0.0
    %3091 = vmatpush1.xpose.msra.mxu0 0.0
    %3092 = vmatprep.subr.mxu0 0.0
    %3093 = vmatpush1.xpose.msra.mxu0 0.0
    %3094 = vmatprep.subr.mxu0 0.0
    %3095 = vmatpush1.xpose.msra.mxu0 0.0
    %3096 = vmatprep.subr.mxu0 0.0
    %3097 = vmatpush1.xpose.msra.mxu0 0.0
    %3098 = vmatprep.subr.mxu0 0.0
    %3099 = vmatpush1.xpose.msra.mxu0 0.0
    %3100 = vmatprep.subr.mxu0 0.0
    %3101 = vmatpush1.xpose.msra.mxu0 0.0
    %3102 = vmatprep.subr.mxu0 0.0
    %3103 = vmatpush1.xpose.msra.mxu0 0.0
    %3104 = vmatprep.subr.mxu0 0.0
    %3105 = vmatpush1.xpose.msra.mxu0 0.0
    %3106 = vmatprep.subr.mxu0 0.0
    %3107 = vmatpush1.xpose.msra.mxu0 0.0
    %3108 = vmatprep.subr.mxu0 0.0
    %3109 = vmatpush1.xpose.msra.mxu0 0.0
    %3110 = vmatprep.subr.mxu0 0.0
    %3111 = vmatpush1.xpose.msra.mxu0 0.0
    %3112 = vmatprep.subr.mxu0 0.0
    %3113 = vmatpush1.xpose.msra.mxu0 0.0
    %3114 = vmatprep.subr.mxu0 0.0
    %3115 = vmatpush1.xpose.msra.mxu0 0.0
    %3116 = vmatprep.subr.mxu0 0.0
    %3117 = vmatpush1.xpose.msra.mxu0 0.0
    %3118 = vmatprep.subr.mxu0 0.0
    %3119 = vmatpush1.xpose.msra.mxu0 0.0
    %3120 = vmatprep.subr.mxu0 0.0
    %3121 = vmatpush1.xpose.msra.mxu0 0.0
    %3122 = vmatprep.subr.mxu0 0.0
    %3123 = vmatpush1.xpose.msra.mxu0 0.0
    %3124 = vmatprep.subr.mxu0 0.0
    %3125 = vmatpush1.xpose.msra.mxu0 0.0
    %3126 = vmatprep.subr.mxu0 0.0
    %3127 = vmatpush1.xpose.msra.mxu0 0.0
    %v3128 = vand.u32 %v56, 4294901760
    %v3129 = vsub.f32 %v56, %v3128
    %3130 = vmatprep.mubr.f32.mxu0 %v3129
    %v3131 = vand.u32 %v55, 4294901760
    %v3132 = vsub.f32 %v55, %v3131
    %3133 = vmatmul.mubr.f32.gmra.mrb[0].mxu0 %v3132
    %v3134 = vpop.f32.mrb[0].mxu0
    %v3135 = vadd.f32 %v3057, %v3134
    %v3136 = vpop.f32.mrb[0].mxu0
    %3137 = vdwg.mxu0
    %v3138 = vand.u32 %v56, 4294901760
    %3139 = vmatprep.subr.mxu0 %v3138
    %v3140 = vand.u32 %v55, 4294901760
    %3141 = vmatpush1.xpose.msra.mxu0 %v3140
    %3142 = vmatprep.subr.mxu0 0.0
    %3143 = vmatpush1.xpose.msra.mxu0 0.0
    %3144 = vmatprep.subr.mxu0 0.0
    %3145 = vmatpush1.xpose.msra.mxu0 0.0
    %3146 = vmatprep.subr.mxu0 0.0
    %3147 = vmatpush1.xpose.msra.mxu0 0.0
    %3148 = vmatprep.subr.mxu0 0.0
    %3149 = vmatpush1.xpose.msra.mxu0 0.0
    %3150 = vmatprep.subr.mxu0 0.0
    %3151 = vmatpush1.xpose.msra.mxu0 0.0
    %3152 = vmatprep.subr.mxu0 0.0
    %3153 = vmatpush1.xpose.msra.mxu0 0.0
    %3154 = vmatprep.subr.mxu0 0.0
    %3155 = vmatpush1.xpose.msra.mxu0 0.0
    %3156 = vmatprep.subr.mxu0 0.0
    %3157 = vmatpush1.xpose.msra.mxu0 0.0
    %3158 = vmatprep.subr.mxu0 0.0
    %3159 = vmatpush1.xpose.msra.mxu0 0.0
    %3160 = vmatprep.subr.mxu0 0.0
    %3161 = vmatpush1.xpose.msra.mxu0 0.0
    %3162 = vmatprep.subr.mxu0 0.0
    %3163 = vmatpush1.xpose.msra.mxu0 0.0
    %3164 = vmatprep.subr.mxu0 0.0
    %3165 = vmatpush1.xpose.msra.mxu0 0.0
    %3166 = vmatprep.subr.mxu0 0.0
    %3167 = vmatpush1.xpose.msra.mxu0 0.0
    %3168 = vmatprep.subr.mxu0 0.0
    %3169 = vmatpush1.xpose.msra.mxu0 0.0
    %3170 = vmatprep.subr.mxu0 0.0
    %3171 = vmatpush1.xpose.msra.mxu0 0.0
    %3172 = vmatprep.subr.mxu0 0.0
    %3173 = vmatpush1.xpose.msra.mxu0 0.0
    %3174 = vmatprep.subr.mxu0 0.0
    %3175 = vmatpush1.xpose.msra.mxu0 0.0
    %3176 = vmatprep.subr.mxu0 0.0
    %3177 = vmatpush1.xpose.msra.mxu0 0.0
    %3178 = vmatprep.subr.mxu0 0.0
    %3179 = vmatpush1.xpose.msra.mxu0 0.0
    %3180 = vmatprep.subr.mxu0 0.0
    %3181 = vmatpush1.xpose.msra.mxu0 0.0
    %3182 = vmatprep.subr.mxu0 0.0
    %3183 = vmatpush1.xpose.msra.mxu0 0.0
    %3184 = vmatprep.subr.mxu0 0.0
    %3185 = vmatpush1.xpose.msra.mxu0 0.0
    %3186 = vmatprep.subr.mxu0 0.0
    %3187 = vmatpush1.xpose.msra.mxu0 0.0
    %3188 = vmatprep.subr.mxu0 0.0
    %3189 = vmatpush1.xpose.msra.mxu0 0.0
    %3190 = vmatprep.subr.mxu0 0.0
    %3191 = vmatpush1.xpose.msra.mxu0 0.0
    %3192 = vmatprep.subr.mxu0 0.0
    %3193 = vmatpush1.xpose.msra.mxu0 0.0
    %3194 = vmatprep.subr.mxu0 0.0
    %3195 = vmatpush1.xpose.msra.mxu0 0.0
    %3196 = vmatprep.subr.mxu0 0.0
    %3197 = vmatpush1.xpose.msra.mxu0 0.0
    %3198 = vmatprep.subr.mxu0 0.0
    %3199 = vmatpush1.xpose.msra.mxu0 0.0
    %3200 = vmatprep.subr.mxu0 0.0
    %3201 = vmatpush1.xpose.msra.mxu0 0.0
    %3202 = vmatprep.subr.mxu0 0.0
    %3203 = vmatpush1.xpose.msra.mxu0 0.0
    %v3204 = vand.u32 %v56, 4294901760
    %v3205 = vsub.f32 %v56, %v3204
    %v3206 = vand.u32 %v3205, 4294901760
    %3207 = vmatprep.mubr.f32.mxu0 %v3206
    %v3208 = vand.u32 %v55, 4294901760
    %v3209 = vsub.f32 %v55, %v3208
    %v3210 = vand.u32 %v3209, 4294901760
    %3211 = vmatmul.mubr.f32.gmra.mrb[0].mxu0 %v3210
    %v3212 = vpop.f32.mrb[0].mxu0
    %v3213 = vadd.f32 %v3135, %v3212
    %v3214 = vpop.f32.mrb[0].mxu0
    %3215 = vdwg.mxu0
    %v3216 = vand.u32 %v56, 4294901760
    %v3217 = vsub.f32 %v56, %v3216
    %v3218 = vand.u32 %v3217, 4294901760
    %3219 = vmatprep.subr.mxu0 %v3218
    %v3220 = vand.u32 %v55, 4294901760
    %v3221 = vsub.f32 %v55, %v3220
    %v3222 = vand.u32 %v3221, 4294901760
    %3223 = vmatpush1.xpose.msra.mxu0 %v3222
    %3224 = vmatprep.subr.mxu0 0.0
    %3225 = vmatpush1.xpose.msra.mxu0 0.0
    %3226 = vmatprep.subr.mxu0 0.0
    %3227 = vmatpush1.xpose.msra.mxu0 0.0
    %3228 = vmatprep.subr.mxu0 0.0
    %3229 = vmatpush1.xpose.msra.mxu0 0.0
    %3230 = vmatprep.subr.mxu0 0.0
    %3231 = vmatpush1.xpose.msra.mxu0 0.0
    %3232 = vmatprep.subr.mxu0 0.0
    %3233 = vmatpush1.xpose.msra.mxu0 0.0
    %3234 = vmatprep.subr.mxu0 0.0
    %3235 = vmatpush1.xpose.msra.mxu0 0.0
    %3236 = vmatprep.subr.mxu0 0.0
    %3237 = vmatpush1.xpose.msra.mxu0 0.0
    %3238 = vmatprep.subr.mxu0 0.0
    %3239 = vmatpush1.xpose.msra.mxu0 0.0
    %3240 = vmatprep.subr.mxu0 0.0
    %3241 = vmatpush1.xpose.msra.mxu0 0.0
    %3242 = vmatprep.subr.mxu0 0.0
    %3243 = vmatpush1.xpose.msra.mxu0 0.0
    %3244 = vmatprep.subr.mxu0 0.0
    %3245 = vmatpush1.xpose.msra.mxu0 0.0
    %3246 = vmatprep.subr.mxu0 0.0
    %3247 = vmatpush1.xpose.msra.mxu0 0.0
    %3248 = vmatprep.subr.mxu0 0.0
    %3249 = vmatpush1.xpose.msra.mxu0 0.0
    %3250 = vmatprep.subr.mxu0 0.0
    %3251 = vmatpush1.xpose.msra.mxu0 0.0
    %3252 = vmatprep.subr.mxu0 0.0
    %3253 = vmatpush1.xpose.msra.mxu0 0.0
    %3254 = vmatprep.subr.mxu0 0.0
    %3255 = vmatpush1.xpose.msra.mxu0 0.0
    %3256 = vmatprep.subr.mxu0 0.0
    %3257 = vmatpush1.xpose.msra.mxu0 0.0
    %3258 = vmatprep.subr.mxu0 0.0
    %3259 = vmatpush1.xpose.msra.mxu0 0.0
    %3260 = vmatprep.subr.mxu0 0.0
    %3261 = vmatpush1.xpose.msra.mxu0 0.0
    %3262 = vmatprep.subr.mxu0 0.0
    %3263 = vmatpush1.xpose.msra.mxu0 0.0
    %3264 = vmatprep.subr.mxu0 0.0
    %3265 = vmatpush1.xpose.msra.mxu0 0.0
    %3266 = vmatprep.subr.mxu0 0.0
    %3267 = vmatpush1.xpose.msra.mxu0 0.0
    %3268 = vmatprep.subr.mxu0 0.0
    %3269 = vmatpush1.xpose.msra.mxu0 0.0
    %3270 = vmatprep.subr.mxu0 0.0
    %3271 = vmatpush1.xpose.msra.mxu0 0.0
    %3272 = vmatprep.subr.mxu0 0.0
    %3273 = vmatpush1.xpose.msra.mxu0 0.0
    %3274 = vmatprep.subr.mxu0 0.0
    %3275 = vmatpush1.xpose.msra.mxu0 0.0
    %3276 = vmatprep.subr.mxu0 0.0
    %3277 = vmatpush1.xpose.msra.mxu0 0.0
    %3278 = vmatprep.subr.mxu0 0.0
    %3279 = vmatpush1.xpose.msra.mxu0 0.0
    %3280 = vmatprep.subr.mxu0 0.0
    %3281 = vmatpush1.xpose.msra.mxu0 0.0
    %3282 = vmatprep.subr.mxu0 0.0
    %3283 = vmatpush1.xpose.msra.mxu0 0.0
    %3284 = vmatprep.subr.mxu0 0.0
    %3285 = vmatpush1.xpose.msra.mxu0 0.0
    %v3286 = vand.u32 %v56, 4294901760
    %3287 = vmatprep.mubr.f32.mxu0 %v3286
    %v3288 = vand.u32 %v55, 4294901760
    %3289 = vmatmul.mubr.f32.gmra.mrb[0].mxu0 %v3288
    %v3290 = vpop.f32.mrb[0].mxu0
    %v3291 = vadd.f32 %v3213, %v3290
    %v3292 = vpop.f32.mrb[0].mxu0
    %3293 = vdwg.mxu0
    %v3294 = vand.u32 %v56, 4294901760
    %3295 = vmatprep.subr.mxu0 %v3294
    %v3296 = vand.u32 %v55, 4294901760
    %3297 = vmatpush1.xpose.msra.mxu0 %v3296
    %3298 = vmatprep.subr.mxu0 0.0
    %3299 = vmatpush1.xpose.msra.mxu0 0.0
    %3300 = vmatprep.subr.mxu0 0.0
    %3301 = vmatpush1.xpose.msra.mxu0 0.0
    %3302 = vmatprep.subr.mxu0 0.0
    %3303 = vmatpush1.xpose.msra.mxu0 0.0
    %3304 = vmatprep.subr.mxu0 0.0
    %3305 = vmatpush1.xpose.msra.mxu0 0.0
    %3306 = vmatprep.subr.mxu0 0.0
    %3307 = vmatpush1.xpose.msra.mxu0 0.0
    %3308 = vmatprep.subr.mxu0 0.0
    %3309 = vmatpush1.xpose.msra.mxu0 0.0
    %3310 = vmatprep.subr.mxu0 0.0
    %3311 = vmatpush1.xpose.msra.mxu0 0.0
    %3312 = vmatprep.subr.mxu0 0.0
    %3313 = vmatpush1.xpose.msra.mxu0 0.0
    %3314 = vmatprep.subr.mxu0 0.0
    %3315 = vmatpush1.xpose.msra.mxu0 0.0
    %3316 = vmatprep.subr.mxu0 0.0
    %3317 = vmatpush1.xpose.msra.mxu0 0.0
    %3318 = vmatprep.subr.mxu0 0.0
    %3319 = vmatpush1.xpose.msra.mxu0 0.0
    %3320 = vmatprep.subr.mxu0 0.0
    %3321 = vmatpush1.xpose.msra.mxu0 0.0
    %3322 = vmatprep.subr.mxu0 0.0
    %3323 = vmatpush1.xpose.msra.mxu0 0.0
    %3324 = vmatprep.subr.mxu0 0.0
    %3325 = vmatpush1.xpose.msra.mxu0 0.0
    %3326 = vmatprep.subr.mxu0 0.0
    %3327 = vmatpush1.xpose.msra.mxu0 0.0
    %3328 = vmatprep.subr.mxu0 0.0
    %3329 = vmatpush1.xpose.msra.mxu0 0.0
    %3330 = vmatprep.subr.mxu0 0.0
    %3331 = vmatpush1.xpose.msra.mxu0 0.0
    %3332 = vmatprep.subr.mxu0 0.0
    %3333 = vmatpush1.xpose.msra.mxu0 0.0
    %3334 = vmatprep.subr.mxu0 0.0
    %3335 = vmatpush1.xpose.msra.mxu0 0.0
    %3336 = vmatprep.subr.mxu0 0.0
    %3337 = vmatpush1.xpose.msra.mxu0 0.0
    %3338 = vmatprep.subr.mxu0 0.0
    %3339 = vmatpush1.xpose.msra.mxu0 0.0
    %3340 = vmatprep.subr.mxu0 0.0
    %3341 = vmatpush1.xpose.msra.mxu0 0.0
    %3342 = vmatprep.subr.mxu0 0.0
    %3343 = vmatpush1.xpose.msra.mxu0 0.0
    %3344 = vmatprep.subr.mxu0 0.0
    %3345 = vmatpush1.xpose.msra.mxu0 0.0
    %3346 = vmatprep.subr.mxu0 0.0
    %3347 = vmatpush1.xpose.msra.mxu0 0.0
    %3348 = vmatprep.subr.mxu0 0.0
    %3349 = vmatpush1.xpose.msra.mxu0 0.0
    %3350 = vmatprep.subr.mxu0 0.0
    %3351 = vmatpush1.xpose.msra.mxu0 0.0
    %3352 = vmatprep.subr.mxu0 0.0
    %3353 = vmatpush1.xpose.msra.mxu0 0.0
    %3354 = vmatprep.subr.mxu0 0.0
    %3355 = vmatpush1.xpose.msra.mxu0 0.0
    %3356 = vmatprep.subr.mxu0 0.0
    %3357 = vmatpush1.xpose.msra.mxu0 0.0
    %3358 = vmatprep.subr.mxu0 0.0
    %3359 = vmatpush1.xpose.msra.mxu0 0.0
    %v3360 = vand.u32 %v56, 4294901760
    %3361 = vmatprep.mubr.f32.mxu0 %v3360
    %v3362 = vand.u32 %v55, 4294901760
    %3363 = vmatmul.mubr.f32.gmra.mrb[0].mxu0 %v3362
    %v3364 = vpop.f32.mrb[0].mxu0
    %v3365 = vadd.f32 %v3291, %v3364
    %v3366 = vpop.f32.mrb[0].mxu0
    %3367 = vdwg.mxu0
    %v3368 = vand.u32 %v58, 4294901760
    %3369 = vmatprep.subr.mxu0 %v3368
    %v3370 = vand.u32 %v57, 4294901760
    %3371 = vmatpush1.xpose.msra.mxu0 %v3370
    %3372 = vmatprep.subr.mxu0 0.0
    %3373 = vmatpush1.xpose.msra.mxu0 0.0
    %3374 = vmatprep.subr.mxu0 0.0
    %3375 = vmatpush1.xpose.msra.mxu0 0.0
    %3376 = vmatprep.subr.mxu0 0.0
    %3377 = vmatpush1.xpose.msra.mxu0 0.0
    %3378 = vmatprep.subr.mxu0 0.0
    %3379 = vmatpush1.xpose.msra.mxu0 0.0
    %3380 = vmatprep.subr.mxu0 0.0
    %3381 = vmatpush1.xpose.msra.mxu0 0.0
    %3382 = vmatprep.subr.mxu0 0.0
    %3383 = vmatpush1.xpose.msra.mxu0 0.0
    %3384 = vmatprep.subr.mxu0 0.0
    %3385 = vmatpush1.xpose.msra.mxu0 0.0
    %3386 = vmatprep.subr.mxu0 0.0
    %3387 = vmatpush1.xpose.msra.mxu0 0.0
    %3388 = vmatprep.subr.mxu0 0.0
    %3389 = vmatpush1.xpose.msra.mxu0 0.0
    %3390 = vmatprep.subr.mxu0 0.0
    %3391 = vmatpush1.xpose.msra.mxu0 0.0
    %3392 = vmatprep.subr.mxu0 0.0
    %3393 = vmatpush1.xpose.msra.mxu0 0.0
    %3394 = vmatprep.subr.mxu0 0.0
    %3395 = vmatpush1.xpose.msra.mxu0 0.0
    %3396 = vmatprep.subr.mxu0 0.0
    %3397 = vmatpush1.xpose.msra.mxu0 0.0
    %3398 = vmatprep.subr.mxu0 0.0
    %3399 = vmatpush1.xpose.msra.mxu0 0.0
    %3400 = vmatprep.subr.mxu0 0.0
    %3401 = vmatpush1.xpose.msra.mxu0 0.0
    %3402 = vmatprep.subr.mxu0 0.0
    %3403 = vmatpush1.xpose.msra.mxu0 0.0
    %3404 = vmatprep.subr.mxu0 0.0
    %3405 = vmatpush1.xpose.msra.mxu0 0.0
    %3406 = vmatprep.subr.mxu0 0.0
    %3407 = vmatpush1.xpose.msra.mxu0 0.0
    %3408 = vmatprep.subr.mxu0 0.0
    %3409 = vmatpush1.xpose.msra.mxu0 0.0
    %3410 = vmatprep.subr.mxu0 0.0
    %3411 = vmatpush1.xpose.msra.mxu0 0.0
    %3412 = vmatprep.subr.mxu0 0.0
    %3413 = vmatpush1.xpose.msra.mxu0 0.0
    %3414 = vmatprep.subr.mxu0 0.0
    %3415 = vmatpush1.xpose.msra.mxu0 0.0
    %3416 = vmatprep.subr.mxu0 0.0
    %3417 = vmatpush1.xpose.msra.mxu0 0.0
    %3418 = vmatprep.subr.mxu0 0.0
    %3419 = vmatpush1.xpose.msra.mxu0 0.0
    %3420 = vmatprep.subr.mxu0 0.0
    %3421 = vmatpush1.xpose.msra.mxu0 0.0
    %3422 = vmatprep.subr.mxu0 0.0
    %3423 = vmatpush1.xpose.msra.mxu0 0.0
    %3424 = vmatprep.subr.mxu0 0.0
    %3425 = vmatpush1.xpose.msra.mxu0 0.0
    %3426 = vmatprep.subr.mxu0 0.0
    %3427 = vmatpush1.xpose.msra.mxu0 0.0
    %3428 = vmatprep.subr.mxu0 0.0
    %3429 = vmatpush1.xpose.msra.mxu0 0.0
    %3430 = vmatprep.subr.mxu0 0.0
    %3431 = vmatpush1.xpose.msra.mxu0 0.0
    %3432 = vmatprep.subr.mxu0 0.0
    %3433 = vmatpush1.xpose.msra.mxu0 0.0
    %v3434 = vand.u32 %v58, 4294901760
    %v3435 = vsub.f32 %v58, %v3434
    %v3436 = vand.u32 %v3435, 4294901760
    %v3437 = vsub.f32 %v3435, %v3436
    %v3438 = vand.u32 %v3437, 4294901760
    %3439 = vmatprep.mubr.f32.mxu0 %v3438
    %v3440 = vand.u32 %v57, 4294901760
    %v3441 = vsub.f32 %v57, %v3440
    %v3442 = vand.u32 %v3441, 4294901760
    %v3443 = vsub.f32 %v3441, %v3442
    %v3444 = vand.u32 %v3443, 4294901760
    %3445 = vmatmul.mubr.f32.gmra.mrb[0].mxu0 %v3444
    %v3446 = vpop.f32.mrb[0].mxu0
    %v3447 = vadd.f32 %v3365, %v3446
    %v3448 = vpop.f32.mrb[0].mxu0
    %3449 = vdwg.mxu0
    %v3450 = vand.u32 %v58, 4294901760
    %v3451 = vsub.f32 %v58, %v3450
    %v3452 = vand.u32 %v3451, 4294901760
    %v3453 = vsub.f32 %v3451, %v3452
    %v3454 = vand.u32 %v3453, 4294901760
    %3455 = vmatprep.subr.mxu0 %v3454
    %v3456 = vand.u32 %v57, 4294901760
    %v3457 = vsub.f32 %v57, %v3456
    %v3458 = vand.u32 %v3457, 4294901760
    %v3459 = vsub.f32 %v3457, %v3458
    %v3460 = vand.u32 %v3459, 4294901760
    %3461 = vmatpush1.xpose.msra.mxu0 %v3460
    %3462 = vmatprep.subr.mxu0 0.0
    %3463 = vmatpush1.xpose.msra.mxu0 0.0
    %3464 = vmatprep.subr.mxu0 0.0
    %3465 = vmatpush1.xpose.msra.mxu0 0.0
    %3466 = vmatprep.subr.mxu0 0.0
    %3467 = vmatpush1.xpose.msra.mxu0 0.0
    %3468 = vmatprep.subr.mxu0 0.0
    %3469 = vmatpush1.xpose.msra.mxu0 0.0
    %3470 = vmatprep.subr.mxu0 0.0
    %3471 = vmatpush1.xpose.msra.mxu0 0.0
    %3472 = vmatprep.subr.mxu0 0.0
    %3473 = vmatpush1.xpose.msra.mxu0 0.0
    %3474 = vmatprep.subr.mxu0 0.0
    %3475 = vmatpush1.xpose.msra.mxu0 0.0
    %3476 = vmatprep.subr.mxu0 0.0
    %3477 = vmatpush1.xpose.msra.mxu0 0.0
    %3478 = vmatprep.subr.mxu0 0.0
    %3479 = vmatpush1.xpose.msra.mxu0 0.0
    %3480 = vmatprep.subr.mxu0 0.0
    %3481 = vmatpush1.xpose.msra.mxu0 0.0
    %3482 = vmatprep.subr.mxu0 0.0
    %3483 = vmatpush1.xpose.msra.mxu0 0.0
    %3484 = vmatprep.subr.mxu0 0.0
    %3485 = vmatpush1.xpose.msra.mxu0 0.0
    %3486 = vmatprep.subr.mxu0 0.0
    %3487 = vmatpush1.xpose.msra.mxu0 0.0
    %3488 = vmatprep.subr.mxu0 0.0
    %3489 = vmatpush1.xpose.msra.mxu0 0.0
    %3490 = vmatprep.subr.mxu0 0.0
    %3491 = vmatpush1.xpose.msra.mxu0 0.0
    %3492 = vmatprep.subr.mxu0 0.0
    %3493 = vmatpush1.xpose.msra.mxu0 0.0
    %3494 = vmatprep.subr.mxu0 0.0
    %3495 = vmatpush1.xpose.msra.mxu0 0.0
    %3496 = vmatprep.subr.mxu0 0.0
    %3497 = vmatpush1.xpose.msra.mxu0 0.0
    %3498 = vmatprep.subr.mxu0 0.0
    %3499 = vmatpush1.xpose.msra.mxu0 0.0
    %3500 = vmatprep.subr.mxu0 0.0
    %3501 = vmatpush1.xpose.msra.mxu0 0.0
    %3502 = vmatprep.subr.mxu0 0.0
    %3503 = vmatpush1.xpose.msra.mxu0 0.0
    %3504 = vmatprep.subr.mxu0 0.0
    %3505 = vmatpush1.xpose.msra.mxu0 0.0
    %3506 = vmatprep.subr.mxu0 0.0
    %3507 = vmatpush1.xpose.msra.mxu0 0.0
    %3508 = vmatprep.subr.mxu0 0.0
    %3509 = vmatpush1.xpose.msra.mxu0 0.0
    %3510 = vmatprep.subr.mxu0 0.0
    %3511 = vmatpush1.xpose.msra.mxu0 0.0
    %3512 = vmatprep.subr.mxu0 0.0
    %3513 = vmatpush1.xpose.msra.mxu0 0.0
    %3514 = vmatprep.subr.mxu0 0.0
    %3515 = vmatpush1.xpose.msra.mxu0 0.0
    %3516 = vmatprep.subr.mxu0 0.0
    %3517 = vmatpush1.xpose.msra.mxu0 0.0
    %3518 = vmatprep.subr.mxu0 0.0
    %3519 = vmatpush1.xpose.msra.mxu0 0.0
    %3520 = vmatprep.subr.mxu0 0.0
    %3521 = vmatpush1.xpose.msra.mxu0 0.0
    %3522 = vmatprep.subr.mxu0 0.0
    %3523 = vmatpush1.xpose.msra.mxu0 0.0
    %v3524 = vand.u32 %v58, 4294901760
    %3525 = vmatprep.mubr.f32.mxu0 %v3524
    %v3526 = vand.u32 %v57, 4294901760
    %3527 = vmatmul.mubr.f32.gmra.mrb[0].mxu0 %v3526
    %v3528 = vpop.f32.mrb[0].mxu0
    %v3529 = vadd.f32 %v3447, %v3528
    %v3530 = vpop.f32.mrb[0].mxu0
    %3531 = vdwg.mxu0
    %v3532 = vand.u32 %v58, 4294901760
    %v3533 = vsub.f32 %v58, %v3532
    %3534 = vmatprep.subr.mxu0 %v3533
    %v3535 = vand.u32 %v57, 4294901760
    %v3536 = vsub.f32 %v57, %v3535
    %3537 = vmatpush1.xpose.msra.mxu0 %v3536
    %3538 = vmatprep.subr.mxu0 0.0
    %3539 = vmatpush1.xpose.msra.mxu0 0.0
    %3540 = vmatprep.subr.mxu0 0.0
    %3541 = vmatpush1.xpose.msra.mxu0 0.0
    %3542 = vmatprep.subr.mxu0 0.0
    %3543 = vmatpush1.xpose.msra.mxu0 0.0
    %3544 = vmatprep.subr.mxu0 0.0
    %3545 = vmatpush1.xpose.msra.mxu0 0.0
    %3546 = vmatprep.subr.mxu0 0.0
    %3547 = vmatpush1.xpose.msra.mxu0 0.0
    %3548 = vmatprep.subr.mxu0 0.0
    %3549 = vmatpush1.xpose.msra.mxu0 0.0
    %3550 = vmatprep.subr.mxu0 0.0
    %3551 = vmatpush1.xpose.msra.mxu0 0.0
    %3552 = vmatprep.subr.mxu0 0.0
    %3553 = vmatpush1.xpose.msra.mxu0 0.0
    %3554 = vmatprep.subr.mxu0 0.0
    %3555 = vmatpush1.xpose.msra.mxu0 0.0
    %3556 = vmatprep.subr.mxu0 0.0
    %3557 = vmatpush1.xpose.msra.mxu0 0.0
    %3558 = vmatprep.subr.mxu0 0.0
    %3559 = vmatpush1.xpose.msra.mxu0 0.0
    %3560 = vmatprep.subr.mxu0 0.0
    %3561 = vmatpush1.xpose.msra.mxu0 0.0
    %3562 = vmatprep.subr.mxu0 0.0
    %3563 = vmatpush1.xpose.msra.mxu0 0.0
    %3564 = vmatprep.subr.mxu0 0.0
    %3565 = vmatpush1.xpose.msra.mxu0 0.0
    %3566 = vmatprep.subr.mxu0 0.0
    %3567 = vmatpush1.xpose.msra.mxu0 0.0
    %3568 = vmatprep.subr.mxu0 0.0
    %3569 = vmatpush1.xpose.msra.mxu0 0.0
    %3570 = vmatprep.subr.mxu0 0.0
    %3571 = vmatpush1.xpose.msra.mxu0 0.0
    %3572 = vmatprep.subr.mxu0 0.0
    %3573 = vmatpush1.xpose.msra.mxu0 0.0
    %3574 = vmatprep.subr.mxu0 0.0
    %3575 = vmatpush1.xpose.msra.mxu0 0.0
    %3576 = vmatprep.subr.mxu0 0.0
    %3577 = vmatpush1.xpose.msra.mxu0 0.0
    %3578 = vmatprep.subr.mxu0 0.0
    %3579 = vmatpush1.xpose.msra.mxu0 0.0
    %3580 = vmatprep.subr.mxu0 0.0
    %3581 = vmatpush1.xpose.msra.mxu0 0.0
    %3582 = vmatprep.subr.mxu0 0.0
    %3583 = vmatpush1.xpose.msra.mxu0 0.0
    %3584 = vmatprep.subr.mxu0 0.0
    %3585 = vmatpush1.xpose.msra.mxu0 0.0
    %3586 = vmatprep.subr.mxu0 0.0
    %3587 = vmatpush1.xpose.msra.mxu0 0.0
    %3588 = vmatprep.subr.mxu0 0.0
    %3589 = vmatpush1.xpose.msra.mxu0 0.0
    %3590 = vmatprep.subr.mxu0 0.0
    %3591 = vmatpush1.xpose.msra.mxu0 0.0
    %3592 = vmatprep.subr.mxu0 0.0
    %3593 = vmatpush1.xpose.msra.mxu0 0.0
    %3594 = vmatprep.subr.mxu0 0.0
    %3595 = vmatpush1.xpose.msra.mxu0 0.0
    %3596 = vmatprep.subr.mxu0 0.0
    %3597 = vmatpush1.xpose.msra.mxu0 0.0
    %3598 = vmatprep.subr.mxu0 0.0
    %3599 = vmatpush1.xpose.msra.mxu0 0.0
    %v3600 = vand.u32 %v58, 4294901760
    %v3601 = vsub.f32 %v58, %v3600
    %3602 = vmatprep.mubr.f32.mxu0 %v3601
    %v3603 = vand.u32 %v57, 4294901760
    %v3604 = vsub.f32 %v57, %v3603
    %3605 = vmatmul.mubr.f32.gmra.mrb[0].mxu0 %v3604
    %v3606 = vpop.f32.mrb[0].mxu0
    %v3607 = vadd.f32 %v3529, %v3606
    %v3608 = vpop.f32.mrb[0].mxu0
    %3609 = vdwg.mxu0
    %v3610 = vand.u32 %v58, 4294901760
    %3611 = vmatprep.subr.mxu0 %v3610
    %v3612 = vand.u32 %v57, 4294901760
    %3613 = vmatpush1.xpose.msra.mxu0 %v3612
    %3614 = vmatprep.subr.mxu0 0.0
    %3615 = vmatpush1.xpose.msra.mxu0 0.0
    %3616 = vmatprep.subr.mxu0 0.0
    %3617 = vmatpush1.xpose.msra.mxu0 0.0
    %3618 = vmatprep.subr.mxu0 0.0
    %3619 = vmatpush1.xpose.msra.mxu0 0.0
    %3620 = vmatprep.subr.mxu0 0.0
    %3621 = vmatpush1.xpose.msra.mxu0 0.0
    %3622 = vmatprep.subr.mxu0 0.0
    %3623 = vmatpush1.xpose.msra.mxu0 0.0
    %3624 = vmatprep.subr.mxu0 0.0
    %3625 = vmatpush1.xpose.msra.mxu0 0.0
    %3626 = vmatprep.subr.mxu0 0.0
    %3627 = vmatpush1.xpose.msra.mxu0 0.0
    %3628 = vmatprep.subr.mxu0 0.0
    %3629 = vmatpush1.xpose.msra.mxu0 0.0
    %3630 = vmatprep.subr.mxu0 0.0
    %3631 = vmatpush1.xpose.msra.mxu0 0.0
    %3632 = vmatprep.subr.mxu0 0.0
    %3633 = vmatpush1.xpose.msra.mxu0 0.0
    %3634 = vmatprep.subr.mxu0 0.0
    %3635 = vmatpush1.xpose.msra.mxu0 0.0
    %3636 = vmatprep.subr.mxu0 0.0
    %3637 = vmatpush1.xpose.msra.mxu0 0.0
    %3638 = vmatprep.subr.mxu0 0.0
    %3639 = vmatpush1.xpose.msra.mxu0 0.0
    %3640 = vmatprep.subr.mxu0 0.0
    %3641 = vmatpush1.xpose.msra.mxu0 0.0
    %3642 = vmatprep.subr.mxu0 0.0
    %3643 = vmatpush1.xpose.msra.mxu0 0.0
    %3644 = vmatprep.subr.mxu0 0.0
    %3645 = vmatpush1.xpose.msra.mxu0 0.0
    %3646 = vmatprep.subr.mxu0 0.0
    %3647 = vmatpush1.xpose.msra.mxu0 0.0
    %3648 = vmatprep.subr.mxu0 0.0
    %3649 = vmatpush1.xpose.msra.mxu0 0.0
    %3650 = vmatprep.subr.mxu0 0.0
    %3651 = vmatpush1.xpose.msra.mxu0 0.0
    %3652 = vmatprep.subr.mxu0 0.0
    %3653 = vmatpush1.xpose.msra.mxu0 0.0
    %3654 = vmatprep.subr.mxu0 0.0
    %3655 = vmatpush1.xpose.msra.mxu0 0.0
    %3656 = vmatprep.subr.mxu0 0.0
    %3657 = vmatpush1.xpose.msra.mxu0 0.0
    %3658 = vmatprep.subr.mxu0 0.0
    %3659 = vmatpush1.xpose.msra.mxu0 0.0
    %3660 = vmatprep.subr.mxu0 0.0
    %3661 = vmatpush1.xpose.msra.mxu0 0.0
    %3662 = vmatprep.subr.mxu0 0.0
    %3663 = vmatpush1.xpose.msra.mxu0 0.0
    %3664 = vmatprep.subr.mxu0 0.0
    %3665 = vmatpush1.xpose.msra.mxu0 0.0
    %3666 = vmatprep.subr.mxu0 0.0
    %3667 = vmatpush1.xpose.msra.mxu0 0.0
    %3668 = vmatprep.subr.mxu0 0.0
    %3669 = vmatpush1.xpose.msra.mxu0 0.0
    %3670 = vmatprep.subr.mxu0 0.0
    %3671 = vmatpush1.xpose.msra.mxu0 0.0
    %3672 = vmatprep.subr.mxu0 0.0
    %3673 = vmatpush1.xpose.msra.mxu0 0.0
    %3674 = vmatprep.subr.mxu0 0.0
    %3675 = vmatpush1.xpose.msra.mxu0 0.0
    %v3676 = vand.u32 %v58, 4294901760
    %v3677 = vsub.f32 %v58, %v3676
    %v3678 = vand.u32 %v3677, 4294901760
    %3679 = vmatprep.mubr.f32.mxu0 %v3678
    %v3680 = vand.u32 %v57, 4294901760
    %v3681 = vsub.f32 %v57, %v3680
    %v3682 = vand.u32 %v3681, 4294901760
    %3683 = vmatmul.mubr.f32.gmra.mrb[0].mxu0 %v3682
    %v3684 = vpop.f32.mrb[0].mxu0
    %v3685 = vadd.f32 %v3607, %v3684
    %v3686 = vpop.f32.mrb[0].mxu0
    %3687 = vdwg.mxu0
    %v3688 = vand.u32 %v58, 4294901760
    %v3689 = vsub.f32 %v58, %v3688
    %v3690 = vand.u32 %v3689, 4294901760
    %3691 = vmatprep.subr.mxu0 %v3690
    %v3692 = vand.u32 %v57, 4294901760
    %v3693 = vsub.f32 %v57, %v3692
    %v3694 = vand.u32 %v3693, 4294901760
    %3695 = vmatpush1.xpose.msra.mxu0 %v3694
    %3696 = vmatprep.subr.mxu0 0.0
    %3697 = vmatpush1.xpose.msra.mxu0 0.0
    %3698 = vmatprep.subr.mxu0 0.0
    %3699 = vmatpush1.xpose.msra.mxu0 0.0
    %3700 = vmatprep.subr.mxu0 0.0
    %3701 = vmatpush1.xpose.msra.mxu0 0.0
    %3702 = vmatprep.subr.mxu0 0.0
    %3703 = vmatpush1.xpose.msra.mxu0 0.0
    %3704 = vmatprep.subr.mxu0 0.0
    %3705 = vmatpush1.xpose.msra.mxu0 0.0
    %3706 = vmatprep.subr.mxu0 0.0
    %3707 = vmatpush1.xpose.msra.mxu0 0.0
    %3708 = vmatprep.subr.mxu0 0.0
    %3709 = vmatpush1.xpose.msra.mxu0 0.0
    %3710 = vmatprep.subr.mxu0 0.0
    %3711 = vmatpush1.xpose.msra.mxu0 0.0
    %3712 = vmatprep.subr.mxu0 0.0
    %3713 = vmatpush1.xpose.msra.mxu0 0.0
    %3714 = vmatprep.subr.mxu0 0.0
    %3715 = vmatpush1.xpose.msra.mxu0 0.0
    %3716 = vmatprep.subr.mxu0 0.0
    %3717 = vmatpush1.xpose.msra.mxu0 0.0
    %3718 = vmatprep.subr.mxu0 0.0
    %3719 = vmatpush1.xpose.msra.mxu0 0.0
    %3720 = vmatprep.subr.mxu0 0.0
    %3721 = vmatpush1.xpose.msra.mxu0 0.0
    %3722 = vmatprep.subr.mxu0 0.0
    %3723 = vmatpush1.xpose.msra.mxu0 0.0
    %3724 = vmatprep.subr.mxu0 0.0
    %3725 = vmatpush1.xpose.msra.mxu0 0.0
    %3726 = vmatprep.subr.mxu0 0.0
    %3727 = vmatpush1.xpose.msra.mxu0 0.0
    %3728 = vmatprep.subr.mxu0 0.0
    %3729 = vmatpush1.xpose.msra.mxu0 0.0
    %3730 = vmatprep.subr.mxu0 0.0
    %3731 = vmatpush1.xpose.msra.mxu0 0.0
    %3732 = vmatprep.subr.mxu0 0.0
    %3733 = vmatpush1.xpose.msra.mxu0 0.0
    %3734 = vmatprep.subr.mxu0 0.0
    %3735 = vmatpush1.xpose.msra.mxu0 0.0
    %3736 = vmatprep.subr.mxu0 0.0
    %3737 = vmatpush1.xpose.msra.mxu0 0.0
    %3738 = vmatprep.subr.mxu0 0.0
    %3739 = vmatpush1.xpose.msra.mxu0 0.0
    %3740 = vmatprep.subr.mxu0 0.0
    %3741 = vmatpush1.xpose.msra.mxu0 0.0
    %3742 = vmatprep.subr.mxu0 0.0
    %3743 = vmatpush1.xpose.msra.mxu0 0.0
    %3744 = vmatprep.subr.mxu0 0.0
    %3745 = vmatpush1.xpose.msra.mxu0 0.0
    %3746 = vmatprep.subr.mxu0 0.0
    %3747 = vmatpush1.xpose.msra.mxu0 0.0
    %3748 = vmatprep.subr.mxu0 0.0
    %3749 = vmatpush1.xpose.msra.mxu0 0.0
    %3750 = vmatprep.subr.mxu0 0.0
    %3751 = vmatpush1.xpose.msra.mxu0 0.0
    %3752 = vmatprep.subr.mxu0 0.0
    %3753 = vmatpush1.xpose.msra.mxu0 0.0
    %3754 = vmatprep.subr.mxu0 0.0
    %3755 = vmatpush1.xpose.msra.mxu0 0.0
    %3756 = vmatprep.subr.mxu0 0.0
    %3757 = vmatpush1.xpose.msra.mxu0 0.0
    %v3758 = vand.u32 %v58, 4294901760
    %3759 = vmatprep.mubr.f32.mxu0 %v3758
    %v3760 = vand.u32 %v57, 4294901760
    %3761 = vmatmul.mubr.f32.gmra.mrb[0].mxu0 %v3760
    %v3762 = vpop.f32.mrb[0].mxu0
    %v3763 = vadd.f32 %v3685, %v3762
    %v3764 = vpop.f32.mrb[0].mxu0
    %3765 = vdwg.mxu0
    %v3766 = vand.u32 %v58, 4294901760
    %3767 = vmatprep.subr.mxu0 %v3766
    %v3768 = vand.u32 %v57, 4294901760
    %3769 = vmatpush1.xpose.msra.mxu0 %v3768
    %3770 = vmatprep.subr.mxu0 0.0
    %3771 = vmatpush1.xpose.msra.mxu0 0.0
    %3772 = vmatprep.subr.mxu0 0.0
    %3773 = vmatpush1.xpose.msra.mxu0 0.0
    %3774 = vmatprep.subr.mxu0 0.0
    %3775 = vmatpush1.xpose.msra.mxu0 0.0
    %3776 = vmatprep.subr.mxu0 0.0
    %3777 = vmatpush1.xpose.msra.mxu0 0.0
    %3778 = vmatprep.subr.mxu0 0.0
    %3779 = vmatpush1.xpose.msra.mxu0 0.0
    %3780 = vmatprep.subr.mxu0 0.0
    %3781 = vmatpush1.xpose.msra.mxu0 0.0
    %3782 = vmatprep.subr.mxu0 0.0
    %3783 = vmatpush1.xpose.msra.mxu0 0.0
    %3784 = vmatprep.subr.mxu0 0.0
    %3785 = vmatpush1.xpose.msra.mxu0 0.0
    %3786 = vmatprep.subr.mxu0 0.0
    %3787 = vmatpush1.xpose.msra.mxu0 0.0
    %3788 = vmatprep.subr.mxu0 0.0
    %3789 = vmatpush1.xpose.msra.mxu0 0.0
    %3790 = vmatprep.subr.mxu0 0.0
    %3791 = vmatpush1.xpose.msra.mxu0 0.0
    %3792 = vmatprep.subr.mxu0 0.0
    %3793 = vmatpush1.xpose.msra.mxu0 0.0
    %3794 = vmatprep.subr.mxu0 0.0
    %3795 = vmatpush1.xpose.msra.mxu0 0.0
    %3796 = vmatprep.subr.mxu0 0.0
    %3797 = vmatpush1.xpose.msra.mxu0 0.0
    %3798 = vmatprep.subr.mxu0 0.0
    %3799 = vmatpush1.xpose.msra.mxu0 0.0
    %3800 = vmatprep.subr.mxu0 0.0
    %3801 = vmatpush1.xpose.msra.mxu0 0.0
    %3802 = vmatprep.subr.mxu0 0.0
    %3803 = vmatpush1.xpose.msra.mxu0 0.0
    %3804 = vmatprep.subr.mxu0 0.0
    %3805 = vmatpush1.xpose.msra.mxu0 0.0
    %3806 = vmatprep.subr.mxu0 0.0
    %3807 = vmatpush1.xpose.msra.mxu0 0.0
    %3808 = vmatprep.subr.mxu0 0.0
    %3809 = vmatpush1.xpose.msra.mxu0 0.0
    %3810 = vmatprep.subr.mxu0 0.0
    %3811 = vmatpush1.xpose.msra.mxu0 0.0
    %3812 = vmatprep.subr.mxu0 0.0
    %3813 = vmatpush1.xpose.msra.mxu0 0.0
    %3814 = vmatprep.subr.mxu0 0.0
    %3815 = vmatpush1.xpose.msra.mxu0 0.0
    %3816 = vmatprep.subr.mxu0 0.0
    %3817 = vmatpush1.xpose.msra.mxu0 0.0
    %3818 = vmatprep.subr.mxu0 0.0
    %3819 = vmatpush1.xpose.msra.mxu0 0.0
    %3820 = vmatprep.subr.mxu0 0.0
    %3821 = vmatpush1.xpose.msra.mxu0 0.0
    %3822 = vmatprep.subr.mxu0 0.0
    %3823 = vmatpush1.xpose.msra.mxu0 0.0
    %3824 = vmatprep.subr.mxu0 0.0
    %3825 = vmatpush1.xpose.msra.mxu0 0.0
    %3826 = vmatprep.subr.mxu0 0.0
    %3827 = vmatpush1.xpose.msra.mxu0 0.0
    %3828 = vmatprep.subr.mxu0 0.0
    %3829 = vmatpush1.xpose.msra.mxu0 0.0
    %3830 = vmatprep.subr.mxu0 0.0
    %3831 = vmatpush1.xpose.msra.mxu0 0.0
    %v3832 = vand.u32 %v58, 4294901760
    %3833 = vmatprep.mubr.f32.mxu0 %v3832
    %v3834 = vand.u32 %v57, 4294901760
    %3835 = vmatmul.mubr.f32.gmra.mrb[0].mxu0 %v3834
    %v3836 = vpop.f32.mrb[0].mxu0
    %v3837 = vadd.f32 %v3763, %v3836
    %v3838 = vpop.f32.mrb[0].mxu0
    %3839 = vdwg.mxu0
    %v3840 = vadd.f32 %v1951, %v3837
    %3841 = vst.msk [vmem:[#allocation3] sm:$0xff] %vm1949, %v3840
    // Predicated region
    $region22: #{tpu_custom_call.1} parent=1 // pred_check
      %p3842 = pneg %p36
    $region23: #{tpu_custom_call.1} parent=1 // pred_check_branch
      %3844 = sbr.rel (%p3842) target = $region25
    $region24: #{tpu_custom_call.1} parent=1 // pred_region
      %v3845 = vld [vmem:[#allocation2] sm:$0xff]
      %v3846 = vld [vmem:[#allocation3] sm:$0xff]
      %v3847 = vmul.f32 %v3845, %v3845
      %v3848 = vsel %vm1949, %v3847, 0.0
      %3849 = vadd.xlane.f32.xlu0 %v3848
      %v3850 = vpop.xlane.xlu0 %3849
      %v3851 = vmax.f32 %v3850, 1e-24
      %v3852 = vrsqrt.pop %v3851
      %v3853 = vmul.f32 %v3846, %v3846
      %v3854 = vsel %vm1949, %v3853, 0.0
      %3855 = vadd.xlane.f32.xlu0 %v3854
      %v3856 = vpop.xlane.xlu0 %3855
      %v3857 = vmax.f32 %v3856, 1e-24
      %v3858 = vrsqrt.pop %v3857
      %v3859 = vmul.f32 %v3845, %v3852
      %v3860 = vmul.f32 %v3846, %v3858
      %v3861 = vsub.f32 %v3859, %v3860
      %v3862 = vmul.f32 %v3861, %v3861
      %v3863 = vsel %vm1949, %v3862, 0.0
      %3864 = vadd.xlane.f32.xlu0 %v3863
      %v3865 = vpop.xlane.xlu0 %3864
      %v3866 = vrot.slane %v3865, 4
      %v3867 = vadd.f32 %v3865, %v3866
      %v3868 = vrot.slane %v3867, 2
      %v3869 = vadd.f32 %v3867, %v3868
      %v3870 = vrot.slane %v3869, 1
      %v3871 = vadd.f32 %v3869, %v3870
      %s3872 = vtos %v3871
      %s3873 = smul.f32 %s3872, 0.015625
      %s3874 = scalar_lea.smem [#allocation9], 0
      %3875 = sst [smem:[%s3874]] %s3873
    $region25: #{tpu_custom_call.1} parent=1 // pred_fallthru
      _
    // Predicated region
    $region26: #{tpu_custom_call.1} parent=1 // pred_check
      _
    $region27: #{tpu_custom_call.1} parent=1 // pred_check_branch
      %3877 = sbr.rel (0) target = $region29
    $region28: #{tpu_custom_call.1} parent=1 // pred_region
      %s3879 = ssub.s32 16, 16
      %3880 = vsyncadd [#allocation6], %s3879
      %3883 = dma.smem_to_hbm [#allocation9], 16, %s2, [#allocation6]
    $region29: #{tpu_custom_call.1} parent=1 // pred_fallthru
      _
    // Predicated region
    $region30: #{tpu_custom_call.1} parent=1 // pred_check
      _
    $region31: #{tpu_custom_call.1} parent=1 // pred_check_branch
      %3885 = sbr.rel (0) target = $region33
    $region32: #{tpu_custom_call.1} parent=1 // pred_region
      %3886 = dma.done [#allocation6], 16
    $region33: #{tpu_custom_call.1} parent=1 // pred_fallthru
      _
    %3887 = sfence
    %3888 = vsyncpa [#allocation5], 1
    %3889 = vsyncpa [#allocation8], 1
    %3890 = vsyncpa [#allocation6], 1

</llo_original>
